<compile_context>
chip_gen: v5e
topology: v5e:2x2
jax: 0.10.0
libtpu: 0.0.40
codegen_flags: <defaults>
</compile_context>

<pallas_src>
import functools

import jax
import jax.numpy as jnp
from jax import lax
from jax.experimental import pallas as pl
from jax.experimental.pallas import tpu as pltpu


# ----------------------------------------------------------------------------
# Fused Pallas kernel
# ----------------------------------------------------------------------------

def _make_fused_lstm_kernel(T, B, E, H, num_layers):
    """Builds the fused forward kernel for a fixed (T, B, E, H) config."""
    GH = 2 * H      # fwd|bwd concatenated hidden width
    GW = 8 * H      # all-gate combined width: [i_f i_b f_f f_b g_f g_b o_f o_b]

    def kernel(*args):
        # ---- unpack refs ----------------------------------------------------
        x_ref, h0_ref = args[0], args[1]
        layer_refs = []
        idx = 2
        for _ in range(num_layers):
            layer_refs.append(args[idx:idx + 4])   # (w_x_fwd, w_x_bwd, b, w_h)
            idx += 4
        w_fc_ref, b_fc_ref = args[idx], args[idx + 1]
        y_ref = args[idx + 2]
        hf_scr, hb_scr = args[idx + 3], args[idx + 4]   # (T, B, H) VMEM each

        # Per-lane mask for the "g" gate blocks (columns [4H, 6H)), hoisted
        # once outside all loops.
        lane = lax.broadcasted_iota(jnp.int32, (B, GW), 1)
        is_g = (lane >= 2 * GH) & (lane < 3 * GH)

        def run_layer(gxf, gxb, w_h, h0, last):
            """Fwd+bwd recurrence of one layer over all T steps (unrolled)."""
            h_cat = h0                      # (B, 2H): [h_fwd | h_bwd]
            c_cat = h0                      # module forward uses h0 for c too
            zmax = jnp.zeros((B, GH), jnp.float32)
            for t in range(T):              # statically unrolled
                gates = (gxf[t] + gxb[T - 1 - t]
                         + jnp.dot(h_cat, w_h,
                                   preferred_element_type=jnp.float32))
                # One EUP tanh pass over the full (B, 8H) gate vector:
                #   sigmoid(x) = 0.5*(1 + tanh(x/2)) for i/f/o; tanh for g.
                pre = jnp.where(is_g, gates, 0.5 * gates)
                th = jnp.tanh(pre)
                act = jnp.where(is_g, th, 0.5 * (th + 1.0))
                i_c = act[:, 0 * GH:1 * GH]     # [i_f | i_b]
                f_c = act[:, 1 * GH:2 * GH]     # [f_f | f_b]
                g_c = act[:, 2 * GH:3 * GH]     # [g_f | g_b]
                o_c = act[:, 3 * GH:4 * GH]     # [o_f | o_b]
                c_cat = f_c * c_cat + i_c * g_c
                h_cat = o_c * jnp.tanh(c_cat)
                if last:
                    # Stream ReLU + max-over-time (order independent).
                    zmax = jnp.maximum(zmax, jnp.maximum(h_cat, 0.0))
                else:
                    # fwd half belongs to time t, bwd half to time T-1-t.
                    hf_scr[t] = h_cat[:, :H]
                    hb_scr[T - 1 - t] = h_cat[:, H:]
            return zmax

        zmax = jnp.zeros((B, GH), jnp.float32)
        for l in range(num_layers):
            w_xf_ref, w_xb_ref, b_ref, w_h_ref = layer_refs[l]
            w_xf = w_xf_ref[...]
            w_xb = w_xb_ref[...]
            bias = b_ref[...]
            if l == 0:
                # Hoisted input projection for both directions of layer 0.
                inp = x_ref[...].reshape(T * B, E)
                gxf = jnp.dot(inp, w_xf,
                              preferred_element_type=jnp.float32) + bias
                gxb = jnp.dot(inp, w_xb, preferred_element_type=jnp.float32)
            else:
                # Layer input is [h_prev_fwd | h_prev_bwd]; split by halves so
                # no lane-concat of the scratch buffers is needed.
                inp_f = hf_scr[...].reshape(T * B, H)
                inp_b = hb_scr[...].reshape(T * B, H)
                gxf = (jnp.dot(inp_f, w_xf[:H],
                               preferred_element_type=jnp.float32)
                       + jnp.dot(inp_b, w_xf[H:],
                                 preferred_element_type=jnp.float32)
                       + bias)
                gxb = (jnp.dot(inp_f, w_xb[:H],
                               preferred_element_type=jnp.float32)
                       + jnp.dot(inp_b, w_xb[H:],
                                 preferred_element_type=jnp.float32))
            gxf = gxf.reshape(T, B, GW)
            gxb = gxb.reshape(T, B, GW)
            zmax = run_layer(gxf, gxb, w_h_ref[...], h0_ref[l],
                             last=(l == num_layers - 1))

        # Classifier: ReLU+maxpool already folded into zmax. Lane-dense
        # (B, 128) padded output tile; the wrapper slices to label_size.
        y_ref[...] = (jnp.dot(zmax, w_fc_ref[...],
                              preferred_element_type=jnp.float32)
                      + b_fc_ref[...])

    return kernel


# ----------------------------------------------------------------------------
# Wrapper
# ----------------------------------------------------------------------------

_VMEM = pl.BlockSpec(memory_space=pltpu.MemorySpace.VMEM)


@functools.partial(jax.jit,
                   static_argnames=("num_layers", "hidden_size", "label_size"))
def lstm_model_forward(tokens, prepped, *, num_layers, hidden_size, label_size):
    """Forward pass equivalent to LSTM.forward(batch) in eval mode."""
    H = hidden_size
    B, T = tokens.shape
    E = prepped["embedding"].shape[1]
    LP = prepped["w_fc"].shape[1]

    # Embedding lookup + time-major layout (plain-JAX glue; the gather has no
    # clean in-kernel Pallas equivalent at this scale).
    emb = jnp.take(prepped["embedding"], tokens, axis=0)       # (B, T, E)
    x = jnp.transpose(emb, (1, 0, 2)).astype(jnp.float32)      # (T, B, E)

    # The module's forward uses self.h0 for BOTH the h and c initial state.
    h0_cat = jnp.broadcast_to(prepped["h0_cat"][:, None, :],
                              (num_layers, B, 2 * H)).astype(jnp.float32)

    layer_args = []
    for lp in prepped["layers"]:
        layer_args += [lp["w_x_fwd"], lp["w_x_bwd"], lp["b"], lp["w_h"]]

    kernel = _make_fused_lstm_kernel(T, B, E, H, num_layers)
    n_inputs = 2 + len(layer_args) + 2
    y_pad = pl.pallas_call(
        kernel,
        out_shape=jax.ShapeDtypeStruct((B, LP), jnp.float32),
        in_specs=[_VMEM] * n_inputs,
        out_specs=_VMEM,
        scratch_shapes=[pltpu.VMEM((T, B, H), jnp.float32),
                        pltpu.VMEM((T, B, H), jnp.float32)],
    )(x, h0_cat, *layer_args, prepped["w_fc"], prepped["b_fc"])

    # TODO(synk): nn.LSTM inter-layer dropout and self.dropout are identity in
    # eval mode and are intentionally omitted.
    return y_pad[:, :label_size]


# ----------------------------------------------------------------------------
# Parameter construction (PyTorch layout) and one-time kernel re-layout
# ----------------------------------------------------------------------------

def make_params(key, *, vocab_size, embed_dim, hidden_size, num_layers,
                label_size):
    """PyTorch-layout parameters (nn.Embedding / nn.LSTM / nn.Linear)."""
    H = hidden_size
    scale = 1.0 / jnp.sqrt(jnp.float32(H))
    keys = iter(jax.random.split(key, 128))

    def uni(shape):
        return jax.random.uniform(next(keys), shape, jnp.float32, -scale, scale)

    params = {
        "embedding": jax.random.normal(next(keys), (vocab_size, embed_dim),
                                       jnp.float32) * 0.1,
        # self.h0 is an all-zeros Parameter; the forward uses it for h AND c.
        "h0": jnp.zeros((num_layers * 2, H), jnp.float32),
        "fc_w": uni((label_size, 2 * H)),
        "fc_b": uni((label_size,)),
        "lstm": {},
    }
    for layer in range(num_layers):
        d_in = embed_dim if layer == 0 else 2 * H
        for direction in range(2):
            params["lstm"][(layer, direction)] = {
                "w_ih": uni((4 * H, d_in)),   # PyTorch (4H, D_in), gates i,f,g,o
                "w_hh": uni((4 * H, H)),
                "b_ih": uni((4 * H,)),
                "b_hh": uni((4 * H,)),
            }
    return params


def prepare_fused_params(params, *, num_layers, hidden_size, label_size,
                         lane_pad=128):
    """One-time host-side re-layout into the kernel's combined gate layout.

    Combined gate columns (width H each): [i_f i_b f_f f_b g_f g_b o_f o_b].
    """
    H = hidden_size
    GW = 8 * H
    prepped = {"embedding": params["embedding"], "layers": []}

    h0 = params["h0"]                                           # (2L, H)
    prepped["h0_cat"] = jnp.stack(
        [jnp.concatenate([h0[2 * l], h0[2 * l + 1]], axis=0)
         for l in range(num_layers)], axis=0)                   # (L, 2H)

    for l in range(num_layers):
        pf = params["lstm"][(l, 0)]
        pb = params["lstm"][(l, 1)]
        d_in = pf["w_ih"].shape[1]
        w_xf = jnp.zeros((d_in, GW), jnp.float32)
        w_xb = jnp.zeros((d_in, GW), jnp.float32)
        w_h = jnp.zeros((2 * H, GW), jnp.float32)
        b = jnp.zeros((GW,), jnp.float32)
        for k in range(4):                       # gate order: i, f, g, o
            for d, p in ((0, pf), (1, pb)):
                col = (2 * k + d) * H
                wi = p["w_ih"][k * H:(k + 1) * H, :].T           # (d_in, H)
                wh = p["w_hh"][k * H:(k + 1) * H, :].T           # (H, H)
                bg = (p["b_ih"][k * H:(k + 1) * H]
                      + p["b_hh"][k * H:(k + 1) * H])
                if d == 0:
                    w_xf = w_xf.at[:, col:col + H].set(wi)
                else:
                    w_xb = w_xb.at[:, col:col + H].set(wi)
                w_h = w_h.at[d * H:(d + 1) * H, col:col + H].set(wh)
                b = b.at[col:col + H].set(bg)
        prepped["layers"].append({"w_x_fwd": w_xf, "w_x_bwd": w_xb,
                                  "b": b[None, :], "w_h": w_h})

    L = label_size
    LP = max(lane_pad, L)
    prepped["w_fc"] = (jnp.zeros((2 * H, LP), jnp.float32)
                       .at[:, :L].set(params["fc_w"].T))
    prepped["b_fc"] = (jnp.zeros((1, LP), jnp.float32)
                       .at[:, :L].set(params["fc_b"]))
    return prepped


# ----------------------------------------------------------------------------
# Pure-JAX reference (mirrors the PyTorch module literally)
# ----------------------------------------------------------------------------

def reference_forward(tokens, params, *, num_layers, hidden_size):
    H = hidden_size
    emb = jnp.take(params["embedding"], tokens, axis=0)         # (B, T, E)
    B, T, _ = emb.shape
    layer_in = emb
    for layer in range(num_layers):
        outs = []
        for direction in range(2):
            p = params["lstm"][(layer, direction)]
            b = p["b_ih"] + p["b_hh"]
            h = jnp.broadcast_to(params["h0"][2 * layer + direction], (B, H))
            c = h
            order = range(T) if direction == 0 else range(T - 1, -1, -1)
            hs = [None] * T
            for t in order:
                xt = layer_in[:, t, :]
                g = xt @ p["w_ih"].T + h @ p["w_hh"].T + b
                i = jax.nn.sigmoid(g[:, 0 * H:1 * H])
                f = jax.nn.sigmoid(g[:, 1 * H:2 * H])
                gg = jnp.tanh(g[:, 2 * H:3 * H])
                o = jax.nn.sigmoid(g[:, 3 * H:4 * H])
                c = f * c + i * gg
                h = o * jnp.tanh(c)
                hs[t] = h
            outs.append(jnp.stack(hs, axis=1))                  # (B, T, H)
        layer_in = jnp.concatenate(outs, axis=-1)               # (B, T, 2H)
    z = jnp.max(jnp.maximum(layer_in, 0.0), axis=1)             # (B, 2H)
    return z @ params["fc_w"].T + params["fc_b"]


# ----------------------------------------------------------------------------
# Main
# ----------------------------------------------------------------------------

if __name__ == "__main__":
    VOCAB_SIZE = 50
    EMBED_DIM = 32
    HIDDEN_SIZE = 32
    NUM_LAYERS = 2
    LABEL_SIZE = 4
    BATCH = 2
    SEQ = 8

    key = jax.random.PRNGKey(0)
    k_tok, k_par = jax.random.split(key)

    tokens = jax.random.randint(k_tok, (BATCH, SEQ), 0, VOCAB_SIZE, jnp.int32)
    params = make_params(k_par, vocab_size=VOCAB_SIZE, embed_dim=EMBED_DIM,
                         hidden_size=HIDDEN_SIZE, num_layers=NUM_LAYERS,
                         label_size=LABEL_SIZE)
    prepped = prepare_fused_params(params, num_layers=NUM_LAYERS,
                                   hidden_size=HIDDEN_SIZE,
                                   label_size=LABEL_SIZE)

    y = lstm_model_forward(tokens, prepped, num_layers=NUM_LAYERS,
                           hidden_size=HIDDEN_SIZE, label_size=LABEL_SIZE)
    y = jax.block_until_ready(y)
    assert y.shape == (BATCH, LABEL_SIZE), y.shape
    assert bool(jnp.all(jnp.isfinite(y)))

    # Cross-check the fused kernel against the pure-JAX reference.
    with jax.default_matmul_precision("float32"):
        y_ref = reference_forward(tokens, params, num_layers=NUM_LAYERS,
                                  hidden_size=HIDDEN_SIZE)
    err = float(jnp.max(jnp.abs(y - y_ref)))
    assert err < 2e-3, f"mismatch vs reference: {err}"

    print("KERNEL_OK")
</pallas_src>

<mosaic_0001>
module attributes {stable_mosaic.version = 11 : i64} {
  func.func @kernel(%arg0: memref<8x2x32xf32, #tpu.memory_space<vmem>>, %arg1: memref<2x2x64xf32, #tpu.memory_space<vmem>>, %arg2: memref<32x256xf32, #tpu.memory_space<vmem>>, %arg3: memref<32x256xf32, #tpu.memory_space<vmem>>, %arg4: memref<1x256xf32, #tpu.memory_space<vmem>>, %arg5: memref<64x256xf32, #tpu.memory_space<vmem>>, %arg6: memref<64x256xf32, #tpu.memory_space<vmem>>, %arg7: memref<64x256xf32, #tpu.memory_space<vmem>>, %arg8: memref<1x256xf32, #tpu.memory_space<vmem>>, %arg9: memref<64x256xf32, #tpu.memory_space<vmem>>, %arg10: memref<64x128xf32, #tpu.memory_space<vmem>>, %arg11: memref<1x128xf32, #tpu.memory_space<vmem>>, %arg12: memref<2x128xf32, #tpu.memory_space<vmem>>, %arg13: memref<8x2x32xf32, #tpu.memory_space<vmem>>, %arg14: memref<8x2x32xf32, #tpu.memory_space<vmem>>) attributes {dimension_semantics = [], scalar_prefetch = 0 : i64, scratch_operands = 2 : i64, tpu.core_type = #tpu.core_type<tc>} {
    %0 = tpu.iota {dimensions = array<i32: 1>} : vector<2x256xi32>
    %c128_i32 = arith.constant 128 : i32
    %1 = vector.broadcast %c128_i32 : i32 to vector<2x256xi32>
    %2 = arith.cmpi sge, %0, %1 : vector<2x256xi32>
    %c192_i32 = arith.constant 192 : i32
    %3 = vector.broadcast %c192_i32 : i32 to vector<2x256xi32>
    %4 = arith.cmpi slt, %0, %3 : vector<2x256xi32>
    %5 = arith.andi %2, %4 : vector<2x256xi1>
    %c0 = arith.constant 0 : index
    %c0_0 = arith.constant 0 : index
    %6 = vector.load %arg2[%c0, %c0_0] : memref<32x256xf32, #tpu.memory_space<vmem>>, vector<32x256xf32>
    %c0_1 = arith.constant 0 : index
    %c0_2 = arith.constant 0 : index
    %7 = vector.load %arg3[%c0_1, %c0_2] : memref<32x256xf32, #tpu.memory_space<vmem>>, vector<32x256xf32>
    %c0_3 = arith.constant 0 : index
    %c0_4 = arith.constant 0 : index
    %8 = vector.load %arg4[%c0_3, %c0_4] : memref<1x256xf32, #tpu.memory_space<vmem>>, vector<1x256xf32>
    %c0_5 = arith.constant 0 : index
    %c0_6 = arith.constant 0 : index
    %c0_7 = arith.constant 0 : index
    %9 = vector.load %arg0[%c0_5, %c0_6, %c0_7] : memref<8x2x32xf32, #tpu.memory_space<vmem>>, vector<8x2x32xf32>
    %10 = vector.shape_cast %9 : vector<8x2x32xf32> to vector<16x32xf32>
    %cst = arith.constant dense<0.000000e+00> : vector<16x256xf32>
    %11 = tpu.matmul %10, %6, %cst {dimension_numbers = #tpu.dot_dimension_numbers<[1], [0], [0], [1], [0, 0, 1, 1], [], []>} : vector<16x32xf32>, vector<32x256xf32>, vector<16x256xf32> -> vector<16x256xf32>
    %12 = vector.broadcast %8 : vector<1x256xf32> to vector<16x256xf32>
    %13 = arith.addf %11, %12 : vector<16x256xf32>
    %cst_8 = arith.constant dense<0.000000e+00> : vector<16x256xf32>
    %14 = tpu.matmul %10, %7, %cst_8 {dimension_numbers = #tpu.dot_dimension_numbers<[1], [0], [0], [1], [0, 0, 1, 1], [], []>} : vector<16x32xf32>, vector<32x256xf32>, vector<16x256xf32> -> vector<16x256xf32>
    %15 = vector.shape_cast %13 : vector<16x256xf32> to vector<8x2x256xf32>
    %16 = vector.shape_cast %14 : vector<16x256xf32> to vector<8x2x256xf32>
    %c0_9 = arith.constant 0 : index
    %c0_10 = arith.constant 0 : index
    %17 = vector.load %arg5[%c0_9, %c0_10] : memref<64x256xf32, #tpu.memory_space<vmem>>, vector<64x256xf32>
    %c0_11 = arith.constant 0 : index
    %c0_12 = arith.constant 0 : index
    %c0_13 = arith.constant 0 : index
    %18 = vector.load %arg1[%c0_11, %c0_12, %c0_13] : memref<2x2x64xf32, #tpu.memory_space<vmem>>, vector<1x2x64xf32>
    %19 = vector.shape_cast %18 : vector<1x2x64xf32> to vector<2x64xf32>
    %20 = vector.extract_strided_slice %15 {offsets = [0, 0, 0], sizes = [1, 2, 256], strides = [1, 1, 1]} : vector<8x2x256xf32> to vector<1x2x256xf32>
    %21 = vector.shape_cast %20 : vector<1x2x256xf32> to vector<2x256xf32>
    %22 = vector.extract_strided_slice %16 {offsets = [7, 0, 0], sizes = [1, 2, 256], strides = [1, 1, 1]} : vector<8x2x256xf32> to vector<1x2x256xf32>
    %23 = vector.shape_cast %22 : vector<1x2x256xf32> to vector<2x256xf32>
    %24 = arith.addf %21, %23 : vector<2x256xf32>
    %cst_14 = arith.constant dense<0.000000e+00> : vector<2x256xf32>
    %25 = tpu.matmul %19, %17, %cst_14 {dimension_numbers = #tpu.dot_dimension_numbers<[1], [0], [0], [1], [0, 0, 1, 1], [], []>} : vector<2x64xf32>, vector<64x256xf32>, vector<2x256xf32> -> vector<2x256xf32>
    %26 = arith.addf %24, %25 : vector<2x256xf32>
    %cst_15 = arith.constant 5.000000e-01 : f32
    %27 = vector.broadcast %cst_15 : f32 to vector<2x256xf32>
    %28 = arith.mulf %27, %26 : vector<2x256xf32>
    %29 = arith.select %5, %26, %28 : vector<2x256xi1>, vector<2x256xf32>
    %30 = math.tanh %29 : vector<2x256xf32>
    %cst_16 = arith.constant 1.000000e+00 : f32
    %31 = vector.broadcast %cst_16 : f32 to vector<2x256xf32>
    %32 = arith.addf %30, %31 : vector<2x256xf32>
    %cst_17 = arith.constant 5.000000e-01 : f32
    %33 = vector.broadcast %cst_17 : f32 to vector<2x256xf32>
    %34 = arith.mulf %33, %32 : vector<2x256xf32>
    %35 = arith.select %5, %30, %34 : vector<2x256xi1>, vector<2x256xf32>
    %36 = vector.extract_strided_slice %35 {offsets = [0, 0], sizes = [2, 64], strides = [1, 1]} : vector<2x256xf32> to vector<2x64xf32>
    %37 = vector.extract_strided_slice %35 {offsets = [0, 64], sizes = [2, 64], strides = [1, 1]} : vector<2x256xf32> to vector<2x64xf32>
    %38 = vector.extract_strided_slice %35 {offsets = [0, 128], sizes = [2, 64], strides = [1, 1]} : vector<2x256xf32> to vector<2x64xf32>
    %39 = vector.extract_strided_slice %35 {offsets = [0, 192], sizes = [2, 64], strides = [1, 1]} : vector<2x256xf32> to vector<2x64xf32>
    %40 = arith.mulf %37, %19 : vector<2x64xf32>
    %41 = arith.mulf %36, %38 : vector<2x64xf32>
    %42 = arith.addf %40, %41 : vector<2x64xf32>
    %43 = math.tanh %42 : vector<2x64xf32>
    %44 = arith.mulf %39, %43 : vector<2x64xf32>
    %45 = vector.extract_strided_slice %44 {offsets = [0, 0], sizes = [2, 32], strides = [1, 1]} : vector<2x64xf32> to vector<2x32xf32>
    %c0_18 = arith.constant 0 : index
    %c0_19 = arith.constant 0 : index
    %c0_20 = arith.constant 0 : index
    %46 = vector.load %arg13[%c0_18, %c0_19, %c0_20] : memref<8x2x32xf32, #tpu.memory_space<vmem>>, vector<1x2x32xf32>
    %47 = vector.shape_cast %46 : vector<1x2x32xf32> to vector<2x32xf32>
    %48 = vector.shape_cast %45 : vector<2x32xf32> to vector<1x2x32xf32>
    tpu.vector_store %arg13[%c0_18, %c0_19, %c0_20], %48 {strides = array<i32>} : memref<8x2x32xf32, #tpu.memory_space<vmem>>, vector<1x2x32xf32>,
    %49 = vector.extract_strided_slice %44 {offsets = [0, 32], sizes = [2, 32], strides = [1, 1]} : vector<2x64xf32> to vector<2x32xf32>
    %c7 = arith.constant 7 : index
    %c0_21 = arith.constant 0 : index
    %c0_22 = arith.constant 0 : index
    %50 = vector.load %arg14[%c7, %c0_21, %c0_22] : memref<8x2x32xf32, #tpu.memory_space<vmem>>, vector<1x2x32xf32>
    %51 = vector.shape_cast %50 : vector<1x2x32xf32> to vector<2x32xf32>
    %52 = vector.shape_cast %49 : vector<2x32xf32> to vector<1x2x32xf32>
    tpu.vector_store %arg14[%c7, %c0_21, %c0_22], %52 {strides = array<i32>} : memref<8x2x32xf32, #tpu.memory_space<vmem>>, vector<1x2x32xf32>,
    %53 = vector.extract_strided_slice %15 {offsets = [1, 0, 0], sizes = [1, 2, 256], strides = [1, 1, 1]} : vector<8x2x256xf32> to vector<1x2x256xf32>
    %54 = vector.shape_cast %53 : vector<1x2x256xf32> to vector<2x256xf32>
    %55 = vector.extract_strided_slice %16 {offsets = [6, 0, 0], sizes = [1, 2, 256], strides = [1, 1, 1]} : vector<8x2x256xf32> to vector<1x2x256xf32>
    %56 = vector.shape_cast %55 : vector<1x2x256xf32> to vector<2x256xf32>
    %57 = arith.addf %54, %56 : vector<2x256xf32>
    %cst_23 = arith.constant dense<0.000000e+00> : vector<2x256xf32>
    %58 = tpu.matmul %44, %17, %cst_23 {dimension_numbers = #tpu.dot_dimension_numbers<[1], [0], [0], [1], [0, 0, 1, 1], [], []>} : vector<2x64xf32>, vector<64x256xf32>, vector<2x256xf32> -> vector<2x256xf32>
    %59 = arith.addf %57, %58 : vector<2x256xf32>
    %cst_24 = arith.constant 5.000000e-01 : f32
    %60 = vector.broadcast %cst_24 : f32 to vector<2x256xf32>
    %61 = arith.mulf %60, %59 : vector<2x256xf32>
    %62 = arith.select %5, %59, %61 : vector<2x256xi1>, vector<2x256xf32>
    %63 = math.tanh %62 : vector<2x256xf32>
    %cst_25 = arith.constant 1.000000e+00 : f32
    %64 = vector.broadcast %cst_25 : f32 to vector<2x256xf32>
    %65 = arith.addf %63, %64 : vector<2x256xf32>
    %cst_26 = arith.constant 5.000000e-01 : f32
    %66 = vector.broadcast %cst_26 : f32 to vector<2x256xf32>
    %67 = arith.mulf %66, %65 : vector<2x256xf32>
    %68 = arith.select %5, %63, %67 : vector<2x256xi1>, vector<2x256xf32>
    %69 = vector.extract_strided_slice %68 {offsets = [0, 0], sizes = [2, 64], strides = [1, 1]} : vector<2x256xf32> to vector<2x64xf32>
    %70 = vector.extract_strided_slice %68 {offsets = [0, 64], sizes = [2, 64], strides = [1, 1]} : vector<2x256xf32> to vector<2x64xf32>
    %71 = vector.extract_strided_slice %68 {offsets = [0, 128], sizes = [2, 64], strides = [1, 1]} : vector<2x256xf32> to vector<2x64xf32>
    %72 = vector.extract_strided_slice %68 {offsets = [0, 192], sizes = [2, 64], strides = [1, 1]} : vector<2x256xf32> to vector<2x64xf32>
    %73 = arith.mulf %70, %42 : vector<2x64xf32>
    %74 = arith.mulf %69, %71 : vector<2x64xf32>
    %75 = arith.addf %73, %74 : vector<2x64xf32>
    %76 = math.tanh %75 : vector<2x64xf32>
    %77 = arith.mulf %72, %76 : vector<2x64xf32>
    %78 = vector.extract_strided_slice %77 {offsets = [0, 0], sizes = [2, 32], strides = [1, 1]} : vector<2x64xf32> to vector<2x32xf32>
    %c1 = arith.constant 1 : index
    %c0_27 = arith.constant 0 : index
    %c0_28 = arith.constant 0 : index
    %79 = vector.load %arg13[%c1, %c0_27, %c0_28] : memref<8x2x32xf32, #tpu.memory_space<vmem>>, vector<1x2x32xf32>
    %80 = vector.shape_cast %79 : vector<1x2x32xf32> to vector<2x32xf32>
    %81 = vector.shape_cast %78 : vector<2x32xf32> to vector<1x2x32xf32>
    tpu.vector_store %arg13[%c1, %c0_27, %c0_28], %81 {strides = array<i32>} : memref<8x2x32xf32, #tpu.memory_space<vmem>>, vector<1x2x32xf32>,
    %82 = vector.extract_strided_slice %77 {offsets = [0, 32], sizes = [2, 32], strides = [1, 1]} : vector<2x64xf32> to vector<2x32xf32>
    %c6 = arith.constant 6 : index
    %c0_29 = arith.constant 0 : index
    %c0_30 = arith.constant 0 : index
    %83 = vector.load %arg14[%c6, %c0_29, %c0_30] : memref<8x2x32xf32, #tpu.memory_space<vmem>>, vector<1x2x32xf32>
    %84 = vector.shape_cast %83 : vector<1x2x32xf32> to vector<2x32xf32>
    %85 = vector.shape_cast %82 : vector<2x32xf32> to vector<1x2x32xf32>
    tpu.vector_store %arg14[%c6, %c0_29, %c0_30], %85 {strides = array<i32>} : memref<8x2x32xf32, #tpu.memory_space<vmem>>, vector<1x2x32xf32>,
    %86 = vector.extract_strided_slice %15 {offsets = [2, 0, 0], sizes = [1, 2, 256], strides = [1, 1, 1]} : vector<8x2x256xf32> to vector<1x2x256xf32>
    %87 = vector.shape_cast %86 : vector<1x2x256xf32> to vector<2x256xf32>
    %88 = vector.extract_strided_slice %16 {offsets = [5, 0, 0], sizes = [1, 2, 256], strides = [1, 1, 1]} : vector<8x2x256xf32> to vector<1x2x256xf32>
    %89 = vector.shape_cast %88 : vector<1x2x256xf32> to vector<2x256xf32>
    %90 = arith.addf %87, %89 : vector<2x256xf32>
    %cst_31 = arith.constant dense<0.000000e+00> : vector<2x256xf32>
    %91 = tpu.matmul %77, %17, %cst_31 {dimension_numbers = #tpu.dot_dimension_numbers<[1], [0], [0], [1], [0, 0, 1, 1], [], []>} : vector<2x64xf32>, vector<64x256xf32>, vector<2x256xf32> -> vector<2x256xf32>
    %92 = arith.addf %90, %91 : vector<2x256xf32>
    %cst_32 = arith.constant 5.000000e-01 : f32
    %93 = vector.broadcast %cst_32 : f32 to vector<2x256xf32>
    %94 = arith.mulf %93, %92 : vector<2x256xf32>
    %95 = arith.select %5, %92, %94 : vector<2x256xi1>, vector<2x256xf32>
    %96 = math.tanh %95 : vector<2x256xf32>
    %cst_33 = arith.constant 1.000000e+00 : f32
    %97 = vector.broadcast %cst_33 : f32 to vector<2x256xf32>
    %98 = arith.addf %96, %97 : vector<2x256xf32>
    %cst_34 = arith.constant 5.000000e-01 : f32
    %99 = vector.broadcast %cst_34 : f32 to vector<2x256xf32>
    %100 = arith.mulf %99, %98 : vector<2x256xf32>
    %101 = arith.select %5, %96, %100 : vector<2x256xi1>, vector<2x256xf32>
    %102 = vector.extract_strided_slice %101 {offsets = [0, 0], sizes = [2, 64], strides = [1, 1]} : vector<2x256xf32> to vector<2x64xf32>
    %103 = vector.extract_strided_slice %101 {offsets = [0, 64], sizes = [2, 64], strides = [1, 1]} : vector<2x256xf32> to vector<2x64xf32>
    %104 = vector.extract_strided_slice %101 {offsets = [0, 128], sizes = [2, 64], strides = [1, 1]} : vector<2x256xf32> to vector<2x64xf32>
    %105 = vector.extract_strided_slice %101 {offsets = [0, 192], sizes = [2, 64], strides = [1, 1]} : vector<2x256xf32> to vector<2x64xf32>
    %106 = arith.mulf %103, %75 : vector<2x64xf32>
    %107 = arith.mulf %102, %104 : vector<2x64xf32>
    %108 = arith.addf %106, %107 : vector<2x64xf32>
    %109 = math.tanh %108 : vector<2x64xf32>
    %110 = arith.mulf %105, %109 : vector<2x64xf32>
    %111 = vector.extract_strided_slice %110 {offsets = [0, 0], sizes = [2, 32], strides = [1, 1]} : vector<2x64xf32> to vector<2x32xf32>
    %c2 = arith.constant 2 : index
    %c0_35 = arith.constant 0 : index
    %c0_36 = arith.constant 0 : index
    %112 = vector.load %arg13[%c2, %c0_35, %c0_36] : memref<8x2x32xf32, #tpu.memory_space<vmem>>, vector<1x2x32xf32>
    %113 = vector.shape_cast %112 : vector<1x2x32xf32> to vector<2x32xf32>
    %114 = vector.shape_cast %111 : vector<2x32xf32> to vector<1x2x32xf32>
    tpu.vector_store %arg13[%c2, %c0_35, %c0_36], %114 {strides = array<i32>} : memref<8x2x32xf32, #tpu.memory_space<vmem>>, vector<1x2x32xf32>,
    %115 = vector.extract_strided_slice %110 {offsets = [0, 32], sizes = [2, 32], strides = [1, 1]} : vector<2x64xf32> to vector<2x32xf32>
    %c5 = arith.constant 5 : index
    %c0_37 = arith.constant 0 : index
    %c0_38 = arith.constant 0 : index
    %116 = vector.load %arg14[%c5, %c0_37, %c0_38] : memref<8x2x32xf32, #tpu.memory_space<vmem>>, vector<1x2x32xf32>
    %117 = vector.shape_cast %116 : vector<1x2x32xf32> to vector<2x32xf32>
    %118 = vector.shape_cast %115 : vector<2x32xf32> to vector<1x2x32xf32>
    tpu.vector_store %arg14[%c5, %c0_37, %c0_38], %118 {strides = array<i32>} : memref<8x2x32xf32, #tpu.memory_space<vmem>>, vector<1x2x32xf32>,
    %119 = vector.extract_strided_slice %15 {offsets = [3, 0, 0], sizes = [1, 2, 256], strides = [1, 1, 1]} : vector<8x2x256xf32> to vector<1x2x256xf32>
    %120 = vector.shape_cast %119 : vector<1x2x256xf32> to vector<2x256xf32>
    %121 = vector.extract_strided_slice %16 {offsets = [4, 0, 0], sizes = [1, 2, 256], strides = [1, 1, 1]} : vector<8x2x256xf32> to vector<1x2x256xf32>
    %122 = vector.shape_cast %121 : vector<1x2x256xf32> to vector<2x256xf32>
    %123 = arith.addf %120, %122 : vector<2x256xf32>
    %cst_39 = arith.constant dense<0.000000e+00> : vector<2x256xf32>
    %124 = tpu.matmul %110, %17, %cst_39 {dimension_numbers = #tpu.dot_dimension_numbers<[1], [0], [0], [1], [0, 0, 1, 1], [], []>} : vector<2x64xf32>, vector<64x256xf32>, vector<2x256xf32> -> vector<2x256xf32>
    %125 = arith.addf %123, %124 : vector<2x256xf32>
    %cst_40 = arith.constant 5.000000e-01 : f32
    %126 = vector.broadcast %cst_40 : f32 to vector<2x256xf32>
    %127 = arith.mulf %126, %125 : vector<2x256xf32>
    %128 = arith.select %5, %125, %127 : vector<2x256xi1>, vector<2x256xf32>
    %129 = math.tanh %128 : vector<2x256xf32>
    %cst_41 = arith.constant 1.000000e+00 : f32
    %130 = vector.broadcast %cst_41 : f32 to vector<2x256xf32>
    %131 = arith.addf %129, %130 : vector<2x256xf32>
    %cst_42 = arith.constant 5.000000e-01 : f32
    %132 = vector.broadcast %cst_42 : f32 to vector<2x256xf32>
    %133 = arith.mulf %132, %131 : vector<2x256xf32>
    %134 = arith.select %5, %129, %133 : vector<2x256xi1>, vector<2x256xf32>
    %135 = vector.extract_strided_slice %134 {offsets = [0, 0], sizes = [2, 64], strides = [1, 1]} : vector<2x256xf32> to vector<2x64xf32>
    %136 = vector.extract_strided_slice %134 {offsets = [0, 64], sizes = [2, 64], strides = [1, 1]} : vector<2x256xf32> to vector<2x64xf32>
    %137 = vector.extract_strided_slice %134 {offsets = [0, 128], sizes = [2, 64], strides = [1, 1]} : vector<2x256xf32> to vector<2x64xf32>
    %138 = vector.extract_strided_slice %134 {offsets = [0, 192], sizes = [2, 64], strides = [1, 1]} : vector<2x256xf32> to vector<2x64xf32>
    %139 = arith.mulf %136, %108 : vector<2x64xf32>
    %140 = arith.mulf %135, %137 : vector<2x64xf32>
    %141 = arith.addf %139, %140 : vector<2x64xf32>
    %142 = math.tanh %141 : vector<2x64xf32>
    %143 = arith.mulf %138, %142 : vector<2x64xf32>
    %144 = vector.extract_strided_slice %143 {offsets = [0, 0], sizes = [2, 32], strides = [1, 1]} : vector<2x64xf32> to vector<2x32xf32>
    %c3 = arith.constant 3 : index
    %c0_43 = arith.constant 0 : index
    %c0_44 = arith.constant 0 : index
    %145 = vector.load %arg13[%c3, %c0_43, %c0_44] : memref<8x2x32xf32, #tpu.memory_space<vmem>>, vector<1x2x32xf32>
    %146 = vector.shape_cast %145 : vector<1x2x32xf32> to vector<2x32xf32>
    %147 = vector.shape_cast %144 : vector<2x32xf32> to vector<1x2x32xf32>
    tpu.vector_store %arg13[%c3, %c0_43, %c0_44], %147 {strides = array<i32>} : memref<8x2x32xf32, #tpu.memory_space<vmem>>, vector<1x2x32xf32>,
    %148 = vector.extract_strided_slice %143 {offsets = [0, 32], sizes = [2, 32], strides = [1, 1]} : vector<2x64xf32> to vector<2x32xf32>
    %c4 = arith.constant 4 : index
    %c0_45 = arith.constant 0 : index
    %c0_46 = arith.constant 0 : index
    %149 = vector.load %arg14[%c4, %c0_45, %c0_46] : memref<8x2x32xf32, #tpu.memory_space<vmem>>, vector<1x2x32xf32>
    %150 = vector.shape_cast %149 : vector<1x2x32xf32> to vector<2x32xf32>
    %151 = vector.shape_cast %148 : vector<2x32xf32> to vector<1x2x32xf32>
    tpu.vector_store %arg14[%c4, %c0_45, %c0_46], %151 {strides = array<i32>} : memref<8x2x32xf32, #tpu.memory_space<vmem>>, vector<1x2x32xf32>,
    %152 = vector.extract_strided_slice %15 {offsets = [4, 0, 0], sizes = [1, 2, 256], strides = [1, 1, 1]} : vector<8x2x256xf32> to vector<1x2x256xf32>
    %153 = vector.shape_cast %152 : vector<1x2x256xf32> to vector<2x256xf32>
    %154 = vector.extract_strided_slice %16 {offsets = [3, 0, 0], sizes = [1, 2, 256], strides = [1, 1, 1]} : vector<8x2x256xf32> to vector<1x2x256xf32>
    %155 = vector.shape_cast %154 : vector<1x2x256xf32> to vector<2x256xf32>
    %156 = arith.addf %153, %155 : vector<2x256xf32>
    %cst_47 = arith.constant dense<0.000000e+00> : vector<2x256xf32>
    %157 = tpu.matmul %143, %17, %cst_47 {dimension_numbers = #tpu.dot_dimension_numbers<[1], [0], [0], [1], [0, 0, 1, 1], [], []>} : vector<2x64xf32>, vector<64x256xf32>, vector<2x256xf32> -> vector<2x256xf32>
    %158 = arith.addf %156, %157 : vector<2x256xf32>
    %cst_48 = arith.constant 5.000000e-01 : f32
    %159 = vector.broadcast %cst_48 : f32 to vector<2x256xf32>
    %160 = arith.mulf %159, %158 : vector<2x256xf32>
    %161 = arith.select %5, %158, %160 : vector<2x256xi1>, vector<2x256xf32>
    %162 = math.tanh %161 : vector<2x256xf32>
    %cst_49 = arith.constant 1.000000e+00 : f32
    %163 = vector.broadcast %cst_49 : f32 to vector<2x256xf32>
    %164 = arith.addf %162, %163 : vector<2x256xf32>
    %cst_50 = arith.constant 5.000000e-01 : f32
    %165 = vector.broadcast %cst_50 : f32 to vector<2x256xf32>
    %166 = arith.mulf %165, %164 : vector<2x256xf32>
    %167 = arith.select %5, %162, %166 : vector<2x256xi1>, vector<2x256xf32>
    %168 = vector.extract_strided_slice %167 {offsets = [0, 0], sizes = [2, 64], strides = [1, 1]} : vector<2x256xf32> to vector<2x64xf32>
    %169 = vector.extract_strided_slice %167 {offsets = [0, 64], sizes = [2, 64], strides = [1, 1]} : vector<2x256xf32> to vector<2x64xf32>
    %170 = vector.extract_strided_slice %167 {offsets = [0, 128], sizes = [2, 64], strides = [1, 1]} : vector<2x256xf32> to vector<2x64xf32>
    %171 = vector.extract_strided_slice %167 {offsets = [0, 192], sizes = [2, 64], strides = [1, 1]} : vector<2x256xf32> to vector<2x64xf32>
    %172 = arith.mulf %169, %141 : vector<2x64xf32>
    %173 = arith.mulf %168, %170 : vector<2x64xf32>
    %174 = arith.addf %172, %173 : vector<2x64xf32>
    %175 = math.tanh %174 : vector<2x64xf32>
    %176 = arith.mulf %171, %175 : vector<2x64xf32>
    %177 = vector.extract_strided_slice %176 {offsets = [0, 0], sizes = [2, 32], strides = [1, 1]} : vector<2x64xf32> to vector<2x32xf32>
    %c4_51 = arith.constant 4 : index
    %c0_52 = arith.constant 0 : index
    %c0_53 = arith.constant 0 : index
    %178 = vector.load %arg13[%c4_51, %c0_52, %c0_53] : memref<8x2x32xf32, #tpu.memory_space<vmem>>, vector<1x2x32xf32>
    %179 = vector.shape_cast %178 : vector<1x2x32xf32> to vector<2x32xf32>
    %180 = vector.shape_cast %177 : vector<2x32xf32> to vector<1x2x32xf32>
    tpu.vector_store %arg13[%c4_51, %c0_52, %c0_53], %180 {strides = array<i32>} : memref<8x2x32xf32, #tpu.memory_space<vmem>>, vector<1x2x32xf32>,
    %181 = vector.extract_strided_slice %176 {offsets = [0, 32], sizes = [2, 32], strides = [1, 1]} : vector<2x64xf32> to vector<2x32xf32>
    %c3_54 = arith.constant 3 : index
    %c0_55 = arith.constant 0 : index
    %c0_56 = arith.constant 0 : index
    %182 = vector.load %arg14[%c3_54, %c0_55, %c0_56] : memref<8x2x32xf32, #tpu.memory_space<vmem>>, vector<1x2x32xf32>
    %183 = vector.shape_cast %182 : vector<1x2x32xf32> to vector<2x32xf32>
    %184 = vector.shape_cast %181 : vector<2x32xf32> to vector<1x2x32xf32>
    tpu.vector_store %arg14[%c3_54, %c0_55, %c0_56], %184 {strides = array<i32>} : memref<8x2x32xf32, #tpu.memory_space<vmem>>, vector<1x2x32xf32>,
    %185 = vector.extract_strided_slice %15 {offsets = [5, 0, 0], sizes = [1, 2, 256], strides = [1, 1, 1]} : vector<8x2x256xf32> to vector<1x2x256xf32>
    %186 = vector.shape_cast %185 : vector<1x2x256xf32> to vector<2x256xf32>
    %187 = vector.extract_strided_slice %16 {offsets = [2, 0, 0], sizes = [1, 2, 256], strides = [1, 1, 1]} : vector<8x2x256xf32> to vector<1x2x256xf32>
    %188 = vector.shape_cast %187 : vector<1x2x256xf32> to vector<2x256xf32>
    %189 = arith.addf %186, %188 : vector<2x256xf32>
    %cst_57 = arith.constant dense<0.000000e+00> : vector<2x256xf32>
    %190 = tpu.matmul %176, %17, %cst_57 {dimension_numbers = #tpu.dot_dimension_numbers<[1], [0], [0], [1], [0, 0, 1, 1], [], []>} : vector<2x64xf32>, vector<64x256xf32>, vector<2x256xf32> -> vector<2x256xf32>
    %191 = arith.addf %189, %190 : vector<2x256xf32>
    %cst_58 = arith.constant 5.000000e-01 : f32
    %192 = vector.broadcast %cst_58 : f32 to vector<2x256xf32>
    %193 = arith.mulf %192, %191 : vector<2x256xf32>
    %194 = arith.select %5, %191, %193 : vector<2x256xi1>, vector<2x256xf32>
    %195 = math.tanh %194 : vector<2x256xf32>
    %cst_59 = arith.constant 1.000000e+00 : f32
    %196 = vector.broadcast %cst_59 : f32 to vector<2x256xf32>
    %197 = arith.addf %195, %196 : vector<2x256xf32>
    %cst_60 = arith.constant 5.000000e-01 : f32
    %198 = vector.broadcast %cst_60 : f32 to vector<2x256xf32>
    %199 = arith.mulf %198, %197 : vector<2x256xf32>
    %200 = arith.select %5, %195, %199 : vector<2x256xi1>, vector<2x256xf32>
    %201 = vector.extract_strided_slice %200 {offsets = [0, 0], sizes = [2, 64], strides = [1, 1]} : vector<2x256xf32> to vector<2x64xf32>
    %202 = vector.extract_strided_slice %200 {offsets = [0, 64], sizes = [2, 64], strides = [1, 1]} : vector<2x256xf32> to vector<2x64xf32>
    %203 = vector.extract_strided_slice %200 {offsets = [0, 128], sizes = [2, 64], strides = [1, 1]} : vector<2x256xf32> to vector<2x64xf32>
    %204 = vector.extract_strided_slice %200 {offsets = [0, 192], sizes = [2, 64], strides = [1, 1]} : vector<2x256xf32> to vector<2x64xf32>
    %205 = arith.mulf %202, %174 : vector<2x64xf32>
    %206 = arith.mulf %201, %203 : vector<2x64xf32>
    %207 = arith.addf %205, %206 : vector<2x64xf32>
    %208 = math.tanh %207 : vector<2x64xf32>
    %209 = arith.mulf %204, %208 : vector<2x64xf32>
    %210 = vector.extract_strided_slice %209 {offsets = [0, 0], sizes = [2, 32], strides = [1, 1]} : vector<2x64xf32> to vector<2x32xf32>
    %c5_61 = arith.constant 5 : index
    %c0_62 = arith.constant 0 : index
    %c0_63 = arith.constant 0 : index
    %211 = vector.load %arg13[%c5_61, %c0_62, %c0_63] : memref<8x2x32xf32, #tpu.memory_space<vmem>>, vector<1x2x32xf32>
    %212 = vector.shape_cast %211 : vector<1x2x32xf32> to vector<2x32xf32>
    %213 = vector.shape_cast %210 : vector<2x32xf32> to vector<1x2x32xf32>
    tpu.vector_store %arg13[%c5_61, %c0_62, %c0_63], %213 {strides = array<i32>} : memref<8x2x32xf32, #tpu.memory_space<vmem>>, vector<1x2x32xf32>,
    %214 = vector.extract_strided_slice %209 {offsets = [0, 32], sizes = [2, 32], strides = [1, 1]} : vector<2x64xf32> to vector<2x32xf32>
    %c2_64 = arith.constant 2 : index
    %c0_65 = arith.constant 0 : index
    %c0_66 = arith.constant 0 : index
    %215 = vector.load %arg14[%c2_64, %c0_65, %c0_66] : memref<8x2x32xf32, #tpu.memory_space<vmem>>, vector<1x2x32xf32>
    %216 = vector.shape_cast %215 : vector<1x2x32xf32> to vector<2x32xf32>
    %217 = vector.shape_cast %214 : vector<2x32xf32> to vector<1x2x32xf32>
    tpu.vector_store %arg14[%c2_64, %c0_65, %c0_66], %217 {strides = array<i32>} : memref<8x2x32xf32, #tpu.memory_space<vmem>>, vector<1x2x32xf32>,
    %218 = vector.extract_strided_slice %15 {offsets = [6, 0, 0], sizes = [1, 2, 256], strides = [1, 1, 1]} : vector<8x2x256xf32> to vector<1x2x256xf32>
    %219 = vector.shape_cast %218 : vector<1x2x256xf32> to vector<2x256xf32>
    %220 = vector.extract_strided_slice %16 {offsets = [1, 0, 0], sizes = [1, 2, 256], strides = [1, 1, 1]} : vector<8x2x256xf32> to vector<1x2x256xf32>
    %221 = vector.shape_cast %220 : vector<1x2x256xf32> to vector<2x256xf32>
    %222 = arith.addf %219, %221 : vector<2x256xf32>
    %cst_67 = arith.constant dense<0.000000e+00> : vector<2x256xf32>
    %223 = tpu.matmul %209, %17, %cst_67 {dimension_numbers = #tpu.dot_dimension_numbers<[1], [0], [0], [1], [0, 0, 1, 1], [], []>} : vector<2x64xf32>, vector<64x256xf32>, vector<2x256xf32> -> vector<2x256xf32>
    %224 = arith.addf %222, %223 : vector<2x256xf32>
    %cst_68 = arith.constant 5.000000e-01 : f32
    %225 = vector.broadcast %cst_68 : f32 to vector<2x256xf32>
    %226 = arith.mulf %225, %224 : vector<2x256xf32>
    %227 = arith.select %5, %224, %226 : vector<2x256xi1>, vector<2x256xf32>
    %228 = math.tanh %227 : vector<2x256xf32>
    %cst_69 = arith.constant 1.000000e+00 : f32
    %229 = vector.broadcast %cst_69 : f32 to vector<2x256xf32>
    %230 = arith.addf %228, %229 : vector<2x256xf32>
    %cst_70 = arith.constant 5.000000e-01 : f32
    %231 = vector.broadcast %cst_70 : f32 to vector<2x256xf32>
    %232 = arith.mulf %231, %230 : vector<2x256xf32>
    %233 = arith.select %5, %228, %232 : vector<2x256xi1>, vector<2x256xf32>
    %234 = vector.extract_strided_slice %233 {offsets = [0, 0], sizes = [2, 64], strides = [1, 1]} : vector<2x256xf32> to vector<2x64xf32>
    %235 = vector.extract_strided_slice %233 {offsets = [0, 64], sizes = [2, 64], strides = [1, 1]} : vector<2x256xf32> to vector<2x64xf32>
    %236 = vector.extract_strided_slice %233 {offsets = [0, 128], sizes = [2, 64], strides = [1, 1]} : vector<2x256xf32> to vector<2x64xf32>
    %237 = vector.extract_strided_slice %233 {offsets = [0, 192], sizes = [2, 64], strides = [1, 1]} : vector<2x256xf32> to vector<2x64xf32>
    %238 = arith.mulf %235, %207 : vector<2x64xf32>
    %239 = arith.mulf %234, %236 : vector<2x64xf32>
    %240 = arith.addf %238, %239 : vector<2x64xf32>
    %241 = math.tanh %240 : vector<2x64xf32>
    %242 = arith.mulf %237, %241 : vector<2x64xf32>
    %243 = vector.extract_strided_slice %242 {offsets = [0, 0], sizes = [2, 32], strides = [1, 1]} : vector<2x64xf32> to vector<2x32xf32>
    %c6_71 = arith.constant 6 : index
    %c0_72 = arith.constant 0 : index
    %c0_73 = arith.constant 0 : index
    %244 = vector.load %arg13[%c6_71, %c0_72, %c0_73] : memref<8x2x32xf32, #tpu.memory_space<vmem>>, vector<1x2x32xf32>
    %245 = vector.shape_cast %244 : vector<1x2x32xf32> to vector<2x32xf32>
    %246 = vector.shape_cast %243 : vector<2x32xf32> to vector<1x2x32xf32>
    tpu.vector_store %arg13[%c6_71, %c0_72, %c0_73], %246 {strides = array<i32>} : memref<8x2x32xf32, #tpu.memory_space<vmem>>, vector<1x2x32xf32>,
    %247 = vector.extract_strided_slice %242 {offsets = [0, 32], sizes = [2, 32], strides = [1, 1]} : vector<2x64xf32> to vector<2x32xf32>
    %c1_74 = arith.constant 1 : index
    %c0_75 = arith.constant 0 : index
    %c0_76 = arith.constant 0 : index
    %248 = vector.load %arg14[%c1_74, %c0_75, %c0_76] : memref<8x2x32xf32, #tpu.memory_space<vmem>>, vector<1x2x32xf32>
    %249 = vector.shape_cast %248 : vector<1x2x32xf32> to vector<2x32xf32>
    %250 = vector.shape_cast %247 : vector<2x32xf32> to vector<1x2x32xf32>
    tpu.vector_store %arg14[%c1_74, %c0_75, %c0_76], %250 {strides = array<i32>} : memref<8x2x32xf32, #tpu.memory_space<vmem>>, vector<1x2x32xf32>,
    %251 = vector.extract_strided_slice %15 {offsets = [7, 0, 0], sizes = [1, 2, 256], strides = [1, 1, 1]} : vector<8x2x256xf32> to vector<1x2x256xf32>
    %252 = vector.shape_cast %251 : vector<1x2x256xf32> to vector<2x256xf32>
    %253 = vector.extract_strided_slice %16 {offsets = [0, 0, 0], sizes = [1, 2, 256], strides = [1, 1, 1]} : vector<8x2x256xf32> to vector<1x2x256xf32>
    %254 = vector.shape_cast %253 : vector<1x2x256xf32> to vector<2x256xf32>
    %255 = arith.addf %252, %254 : vector<2x256xf32>
    %cst_77 = arith.constant dense<0.000000e+00> : vector<2x256xf32>
    %256 = tpu.matmul %242, %17, %cst_77 {dimension_numbers = #tpu.dot_dimension_numbers<[1], [0], [0], [1], [0, 0, 1, 1], [], []>} : vector<2x64xf32>, vector<64x256xf32>, vector<2x256xf32> -> vector<2x256xf32>
    %257 = arith.addf %255, %256 : vector<2x256xf32>
    %cst_78 = arith.constant 5.000000e-01 : f32
    %258 = vector.broadcast %cst_78 : f32 to vector<2x256xf32>
    %259 = arith.mulf %258, %257 : vector<2x256xf32>
    %260 = arith.select %5, %257, %259 : vector<2x256xi1>, vector<2x256xf32>
    %261 = math.tanh %260 : vector<2x256xf32>
    %cst_79 = arith.constant 1.000000e+00 : f32
    %262 = vector.broadcast %cst_79 : f32 to vector<2x256xf32>
    %263 = arith.addf %261, %262 : vector<2x256xf32>
    %cst_80 = arith.constant 5.000000e-01 : f32
    %264 = vector.broadcast %cst_80 : f32 to vector<2x256xf32>
    %265 = arith.mulf %264, %263 : vector<2x256xf32>
    %266 = arith.select %5, %261, %265 : vector<2x256xi1>, vector<2x256xf32>
    %267 = vector.extract_strided_slice %266 {offsets = [0, 0], sizes = [2, 64], strides = [1, 1]} : vector<2x256xf32> to vector<2x64xf32>
    %268 = vector.extract_strided_slice %266 {offsets = [0, 64], sizes = [2, 64], strides = [1, 1]} : vector<2x256xf32> to vector<2x64xf32>
    %269 = vector.extract_strided_slice %266 {offsets = [0, 128], sizes = [2, 64], strides = [1, 1]} : vector<2x256xf32> to vector<2x64xf32>
    %270 = vector.extract_strided_slice %266 {offsets = [0, 192], sizes = [2, 64], strides = [1, 1]} : vector<2x256xf32> to vector<2x64xf32>
    %271 = arith.mulf %268, %240 : vector<2x64xf32>
    %272 = arith.mulf %267, %269 : vector<2x64xf32>
    %273 = arith.addf %271, %272 : vector<2x64xf32>
    %274 = math.tanh %273 : vector<2x64xf32>
    %275 = arith.mulf %270, %274 : vector<2x64xf32>
    %276 = vector.extract_strided_slice %275 {offsets = [0, 0], sizes = [2, 32], strides = [1, 1]} : vector<2x64xf32> to vector<2x32xf32>
    %c7_81 = arith.constant 7 : index
    %c0_82 = arith.constant 0 : index
    %c0_83 = arith.constant 0 : index
    %277 = vector.load %arg13[%c7_81, %c0_82, %c0_83] : memref<8x2x32xf32, #tpu.memory_space<vmem>>, vector<1x2x32xf32>
    %278 = vector.shape_cast %277 : vector<1x2x32xf32> to vector<2x32xf32>
    %279 = vector.shape_cast %276 : vector<2x32xf32> to vector<1x2x32xf32>
    tpu.vector_store %arg13[%c7_81, %c0_82, %c0_83], %279 {strides = array<i32>} : memref<8x2x32xf32, #tpu.memory_space<vmem>>, vector<1x2x32xf32>,
    %280 = vector.extract_strided_slice %275 {offsets = [0, 32], sizes = [2, 32], strides = [1, 1]} : vector<2x64xf32> to vector<2x32xf32>
    %c0_84 = arith.constant 0 : index
    %c0_85 = arith.constant 0 : index
    %c0_86 = arith.constant 0 : index
    %281 = vector.load %arg14[%c0_84, %c0_85, %c0_86] : memref<8x2x32xf32, #tpu.memory_space<vmem>>, vector<1x2x32xf32>
    %282 = vector.shape_cast %281 : vector<1x2x32xf32> to vector<2x32xf32>
    %283 = vector.shape_cast %280 : vector<2x32xf32> to vector<1x2x32xf32>
    tpu.vector_store %arg14[%c0_84, %c0_85, %c0_86], %283 {strides = array<i32>} : memref<8x2x32xf32, #tpu.memory_space<vmem>>, vector<1x2x32xf32>,
    %c0_87 = arith.constant 0 : index
    %c0_88 = arith.constant 0 : index
    %284 = vector.load %arg6[%c0_87, %c0_88] : memref<64x256xf32, #tpu.memory_space<vmem>>, vector<64x256xf32>
    %c0_89 = arith.constant 0 : index
    %c0_90 = arith.constant 0 : index
    %285 = vector.load %arg7[%c0_89, %c0_90] : memref<64x256xf32, #tpu.memory_space<vmem>>, vector<64x256xf32>
    %c0_91 = arith.constant 0 : index
    %c0_92 = arith.constant 0 : index
    %286 = vector.load %arg8[%c0_91, %c0_92] : memref<1x256xf32, #tpu.memory_space<vmem>>, vector<1x256xf32>
    %c0_93 = arith.constant 0 : index
    %c0_94 = arith.constant 0 : index
    %c0_95 = arith.constant 0 : index
    %287 = vector.load %arg13[%c0_93, %c0_94, %c0_95] : memref<8x2x32xf32, #tpu.memory_space<vmem>>, vector<8x2x32xf32>
    %288 = vector.shape_cast %287 : vector<8x2x32xf32> to vector<16x32xf32>
    %c0_96 = arith.constant 0 : index
    %c0_97 = arith.constant 0 : index
    %c0_98 = arith.constant 0 : index
    %289 = vector.load %arg14[%c0_96, %c0_97, %c0_98] : memref<8x2x32xf32, #tpu.memory_space<vmem>>, vector<8x2x32xf32>
    %290 = vector.shape_cast %289 : vector<8x2x32xf32> to vector<16x32xf32>
    %291 = vector.extract_strided_slice %284 {offsets = [0, 0], sizes = [32, 256], strides = [1, 1]} : vector<64x256xf32> to vector<32x256xf32>
    %cst_99 = arith.constant dense<0.000000e+00> : vector<16x256xf32>
    %292 = tpu.matmul %288, %291, %cst_99 {dimension_numbers = #tpu.dot_dimension_numbers<[1], [0], [0], [1], [0, 0, 1, 1], [], []>} : vector<16x32xf32>, vector<32x256xf32>, vector<16x256xf32> -> vector<16x256xf32>
    %293 = vector.extract_strided_slice %284 {offsets = [32, 0], sizes = [32, 256], strides = [1, 1]} : vector<64x256xf32> to vector<32x256xf32>
    %cst_100 = arith.constant dense<0.000000e+00> : vector<16x256xf32>
    %294 = tpu.matmul %290, %293, %cst_100 {dimension_numbers = #tpu.dot_dimension_numbers<[1], [0], [0], [1], [0, 0, 1, 1], [], []>} : vector<16x32xf32>, vector<32x256xf32>, vector<16x256xf32> -> vector<16x256xf32>
    %295 = arith.addf %292, %294 : vector<16x256xf32>
    %296 = vector.broadcast %286 : vector<1x256xf32> to vector<16x256xf32>
    %297 = arith.addf %295, %296 : vector<16x256xf32>
    %298 = vector.extract_strided_slice %285 {offsets = [0, 0], sizes = [32, 256], strides = [1, 1]} : vector<64x256xf32> to vector<32x256xf32>
    %cst_101 = arith.constant dense<0.000000e+00> : vector<16x256xf32>
    %299 = tpu.matmul %288, %298, %cst_101 {dimension_numbers = #tpu.dot_dimension_numbers<[1], [0], [0], [1], [0, 0, 1, 1], [], []>} : vector<16x32xf32>, vector<32x256xf32>, vector<16x256xf32> -> vector<16x256xf32>
    %300 = vector.extract_strided_slice %285 {offsets = [32, 0], sizes = [32, 256], strides = [1, 1]} : vector<64x256xf32> to vector<32x256xf32>
    %cst_102 = arith.constant dense<0.000000e+00> : vector<16x256xf32>
    %301 = tpu.matmul %290, %300, %cst_102 {dimension_numbers = #tpu.dot_dimension_numbers<[1], [0], [0], [1], [0, 0, 1, 1], [], []>} : vector<16x32xf32>, vector<32x256xf32>, vector<16x256xf32> -> vector<16x256xf32>
    %302 = arith.addf %299, %301 : vector<16x256xf32>
    %303 = vector.shape_cast %297 : vector<16x256xf32> to vector<8x2x256xf32>
    %304 = vector.shape_cast %302 : vector<16x256xf32> to vector<8x2x256xf32>
    %c0_103 = arith.constant 0 : index
    %c0_104 = arith.constant 0 : index
    %305 = vector.load %arg9[%c0_103, %c0_104] : memref<64x256xf32, #tpu.memory_space<vmem>>, vector<64x256xf32>
    %c1_105 = arith.constant 1 : index
    %c0_106 = arith.constant 0 : index
    %c0_107 = arith.constant 0 : index
    %306 = vector.load %arg1[%c1_105, %c0_106, %c0_107] : memref<2x2x64xf32, #tpu.memory_space<vmem>>, vector<1x2x64xf32>
    %307 = vector.shape_cast %306 : vector<1x2x64xf32> to vector<2x64xf32>
    %cst_108 = arith.constant 0.000000e+00 : f32
    %308 = vector.broadcast %cst_108 : f32 to vector<2x64xf32>
    %309 = vector.extract_strided_slice %303 {offsets = [0, 0, 0], sizes = [1, 2, 256], strides = [1, 1, 1]} : vector<8x2x256xf32> to vector<1x2x256xf32>
    %310 = vector.shape_cast %309 : vector<1x2x256xf32> to vector<2x256xf32>
    %311 = vector.extract_strided_slice %304 {offsets = [7, 0, 0], sizes = [1, 2, 256], strides = [1, 1, 1]} : vector<8x2x256xf32> to vector<1x2x256xf32>
    %312 = vector.shape_cast %311 : vector<1x2x256xf32> to vector<2x256xf32>
    %313 = arith.addf %310, %312 : vector<2x256xf32>
    %cst_109 = arith.constant dense<0.000000e+00> : vector<2x256xf32>
    %314 = tpu.matmul %307, %305, %cst_109 {dimension_numbers = #tpu.dot_dimension_numbers<[1], [0], [0], [1], [0, 0, 1, 1], [], []>} : vector<2x64xf32>, vector<64x256xf32>, vector<2x256xf32> -> vector<2x256xf32>
    %315 = arith.addf %313, %314 : vector<2x256xf32>
    %cst_110 = arith.constant 5.000000e-01 : f32
    %316 = vector.broadcast %cst_110 : f32 to vector<2x256xf32>
    %317 = arith.mulf %316, %315 : vector<2x256xf32>
    %318 = arith.select %5, %315, %317 : vector<2x256xi1>, vector<2x256xf32>
    %319 = math.tanh %318 : vector<2x256xf32>
    %cst_111 = arith.constant 1.000000e+00 : f32
    %320 = vector.broadcast %cst_111 : f32 to vector<2x256xf32>
    %321 = arith.addf %319, %320 : vector<2x256xf32>
    %cst_112 = arith.constant 5.000000e-01 : f32
    %322 = vector.broadcast %cst_112 : f32 to vector<2x256xf32>
    %323 = arith.mulf %322, %321 : vector<2x256xf32>
    %324 = arith.select %5, %319, %323 : vector<2x256xi1>, vector<2x256xf32>
    %325 = vector.extract_strided_slice %324 {offsets = [0, 0], sizes = [2, 64], strides = [1, 1]} : vector<2x256xf32> to vector<2x64xf32>
    %326 = vector.extract_strided_slice %324 {offsets = [0, 64], sizes = [2, 64], strides = [1, 1]} : vector<2x256xf32> to vector<2x64xf32>
    %327 = vector.extract_strided_slice %324 {offsets = [0, 128], sizes = [2, 64], strides = [1, 1]} : vector<2x256xf32> to vector<2x64xf32>
    %328 = vector.extract_strided_slice %324 {offsets = [0, 192], sizes = [2, 64], strides = [1, 1]} : vector<2x256xf32> to vector<2x64xf32>
    %329 = arith.mulf %326, %307 : vector<2x64xf32>
    %330 = arith.mulf %325, %327 : vector<2x64xf32>
    %331 = arith.addf %329, %330 : vector<2x64xf32>
    %332 = math.tanh %331 : vector<2x64xf32>
    %333 = arith.mulf %328, %332 : vector<2x64xf32>
    %cst_113 = arith.constant 0.000000e+00 : f32
    %334 = vector.broadcast %cst_113 : f32 to vector<2x64xf32>
    %335 = arith.maximumf %333, %334 : vector<2x64xf32>
    %336 = arith.maximumf %308, %335 : vector<2x64xf32>
    %337 = vector.extract_strided_slice %303 {offsets = [1, 0, 0], sizes = [1, 2, 256], strides = [1, 1, 1]} : vector<8x2x256xf32> to vector<1x2x256xf32>
    %338 = vector.shape_cast %337 : vector<1x2x256xf32> to vector<2x256xf32>
    %339 = vector.extract_strided_slice %304 {offsets = [6, 0, 0], sizes = [1, 2, 256], strides = [1, 1, 1]} : vector<8x2x256xf32> to vector<1x2x256xf32>
    %340 = vector.shape_cast %339 : vector<1x2x256xf32> to vector<2x256xf32>
    %341 = arith.addf %338, %340 : vector<2x256xf32>
    %cst_114 = arith.constant dense<0.000000e+00> : vector<2x256xf32>
    %342 = tpu.matmul %333, %305, %cst_114 {dimension_numbers = #tpu.dot_dimension_numbers<[1], [0], [0], [1], [0, 0, 1, 1], [], []>} : vector<2x64xf32>, vector<64x256xf32>, vector<2x256xf32> -> vector<2x256xf32>
    %343 = arith.addf %341, %342 : vector<2x256xf32>
    %cst_115 = arith.constant 5.000000e-01 : f32
    %344 = vector.broadcast %cst_115 : f32 to vector<2x256xf32>
    %345 = arith.mulf %344, %343 : vector<2x256xf32>
    %346 = arith.select %5, %343, %345 : vector<2x256xi1>, vector<2x256xf32>
    %347 = math.tanh %346 : vector<2x256xf32>
    %cst_116 = arith.constant 1.000000e+00 : f32
    %348 = vector.broadcast %cst_116 : f32 to vector<2x256xf32>
    %349 = arith.addf %347, %348 : vector<2x256xf32>
    %cst_117 = arith.constant 5.000000e-01 : f32
    %350 = vector.broadcast %cst_117 : f32 to vector<2x256xf32>
    %351 = arith.mulf %350, %349 : vector<2x256xf32>
    %352 = arith.select %5, %347, %351 : vector<2x256xi1>, vector<2x256xf32>
    %353 = vector.extract_strided_slice %352 {offsets = [0, 0], sizes = [2, 64], strides = [1, 1]} : vector<2x256xf32> to vector<2x64xf32>
    %354 = vector.extract_strided_slice %352 {offsets = [0, 64], sizes = [2, 64], strides = [1, 1]} : vector<2x256xf32> to vector<2x64xf32>
    %355 = vector.extract_strided_slice %352 {offsets = [0, 128], sizes = [2, 64], strides = [1, 1]} : vector<2x256xf32> to vector<2x64xf32>
    %356 = vector.extract_strided_slice %352 {offsets = [0, 192], sizes = [2, 64], strides = [1, 1]} : vector<2x256xf32> to vector<2x64xf32>
    %357 = arith.mulf %354, %331 : vector<2x64xf32>
    %358 = arith.mulf %353, %355 : vector<2x64xf32>
    %359 = arith.addf %357, %358 : vector<2x64xf32>
    %360 = math.tanh %359 : vector<2x64xf32>
    %361 = arith.mulf %356, %360 : vector<2x64xf32>
    %cst_118 = arith.constant 0.000000e+00 : f32
    %362 = vector.broadcast %cst_118 : f32 to vector<2x64xf32>
    %363 = arith.maximumf %361, %362 : vector<2x64xf32>
    %364 = arith.maximumf %336, %363 : vector<2x64xf32>
    %365 = vector.extract_strided_slice %303 {offsets = [2, 0, 0], sizes = [1, 2, 256], strides = [1, 1, 1]} : vector<8x2x256xf32> to vector<1x2x256xf32>
    %366 = vector.shape_cast %365 : vector<1x2x256xf32> to vector<2x256xf32>
    %367 = vector.extract_strided_slice %304 {offsets = [5, 0, 0], sizes = [1, 2, 256], strides = [1, 1, 1]} : vector<8x2x256xf32> to vector<1x2x256xf32>
    %368 = vector.shape_cast %367 : vector<1x2x256xf32> to vector<2x256xf32>
    %369 = arith.addf %366, %368 : vector<2x256xf32>
    %cst_119 = arith.constant dense<0.000000e+00> : vector<2x256xf32>
    %370 = tpu.matmul %361, %305, %cst_119 {dimension_numbers = #tpu.dot_dimension_numbers<[1], [0], [0], [1], [0, 0, 1, 1], [], []>} : vector<2x64xf32>, vector<64x256xf32>, vector<2x256xf32> -> vector<2x256xf32>
    %371 = arith.addf %369, %370 : vector<2x256xf32>
    %cst_120 = arith.constant 5.000000e-01 : f32
    %372 = vector.broadcast %cst_120 : f32 to vector<2x256xf32>
    %373 = arith.mulf %372, %371 : vector<2x256xf32>
    %374 = arith.select %5, %371, %373 : vector<2x256xi1>, vector<2x256xf32>
    %375 = math.tanh %374 : vector<2x256xf32>
    %cst_121 = arith.constant 1.000000e+00 : f32
    %376 = vector.broadcast %cst_121 : f32 to vector<2x256xf32>
    %377 = arith.addf %375, %376 : vector<2x256xf32>
    %cst_122 = arith.constant 5.000000e-01 : f32
    %378 = vector.broadcast %cst_122 : f32 to vector<2x256xf32>
    %379 = arith.mulf %378, %377 : vector<2x256xf32>
    %380 = arith.select %5, %375, %379 : vector<2x256xi1>, vector<2x256xf32>
    %381 = vector.extract_strided_slice %380 {offsets = [0, 0], sizes = [2, 64], strides = [1, 1]} : vector<2x256xf32> to vector<2x64xf32>
    %382 = vector.extract_strided_slice %380 {offsets = [0, 64], sizes = [2, 64], strides = [1, 1]} : vector<2x256xf32> to vector<2x64xf32>
    %383 = vector.extract_strided_slice %380 {offsets = [0, 128], sizes = [2, 64], strides = [1, 1]} : vector<2x256xf32> to vector<2x64xf32>
    %384 = vector.extract_strided_slice %380 {offsets = [0, 192], sizes = [2, 64], strides = [1, 1]} : vector<2x256xf32> to vector<2x64xf32>
    %385 = arith.mulf %382, %359 : vector<2x64xf32>
    %386 = arith.mulf %381, %383 : vector<2x64xf32>
    %387 = arith.addf %385, %386 : vector<2x64xf32>
    %388 = math.tanh %387 : vector<2x64xf32>
    %389 = arith.mulf %384, %388 : vector<2x64xf32>
    %cst_123 = arith.constant 0.000000e+00 : f32
    %390 = vector.broadcast %cst_123 : f32 to vector<2x64xf32>
    %391 = arith.maximumf %389, %390 : vector<2x64xf32>
    %392 = arith.maximumf %364, %391 : vector<2x64xf32>
    %393 = vector.extract_strided_slice %303 {offsets = [3, 0, 0], sizes = [1, 2, 256], strides = [1, 1, 1]} : vector<8x2x256xf32> to vector<1x2x256xf32>
    %394 = vector.shape_cast %393 : vector<1x2x256xf32> to vector<2x256xf32>
    %395 = vector.extract_strided_slice %304 {offsets = [4, 0, 0], sizes = [1, 2, 256], strides = [1, 1, 1]} : vector<8x2x256xf32> to vector<1x2x256xf32>
    %396 = vector.shape_cast %395 : vector<1x2x256xf32> to vector<2x256xf32>
    %397 = arith.addf %394, %396 : vector<2x256xf32>
    %cst_124 = arith.constant dense<0.000000e+00> : vector<2x256xf32>
    %398 = tpu.matmul %389, %305, %cst_124 {dimension_numbers = #tpu.dot_dimension_numbers<[1], [0], [0], [1], [0, 0, 1, 1], [], []>} : vector<2x64xf32>, vector<64x256xf32>, vector<2x256xf32> -> vector<2x256xf32>
    %399 = arith.addf %397, %398 : vector<2x256xf32>
    %cst_125 = arith.constant 5.000000e-01 : f32
    %400 = vector.broadcast %cst_125 : f32 to vector<2x256xf32>
    %401 = arith.mulf %400, %399 : vector<2x256xf32>
    %402 = arith.select %5, %399, %401 : vector<2x256xi1>, vector<2x256xf32>
    %403 = math.tanh %402 : vector<2x256xf32>
    %cst_126 = arith.constant 1.000000e+00 : f32
    %404 = vector.broadcast %cst_126 : f32 to vector<2x256xf32>
    %405 = arith.addf %403, %404 : vector<2x256xf32>
    %cst_127 = arith.constant 5.000000e-01 : f32
    %406 = vector.broadcast %cst_127 : f32 to vector<2x256xf32>
    %407 = arith.mulf %406, %405 : vector<2x256xf32>
    %408 = arith.select %5, %403, %407 : vector<2x256xi1>, vector<2x256xf32>
    %409 = vector.extract_strided_slice %408 {offsets = [0, 0], sizes = [2, 64], strides = [1, 1]} : vector<2x256xf32> to vector<2x64xf32>
    %410 = vector.extract_strided_slice %408 {offsets = [0, 64], sizes = [2, 64], strides = [1, 1]} : vector<2x256xf32> to vector<2x64xf32>
    %411 = vector.extract_strided_slice %408 {offsets = [0, 128], sizes = [2, 64], strides = [1, 1]} : vector<2x256xf32> to vector<2x64xf32>
    %412 = vector.extract_strided_slice %408 {offsets = [0, 192], sizes = [2, 64], strides = [1, 1]} : vector<2x256xf32> to vector<2x64xf32>
    %413 = arith.mulf %410, %387 : vector<2x64xf32>
    %414 = arith.mulf %409, %411 : vector<2x64xf32>
    %415 = arith.addf %413, %414 : vector<2x64xf32>
    %416 = math.tanh %415 : vector<2x64xf32>
    %417 = arith.mulf %412, %416 : vector<2x64xf32>
    %cst_128 = arith.constant 0.000000e+00 : f32
    %418 = vector.broadcast %cst_128 : f32 to vector<2x64xf32>
    %419 = arith.maximumf %417, %418 : vector<2x64xf32>
    %420 = arith.maximumf %392, %419 : vector<2x64xf32>
    %421 = vector.extract_strided_slice %303 {offsets = [4, 0, 0], sizes = [1, 2, 256], strides = [1, 1, 1]} : vector<8x2x256xf32> to vector<1x2x256xf32>
    %422 = vector.shape_cast %421 : vector<1x2x256xf32> to vector<2x256xf32>
    %423 = vector.extract_strided_slice %304 {offsets = [3, 0, 0], sizes = [1, 2, 256], strides = [1, 1, 1]} : vector<8x2x256xf32> to vector<1x2x256xf32>
    %424 = vector.shape_cast %423 : vector<1x2x256xf32> to vector<2x256xf32>
    %425 = arith.addf %422, %424 : vector<2x256xf32>
    %cst_129 = arith.constant dense<0.000000e+00> : vector<2x256xf32>
    %426 = tpu.matmul %417, %305, %cst_129 {dimension_numbers = #tpu.dot_dimension_numbers<[1], [0], [0], [1], [0, 0, 1, 1], [], []>} : vector<2x64xf32>, vector<64x256xf32>, vector<2x256xf32> -> vector<2x256xf32>
    %427 = arith.addf %425, %426 : vector<2x256xf32>
    %cst_130 = arith.constant 5.000000e-01 : f32
    %428 = vector.broadcast %cst_130 : f32 to vector<2x256xf32>
    %429 = arith.mulf %428, %427 : vector<2x256xf32>
    %430 = arith.select %5, %427, %429 : vector<2x256xi1>, vector<2x256xf32>
    %431 = math.tanh %430 : vector<2x256xf32>
    %cst_131 = arith.constant 1.000000e+00 : f32
    %432 = vector.broadcast %cst_131 : f32 to vector<2x256xf32>
    %433 = arith.addf %431, %432 : vector<2x256xf32>
    %cst_132 = arith.constant 5.000000e-01 : f32
    %434 = vector.broadcast %cst_132 : f32 to vector<2x256xf32>
    %435 = arith.mulf %434, %433 : vector<2x256xf32>
    %436 = arith.select %5, %431, %435 : vector<2x256xi1>, vector<2x256xf32>
    %437 = vector.extract_strided_slice %436 {offsets = [0, 0], sizes = [2, 64], strides = [1, 1]} : vector<2x256xf32> to vector<2x64xf32>
    %438 = vector.extract_strided_slice %436 {offsets = [0, 64], sizes = [2, 64], strides = [1, 1]} : vector<2x256xf32> to vector<2x64xf32>
    %439 = vector.extract_strided_slice %436 {offsets = [0, 128], sizes = [2, 64], strides = [1, 1]} : vector<2x256xf32> to vector<2x64xf32>
    %440 = vector.extract_strided_slice %436 {offsets = [0, 192], sizes = [2, 64], strides = [1, 1]} : vector<2x256xf32> to vector<2x64xf32>
    %441 = arith.mulf %438, %415 : vector<2x64xf32>
    %442 = arith.mulf %437, %439 : vector<2x64xf32>
    %443 = arith.addf %441, %442 : vector<2x64xf32>
    %444 = math.tanh %443 : vector<2x64xf32>
    %445 = arith.mulf %440, %444 : vector<2x64xf32>
    %cst_133 = arith.constant 0.000000e+00 : f32
    %446 = vector.broadcast %cst_133 : f32 to vector<2x64xf32>
    %447 = arith.maximumf %445, %446 : vector<2x64xf32>
    %448 = arith.maximumf %420, %447 : vector<2x64xf32>
    %449 = vector.extract_strided_slice %303 {offsets = [5, 0, 0], sizes = [1, 2, 256], strides = [1, 1, 1]} : vector<8x2x256xf32> to vector<1x2x256xf32>
    %450 = vector.shape_cast %449 : vector<1x2x256xf32> to vector<2x256xf32>
    %451 = vector.extract_strided_slice %304 {offsets = [2, 0, 0], sizes = [1, 2, 256], strides = [1, 1, 1]} : vector<8x2x256xf32> to vector<1x2x256xf32>
    %452 = vector.shape_cast %451 : vector<1x2x256xf32> to vector<2x256xf32>
    %453 = arith.addf %450, %452 : vector<2x256xf32>
    %cst_134 = arith.constant dense<0.000000e+00> : vector<2x256xf32>
    %454 = tpu.matmul %445, %305, %cst_134 {dimension_numbers = #tpu.dot_dimension_numbers<[1], [0], [0], [1], [0, 0, 1, 1], [], []>} : vector<2x64xf32>, vector<64x256xf32>, vector<2x256xf32> -> vector<2x256xf32>
    %455 = arith.addf %453, %454 : vector<2x256xf32>
    %cst_135 = arith.constant 5.000000e-01 : f32
    %456 = vector.broadcast %cst_135 : f32 to vector<2x256xf32>
    %457 = arith.mulf %456, %455 : vector<2x256xf32>
    %458 = arith.select %5, %455, %457 : vector<2x256xi1>, vector<2x256xf32>
    %459 = math.tanh %458 : vector<2x256xf32>
    %cst_136 = arith.constant 1.000000e+00 : f32
    %460 = vector.broadcast %cst_136 : f32 to vector<2x256xf32>
    %461 = arith.addf %459, %460 : vector<2x256xf32>
    %cst_137 = arith.constant 5.000000e-01 : f32
    %462 = vector.broadcast %cst_137 : f32 to vector<2x256xf32>
    %463 = arith.mulf %462, %461 : vector<2x256xf32>
    %464 = arith.select %5, %459, %463 : vector<2x256xi1>, vector<2x256xf32>
    %465 = vector.extract_strided_slice %464 {offsets = [0, 0], sizes = [2, 64], strides = [1, 1]} : vector<2x256xf32> to vector<2x64xf32>
    %466 = vector.extract_strided_slice %464 {offsets = [0, 64], sizes = [2, 64], strides = [1, 1]} : vector<2x256xf32> to vector<2x64xf32>
    %467 = vector.extract_strided_slice %464 {offsets = [0, 128], sizes = [2, 64], strides = [1, 1]} : vector<2x256xf32> to vector<2x64xf32>
    %468 = vector.extract_strided_slice %464 {offsets = [0, 192], sizes = [2, 64], strides = [1, 1]} : vector<2x256xf32> to vector<2x64xf32>
    %469 = arith.mulf %466, %443 : vector<2x64xf32>
    %470 = arith.mulf %465, %467 : vector<2x64xf32>
    %471 = arith.addf %469, %470 : vector<2x64xf32>
    %472 = math.tanh %471 : vector<2x64xf32>
    %473 = arith.mulf %468, %472 : vector<2x64xf32>
    %cst_138 = arith.constant 0.000000e+00 : f32
    %474 = vector.broadcast %cst_138 : f32 to vector<2x64xf32>
    %475 = arith.maximumf %473, %474 : vector<2x64xf32>
    %476 = arith.maximumf %448, %475 : vector<2x64xf32>
    %477 = vector.extract_strided_slice %303 {offsets = [6, 0, 0], sizes = [1, 2, 256], strides = [1, 1, 1]} : vector<8x2x256xf32> to vector<1x2x256xf32>
    %478 = vector.shape_cast %477 : vector<1x2x256xf32> to vector<2x256xf32>
    %479 = vector.extract_strided_slice %304 {offsets = [1, 0, 0], sizes = [1, 2, 256], strides = [1, 1, 1]} : vector<8x2x256xf32> to vector<1x2x256xf32>
    %480 = vector.shape_cast %479 : vector<1x2x256xf32> to vector<2x256xf32>
    %481 = arith.addf %478, %480 : vector<2x256xf32>
    %cst_139 = arith.constant dense<0.000000e+00> : vector<2x256xf32>
    %482 = tpu.matmul %473, %305, %cst_139 {dimension_numbers = #tpu.dot_dimension_numbers<[1], [0], [0], [1], [0, 0, 1, 1], [], []>} : vector<2x64xf32>, vector<64x256xf32>, vector<2x256xf32> -> vector<2x256xf32>
    %483 = arith.addf %481, %482 : vector<2x256xf32>
    %cst_140 = arith.constant 5.000000e-01 : f32
    %484 = vector.broadcast %cst_140 : f32 to vector<2x256xf32>
    %485 = arith.mulf %484, %483 : vector<2x256xf32>
    %486 = arith.select %5, %483, %485 : vector<2x256xi1>, vector<2x256xf32>
    %487 = math.tanh %486 : vector<2x256xf32>
    %cst_141 = arith.constant 1.000000e+00 : f32
    %488 = vector.broadcast %cst_141 : f32 to vector<2x256xf32>
    %489 = arith.addf %487, %488 : vector<2x256xf32>
    %cst_142 = arith.constant 5.000000e-01 : f32
    %490 = vector.broadcast %cst_142 : f32 to vector<2x256xf32>
    %491 = arith.mulf %490, %489 : vector<2x256xf32>
    %492 = arith.select %5, %487, %491 : vector<2x256xi1>, vector<2x256xf32>
    %493 = vector.extract_strided_slice %492 {offsets = [0, 0], sizes = [2, 64], strides = [1, 1]} : vector<2x256xf32> to vector<2x64xf32>
    %494 = vector.extract_strided_slice %492 {offsets = [0, 64], sizes = [2, 64], strides = [1, 1]} : vector<2x256xf32> to vector<2x64xf32>
    %495 = vector.extract_strided_slice %492 {offsets = [0, 128], sizes = [2, 64], strides = [1, 1]} : vector<2x256xf32> to vector<2x64xf32>
    %496 = vector.extract_strided_slice %492 {offsets = [0, 192], sizes = [2, 64], strides = [1, 1]} : vector<2x256xf32> to vector<2x64xf32>
    %497 = arith.mulf %494, %471 : vector<2x64xf32>
    %498 = arith.mulf %493, %495 : vector<2x64xf32>
    %499 = arith.addf %497, %498 : vector<2x64xf32>
    %500 = math.tanh %499 : vector<2x64xf32>
    %501 = arith.mulf %496, %500 : vector<2x64xf32>
    %cst_143 = arith.constant 0.000000e+00 : f32
    %502 = vector.broadcast %cst_143 : f32 to vector<2x64xf32>
    %503 = arith.maximumf %501, %502 : vector<2x64xf32>
    %504 = arith.maximumf %476, %503 : vector<2x64xf32>
    %505 = vector.extract_strided_slice %303 {offsets = [7, 0, 0], sizes = [1, 2, 256], strides = [1, 1, 1]} : vector<8x2x256xf32> to vector<1x2x256xf32>
    %506 = vector.shape_cast %505 : vector<1x2x256xf32> to vector<2x256xf32>
    %507 = vector.extract_strided_slice %304 {offsets = [0, 0, 0], sizes = [1, 2, 256], strides = [1, 1, 1]} : vector<8x2x256xf32> to vector<1x2x256xf32>
    %508 = vector.shape_cast %507 : vector<1x2x256xf32> to vector<2x256xf32>
    %509 = arith.addf %506, %508 : vector<2x256xf32>
    %cst_144 = arith.constant dense<0.000000e+00> : vector<2x256xf32>
    %510 = tpu.matmul %501, %305, %cst_144 {dimension_numbers = #tpu.dot_dimension_numbers<[1], [0], [0], [1], [0, 0, 1, 1], [], []>} : vector<2x64xf32>, vector<64x256xf32>, vector<2x256xf32> -> vector<2x256xf32>
    %511 = arith.addf %509, %510 : vector<2x256xf32>
    %cst_145 = arith.constant 5.000000e-01 : f32
    %512 = vector.broadcast %cst_145 : f32 to vector<2x256xf32>
    %513 = arith.mulf %512, %511 : vector<2x256xf32>
    %514 = arith.select %5, %511, %513 : vector<2x256xi1>, vector<2x256xf32>
    %515 = math.tanh %514 : vector<2x256xf32>
    %cst_146 = arith.constant 1.000000e+00 : f32
    %516 = vector.broadcast %cst_146 : f32 to vector<2x256xf32>
    %517 = arith.addf %515, %516 : vector<2x256xf32>
    %cst_147 = arith.constant 5.000000e-01 : f32
    %518 = vector.broadcast %cst_147 : f32 to vector<2x256xf32>
    %519 = arith.mulf %518, %517 : vector<2x256xf32>
    %520 = arith.select %5, %515, %519 : vector<2x256xi1>, vector<2x256xf32>
    %521 = vector.extract_strided_slice %520 {offsets = [0, 0], sizes = [2, 64], strides = [1, 1]} : vector<2x256xf32> to vector<2x64xf32>
    %522 = vector.extract_strided_slice %520 {offsets = [0, 64], sizes = [2, 64], strides = [1, 1]} : vector<2x256xf32> to vector<2x64xf32>
    %523 = vector.extract_strided_slice %520 {offsets = [0, 128], sizes = [2, 64], strides = [1, 1]} : vector<2x256xf32> to vector<2x64xf32>
    %524 = vector.extract_strided_slice %520 {offsets = [0, 192], sizes = [2, 64], strides = [1, 1]} : vector<2x256xf32> to vector<2x64xf32>
    %525 = arith.mulf %522, %499 : vector<2x64xf32>
    %526 = arith.mulf %521, %523 : vector<2x64xf32>
    %527 = arith.addf %525, %526 : vector<2x64xf32>
    %528 = math.tanh %527 : vector<2x64xf32>
    %529 = arith.mulf %524, %528 : vector<2x64xf32>
    %cst_148 = arith.constant 0.000000e+00 : f32
    %530 = vector.broadcast %cst_148 : f32 to vector<2x64xf32>
    %531 = arith.maximumf %529, %530 : vector<2x64xf32>
    %532 = arith.maximumf %504, %531 : vector<2x64xf32>
    %c0_149 = arith.constant 0 : index
    %c0_150 = arith.constant 0 : index
    %533 = vector.load %arg10[%c0_149, %c0_150] : memref<64x128xf32, #tpu.memory_space<vmem>>, vector<64x128xf32>
    %cst_151 = arith.constant dense<0.000000e+00> : vector<2x128xf32>
    %534 = tpu.matmul %532, %533, %cst_151 {dimension_numbers = #tpu.dot_dimension_numbers<[1], [0], [0], [1], [0, 0, 1, 1], [], []>} : vector<2x64xf32>, vector<64x128xf32>, vector<2x128xf32> -> vector<2x128xf32>
    %c0_152 = arith.constant 0 : index
    %c0_153 = arith.constant 0 : index
    %535 = vector.load %arg11[%c0_152, %c0_153] : memref<1x128xf32, #tpu.memory_space<vmem>>, vector<1x128xf32>
    %536 = vector.broadcast %535 : vector<1x128xf32> to vector<2x128xf32>
    %537 = arith.addf %534, %536 : vector<2x128xf32>
    %c0_154 = arith.constant 0 : index
    %c0_155 = arith.constant 0 : index
    %538 = vector.load %arg12[%c0_154, %c0_155] : memref<2x128xf32, #tpu.memory_space<vmem>>, vector<2x128xf32>
    tpu.vector_store %arg12[%c0_154, %c0_155], %537 {strides = array<i32>} : memref<2x128xf32, #tpu.memory_space<vmem>>, vector<2x128xf32>,
    return
  }
}

</mosaic_0001>

<llo_original>
// kernel: lstm_model_forward.1
$region0: #{lstm_model_forward.1}
  #allocation0 [shape = 'u32[]', space=smem, size = 0x4, offset = 0x4, fixed_abs, tag = 'smem constant byte address 0x4 - core index']
  #allocation1 [shape = 'u32[72,128]{1,0:T(1,128)}', space=vmem, size = 0x9000, scoped, tag = 'internal scratch']
  #allocation2 [shape = 'f32[8,2,32]{2,1,0:T(2,128)}', space=vmem, size = 0x2000, scoped, tag = 'scratch operand']
  #allocation3 [shape = 'f32[8,2,32]{2,1,0:T(2,128)}', space=vmem, size = 0x2000, scoped, tag = 'scratch operand']
  %s0 = inlined_call_operand.vmem [shape: f32[8,2,32], index: 0, kind: input, shape index: {}]
  %s1 = inlined_call_operand.vmem [shape: f32[2,2,64], index: 1, kind: input, shape index: {}]
  %s2 = inlined_call_operand.hbm [shape: f32[32,256], index: 2, kind: input, shape index: {}]
  %s3 = inlined_call_operand.hbm [shape: f32[32,256], index: 3, kind: input, shape index: {}]
  %s4 = inlined_call_operand.vmem [shape: f32[1,256], index: 4, kind: input, shape index: {}]
  %s5 = inlined_call_operand.vmem [shape: f32[64,256], index: 5, kind: input, shape index: {}]
  %s6 = inlined_call_operand.vmem [shape: f32[64,256], index: 6, kind: input, shape index: {}]
  %s7 = inlined_call_operand.hbm [shape: f32[64,256], index: 7, kind: input, shape index: {}]
  %s8 = inlined_call_operand.vmem [shape: f32[1,256], index: 8, kind: input, shape index: {}]
  %s9 = inlined_call_operand.hbm [shape: f32[64,256], index: 9, kind: input, shape index: {}]
  %s10 = inlined_call_operand.hbm [shape: f32[64,128], index: 10, kind: input, shape index: {}]
  %s11 = inlined_call_operand.vmem [shape: f32[1,128], index: 11, kind: input, shape index: {}]
  %s12 = inlined_call_operand.hbm [shape: f32[2,128], index: 12, kind: output, shape index: {}]
  %s13 = sld [smem:[#allocation0]]
  $region78: #{lstm_model_forward.1} parent=0
    _
  %s15 = ssub.s32 1, %s13
  %s16 = scalar_select 0, %s15, %s13
  $region1: #{lstm_model_forward.1} parent=0
    #allocation4 [shape = 'u8[32768]{0}', space=vmem, size = 0x8000, scoped, tag = 'input window, operand 2, single buffered']
    #allocation5 [shape = 's32[1]{0}', space=sflag, size = 0x4, scoped, tag = 'scoped memory for lstm_model_forward.1']
    #allocation6 [shape = 's32[1]{0}', space=sflag, size = 0x4, scoped, tag = 'scoped memory for lstm_model_forward.1']
    #allocation7 [shape = 'u8[32768]{0}', space=vmem, size = 0x8000, scoped, tag = 'input window, operand 3, single buffered']
    #allocation8 [shape = 's32[1]{0}', space=sflag, size = 0x4, scoped, tag = 'scoped memory for lstm_model_forward.1']
    #allocation9 [shape = 'u8[65536]{0}', space=vmem, size = 0x10000, scoped, tag = 'input window, operand 7, single buffered']
    #allocation10 [shape = 'u8[65536]{0}', space=vmem, size = 0x10000, scoped, tag = 'input window, operand 9, single buffered']
    #allocation11 [shape = 's32[1]{0}', space=sflag, size = 0x4, scoped, tag = 'scoped memory for lstm_model_forward.1']
    #allocation12 [shape = 'u8[32768]{0}', space=vmem, size = 0x8000, scoped, tag = 'input window, operand 10, single buffered']
    #allocation13 [shape = 'u8[1024]{0}', space=vmem, size = 0x400, scoped, tag = 'output window, operand 0, single buffered']
    %17 = vsyncpa [#allocation5], 0
    %18 = vsyncpa [#allocation8], 0
    %19 = vsyncpa [#allocation11], 0
    %20 = vsyncpa [#allocation6], 0
    // Predicated region
    $region2: #{lstm_model_forward.1} parent=1 // pred_check
      _
    $region3: #{lstm_model_forward.1} parent=1 // pred_check_branch
      %22 = sbr.rel (0) target = $region5
    $region4: #{lstm_model_forward.1} parent=1 // pred_region
      _
    $region5: #{lstm_model_forward.1} parent=1 // pred_fallthru
      _
    // Predicated region
    $region6: #{lstm_model_forward.1} parent=1 // pred_check
      _
    $region7: #{lstm_model_forward.1} parent=1 // pred_check_branch
      %24 = sbr.rel (0) target = $region9
    $region8: #{lstm_model_forward.1} parent=1 // pred_region
      _
    $region9: #{lstm_model_forward.1} parent=1 // pred_fallthru
      _
    // Predicated region
    $region10: #{lstm_model_forward.1} parent=1 // pred_check
      _
    $region11: #{lstm_model_forward.1} parent=1 // pred_check_branch
      %26 = sbr.rel (0) target = $region13
    $region12: #{lstm_model_forward.1} parent=1 // pred_region
      %28 = vsyncadd [#allocation5], 0
      %s29 = sshll.u32 %s2, 4
      %s30 = int_to_ptr.hbm [resolvable:$true] %s29
      %s31 = sshll.u32 [#allocation4], 4
      %s32 = int_to_ptr.vmem [resolvable:$true] %s31
      %37 = dma.hbm_to_vmem [thread:$0]  %s30, 1024, %s32, [#allocation5], 256, 256, 16
    $region13: #{lstm_model_forward.1} parent=1 // pred_fallthru
      _
    // Predicated region
    $region14: #{lstm_model_forward.1} parent=1 // pred_check
      _
    $region15: #{lstm_model_forward.1} parent=1 // pred_check_branch
      %39 = sbr.rel (0) target = $region17
    $region16: #{lstm_model_forward.1} parent=1 // pred_region
      %41 = vsyncadd [#allocation8], 0
      %s42 = sshll.u32 %s3, 4
      %s43 = int_to_ptr.hbm [resolvable:$true] %s42
      %s44 = sshll.u32 [#allocation7], 4
      %s45 = int_to_ptr.vmem [resolvable:$true] %s44
      %50 = dma.hbm_to_vmem [thread:$0]  %s43, 1024, %s45, [#allocation8], 256, 256, 16
    $region17: #{lstm_model_forward.1} parent=1 // pred_fallthru
      _
    // Predicated region
    $region18: #{lstm_model_forward.1} parent=1 // pred_check
      _
    $region19: #{lstm_model_forward.1} parent=1 // pred_check_branch
      %52 = sbr.rel (0) target = $region21
    $region20: #{lstm_model_forward.1} parent=1 // pred_region
      _
    $region21: #{lstm_model_forward.1} parent=1 // pred_fallthru
      _
    // Predicated region
    $region22: #{lstm_model_forward.1} parent=1 // pred_check
      _
    $region23: #{lstm_model_forward.1} parent=1 // pred_check_branch
      %54 = sbr.rel (0) target = $region25
    $region24: #{lstm_model_forward.1} parent=1 // pred_region
      _
    $region25: #{lstm_model_forward.1} parent=1 // pred_fallthru
      _
    // Predicated region
    $region26: #{lstm_model_forward.1} parent=1 // pred_check
      _
    $region27: #{lstm_model_forward.1} parent=1 // pred_check_branch
      %56 = sbr.rel (0) target = $region29
    $region28: #{lstm_model_forward.1} parent=1 // pred_region
      _
    $region29: #{lstm_model_forward.1} parent=1 // pred_fallthru
      _
    // Predicated region
    $region30: #{lstm_model_forward.1} parent=1 // pred_check
      _
    $region31: #{lstm_model_forward.1} parent=1 // pred_check_branch
      %58 = sbr.rel (0) target = $region33
    $region32: #{lstm_model_forward.1} parent=1 // pred_region
      %60 = vsyncadd [#allocation8], 0
      %s61 = sshll.u32 %s7, 4
      %s62 = int_to_ptr.hbm [resolvable:$true] %s61
      %s63 = sshll.u32 [#allocation9], 4
      %s64 = int_to_ptr.vmem [resolvable:$true] %s63
      %69 = dma.hbm_to_vmem [thread:$0]  %s62, 2048, %s64, [#allocation8], 256, 256, 16
    $region33: #{lstm_model_forward.1} parent=1 // pred_fallthru
      _
    // Predicated region
    $region34: #{lstm_model_forward.1} parent=1 // pred_check
      _
    $region35: #{lstm_model_forward.1} parent=1 // pred_check_branch
      %71 = sbr.rel (0) target = $region37
    $region36: #{lstm_model_forward.1} parent=1 // pred_region
      _
    $region37: #{lstm_model_forward.1} parent=1 // pred_fallthru
      _
    // Predicated region
    $region38: #{lstm_model_forward.1} parent=1 // pred_check
      _
    $region39: #{lstm_model_forward.1} parent=1 // pred_check_branch
      %73 = sbr.rel (0) target = $region41
    $region40: #{lstm_model_forward.1} parent=1 // pred_region
      %75 = vsyncadd [#allocation11], 0
      %s76 = sshll.u32 %s9, 4
      %s77 = int_to_ptr.hbm [resolvable:$true] %s76
      %s78 = sshll.u32 [#allocation10], 4
      %s79 = int_to_ptr.vmem [resolvable:$true] %s78
      %84 = dma.hbm_to_vmem [thread:$0]  %s77, 2048, %s79, [#allocation11], 256, 256, 16
    $region41: #{lstm_model_forward.1} parent=1 // pred_fallthru
      _
    // Predicated region
    $region42: #{lstm_model_forward.1} parent=1 // pred_check
      _
    $region43: #{lstm_model_forward.1} parent=1 // pred_check_branch
      %86 = sbr.rel (0) target = $region45
    $region44: #{lstm_model_forward.1} parent=1 // pred_region
      %88 = vsyncadd [#allocation11], 0
      %s89 = sshll.u32 %s10, 4
      %s90 = int_to_ptr.hbm [resolvable:$true] %s89
      %s91 = sshll.u32 [#allocation12], 4
      %s92 = int_to_ptr.vmem [resolvable:$true] %s91
      %97 = dma.hbm_to_vmem [thread:$0]  %s90, 1024, %s92, [#allocation11], 128, 128, 8
    $region45: #{lstm_model_forward.1} parent=1 // pred_fallthru
      _
    // Predicated region
    $region46: #{lstm_model_forward.1} parent=1 // pred_check
      _
    $region47: #{lstm_model_forward.1} parent=1 // pred_check_branch
      %99 = sbr.rel (0) target = $region49
    $region48: #{lstm_model_forward.1} parent=1 // pred_region
      _
    $region49: #{lstm_model_forward.1} parent=1 // pred_fallthru
      _
    // Predicated region
    $region50: #{lstm_model_forward.1} parent=1 // pred_check
      _
    $region51: #{lstm_model_forward.1} parent=1 // pred_check_branch
      %101 = sbr.rel (0) target = $region53
    $region52: #{lstm_model_forward.1} parent=1 // pred_region
      %103 = dma.done [#allocation5], 1024
    $region53: #{lstm_model_forward.1} parent=1 // pred_fallthru
      _
    // Predicated region
    $region54: #{lstm_model_forward.1} parent=1 // pred_check
      _
    $region55: #{lstm_model_forward.1} parent=1 // pred_check_branch
      %105 = sbr.rel (0) target = $region57
    $region56: #{lstm_model_forward.1} parent=1 // pred_region
      %107 = dma.done [#allocation8], 1024
    $region57: #{lstm_model_forward.1} parent=1 // pred_fallthru
      _
    // Predicated region
    $region58: #{lstm_model_forward.1} parent=1 // pred_check
      _
    $region59: #{lstm_model_forward.1} parent=1 // pred_check_branch
      %109 = sbr.rel (0) target = $region61
    $region60: #{lstm_model_forward.1} parent=1 // pred_region
      %111 = dma.done [#allocation8], 2048
    $region61: #{lstm_model_forward.1} parent=1 // pred_fallthru
      _
    // Predicated region
    $region62: #{lstm_model_forward.1} parent=1 // pred_check
      _
    $region63: #{lstm_model_forward.1} parent=1 // pred_check_branch
      %113 = sbr.rel (0) target = $region65
    $region64: #{lstm_model_forward.1} parent=1 // pred_region
      %115 = dma.done [#allocation11], 2048
    $region65: #{lstm_model_forward.1} parent=1 // pred_fallthru
      _
    // Predicated region
    $region66: #{lstm_model_forward.1} parent=1 // pred_check
      _
    $region67: #{lstm_model_forward.1} parent=1 // pred_check_branch
      %117 = sbr.rel (0) target = $region69
    $region68: #{lstm_model_forward.1} parent=1 // pred_region
      %119 = dma.done [#allocation11], 1024
    $region69: #{lstm_model_forward.1} parent=1 // pred_fallthru
      _
    %v120 = vlaneseq
    %v121 = vand.u32 %v120, 127
    %v122 = vadd.s32 %v121, 128
    %vm123 = vcmp.ge.s32.totalorder %v121, 128
    %vm124 = vcmp.ge.s32.totalorder %v122, 128
    %vm125 = vcmp.lt.s32.totalorder %v121, 192
    %vm126 = vcmp.lt.s32.totalorder %v122, 192
    %vm127 = vmand %vm123, %vm125
    %vm128 = vmand %vm124, %vm126
    %v129 = vld [vmem:[#allocation4] sm:$0xff]
    %v130 = vld [vmem:[#allocation4 + $0x8] sm:$0xff]
    %v131 = vld [vmem:[#allocation4 + $0x10] sm:$0xff]
    %v132 = vld [vmem:[#allocation4 + $0x18] sm:$0xff]
    %v133 = vld [vmem:[#allocation4 + $0x20] sm:$0xff]
    %v134 = vld [vmem:[#allocation4 + $0x28] sm:$0xff]
    %v135 = vld [vmem:[#allocation4 + $0x30] sm:$0xff]
    %v136 = vld [vmem:[#allocation4 + $0x38] sm:$0xff]
    %v137 = vld [vmem:[#allocation7] sm:$0xff]
    %v138 = vld [vmem:[#allocation7 + $0x8] sm:$0xff]
    %v139 = vld [vmem:[#allocation7 + $0x10] sm:$0xff]
    %v140 = vld [vmem:[#allocation7 + $0x18] sm:$0xff]
    %v141 = vld [vmem:[#allocation7 + $0x20] sm:$0xff]
    %v142 = vld [vmem:[#allocation7 + $0x28] sm:$0xff]
    %v143 = vld [vmem:[#allocation7 + $0x30] sm:$0xff]
    %v144 = vld [vmem:[#allocation7 + $0x38] sm:$0xff]
    %v145 = vld [vmem:[%s4] sm:$0x3]
    %v146 = vld [vmem:[%s0] sm:$0x3]
    %v147 = vld [vmem:[%s0 + $0x2] sm:$0x3]
    %v148 = vld [vmem:[%s0 + $0x4] sm:$0x3]
    %v149 = vld [vmem:[%s0 + $0x6] sm:$0x3]
    %v150 = vld [vmem:[%s0 + $0x8] sm:$0x3]
    %v151 = vld [vmem:[%s0 + $0xa] sm:$0x3]
    %v152 = vld [vmem:[%s0 + $0xc] sm:$0x3]
    %v153 = vld [vmem:[%s0 + $0xe] sm:$0x3]
    %v155 = vperm.slane %v145, 0
    %v156 = vperm.slane %v145, 1
    %167 = vst [vmem:[#allocation1] ss:$4 sm:$0xff] %v146
    %s168 = scalar_lea.vmem [#allocation1], 1
    %169 = vst [vmem:[%s168] ss:$4 sm:$0xff] %v147
    %s170 = scalar_lea.vmem [#allocation1], 2
    %171 = vst [vmem:[%s170] ss:$4 sm:$0xff] %v148
    %s172 = scalar_lea.vmem [#allocation1], 3
    %173 = vst [vmem:[%s172] ss:$4 sm:$0xff] %v149
    %s174 = scalar_lea.vmem [#allocation1], 32
    %175 = vst [vmem:[%s174] ss:$4 sm:$0xff] %v150
    %s176 = scalar_lea.vmem [#allocation1], 33
    %177 = vst [vmem:[%s176] ss:$4 sm:$0xff] %v151
    %s178 = scalar_lea.vmem [#allocation1], 34
    %179 = vst [vmem:[%s178] ss:$4 sm:$0xff] %v152
    %s180 = scalar_lea.vmem [#allocation1], 35
    %181 = vst [vmem:[%s180] ss:$4 sm:$0xff] %v153
    %v182 = vld.sshfl [vmem:[#allocation1] sm:$0xff pattern:$0x73625140]
    %v183 = vld.sshfl [vmem:[#allocation1 + $0x20] sm:$0xff pattern:$0x73625140]
    %vm184 = vcmask 261120
    %v185 = vsel %vm184, %v182, 0
    %v187 = vsel %vm184, %v183, 0
    %189 = vmatpush.msra.mxu0 0.0
    %190 = vmatpush.msra.mxu0 0.0
    %191 = vmatpush.msra.mxu0 0.0
    %192 = vmatpush.msra.mxu0 0.0
    %193 = vmatpush.msra.mxu0 0.0
    %194 = vmatpush.msra.mxu0 0.0
    %195 = vmatpush.msra.mxu0 0.0
    %196 = vmatpush.msra.mxu0 0.0
    %197 = vmatpush.msra.mxu0 0.0
    %198 = vmatpush.msra.mxu0 0.0
    %199 = vmatpush.msra.mxu0 0.0
    %200 = vmatpush.msra.mxu0 0.0
    %201 = vmatpush.msra.mxu0 %v135
    %202 = vmatpush.msra.mxu0 %v133
    %203 = vmatpush.msra.mxu0 %v131
    %204 = vmatpush.msra.mxu0 %v129
    %205 = vmatmul.f32.gmra.mxu0 %v185
    %v206 = vpop.f32.mrf.mxu0
    %v207 = vadd.f32 %v155, %v206
    %208 = vmatmul.f32.gmra.mxu0 %v187
    %v209 = vpop.f32.mrf.mxu0
    %v210 = vadd.f32 %v155, %v209
    %211 = vdwg.mxu0
    %212 = vmatpush.msra.mxu0 0.0
    %213 = vmatpush.msra.mxu0 0.0
    %214 = vmatpush.msra.mxu0 0.0
    %215 = vmatpush.msra.mxu0 0.0
    %216 = vmatpush.msra.mxu0 0.0
    %217 = vmatpush.msra.mxu0 0.0
    %218 = vmatpush.msra.mxu0 0.0
    %219 = vmatpush.msra.mxu0 0.0
    %220 = vmatpush.msra.mxu0 0.0
    %221 = vmatpush.msra.mxu0 0.0
    %222 = vmatpush.msra.mxu0 0.0
    %223 = vmatpush.msra.mxu0 0.0
    %224 = vmatpush.msra.mxu0 %v136
    %225 = vmatpush.msra.mxu0 %v134
    %226 = vmatpush.msra.mxu0 %v132
    %227 = vmatpush.msra.mxu0 %v130
    %228 = vmatmul.f32.gmra.mxu0 %v185
    %v229 = vpop.f32.mrf.mxu0
    %v230 = vadd.f32 %v156, %v229
    %231 = vmatmul.f32.gmra.mxu0 %v187
    %v232 = vpop.f32.mrf.mxu0
    %v233 = vadd.f32 %v156, %v232
    %234 = vdwg.mxu0
    %235 = vst [vmem:[#allocation1] ss:$4 sm:$0xff] %v146
    %s236 = scalar_lea.vmem [#allocation1], 1
    %237 = vst [vmem:[%s236] ss:$4 sm:$0xff] %v147
    %s238 = scalar_lea.vmem [#allocation1], 2
    %239 = vst [vmem:[%s238] ss:$4 sm:$0xff] %v148
    %s240 = scalar_lea.vmem [#allocation1], 3
    %241 = vst [vmem:[%s240] ss:$4 sm:$0xff] %v149
    %s242 = scalar_lea.vmem [#allocation1], 32
    %243 = vst [vmem:[%s242] ss:$4 sm:$0xff] %v150
    %s244 = scalar_lea.vmem [#allocation1], 33
    %245 = vst [vmem:[%s244] ss:$4 sm:$0xff] %v151
    %s246 = scalar_lea.vmem [#allocation1], 34
    %247 = vst [vmem:[%s246] ss:$4 sm:$0xff] %v152
    %s248 = scalar_lea.vmem [#allocation1], 35
    %249 = vst [vmem:[%s248] ss:$4 sm:$0xff] %v153
    %v250 = vld.sshfl [vmem:[#allocation1] sm:$0xff pattern:$0x73625140]
    %v251 = vld.sshfl [vmem:[#allocation1 + $0x20] sm:$0xff pattern:$0x73625140]
    %v252 = vsel %vm184, %v250, 0
    %v254 = vsel %vm184, %v251, 0
    %256 = vmatpush.msra.mxu0 0.0
    %257 = vmatpush.msra.mxu0 0.0
    %258 = vmatpush.msra.mxu0 0.0
    %259 = vmatpush.msra.mxu0 0.0
    %260 = vmatpush.msra.mxu0 0.0
    %261 = vmatpush.msra.mxu0 0.0
    %262 = vmatpush.msra.mxu0 0.0
    %263 = vmatpush.msra.mxu0 0.0
    %264 = vmatpush.msra.mxu0 0.0
    %265 = vmatpush.msra.mxu0 0.0
    %266 = vmatpush.msra.mxu0 0.0
    %267 = vmatpush.msra.mxu0 0.0
    %268 = vmatpush.msra.mxu0 %v143
    %269 = vmatpush.msra.mxu0 %v141
    %270 = vmatpush.msra.mxu0 %v139
    %271 = vmatpush.msra.mxu0 %v137
    %272 = vmatmul.f32.gmra.mxu0 %v252
    %v273 = vpop.f32.mrf.mxu0
    %v274 = vadd.f32 0.0, %v273
    %275 = vmatmul.f32.gmra.mxu0 %v254
    %v276 = vpop.f32.mrf.mxu0
    %v277 = vadd.f32 0.0, %v276
    %278 = vdwg.mxu0
    %279 = vmatpush.msra.mxu0 0.0
    %280 = vmatpush.msra.mxu0 0.0
    %281 = vmatpush.msra.mxu0 0.0
    %282 = vmatpush.msra.mxu0 0.0
    %283 = vmatpush.msra.mxu0 0.0
    %284 = vmatpush.msra.mxu0 0.0
    %285 = vmatpush.msra.mxu0 0.0
    %286 = vmatpush.msra.mxu0 0.0
    %287 = vmatpush.msra.mxu0 0.0
    %288 = vmatpush.msra.mxu0 0.0
    %289 = vmatpush.msra.mxu0 0.0
    %290 = vmatpush.msra.mxu0 0.0
    %291 = vmatpush.msra.mxu0 %v144
    %292 = vmatpush.msra.mxu0 %v142
    %293 = vmatpush.msra.mxu0 %v140
    %294 = vmatpush.msra.mxu0 %v138
    %295 = vmatmul.f32.gmra.mxu0 %v252
    %v296 = vpop.f32.mrf.mxu0
    %v297 = vadd.f32 0.0, %v296
    %298 = vmatmul.f32.gmra.mxu0 %v254
    %v299 = vpop.f32.mrf.mxu0
    %v300 = vadd.f32 0.0, %v299
    %301 = vdwg.mxu0
    %v306 = vrot.slane %v230, 6
    %v307 = vrot.slane %v233, 6
    %vm308 = vcmask 1041408
    %v309 = vsel %vm308, %v207, %v306
    %vm310 = vcmask 1043458
    %v311 = vsel %vm310, %v207, %v306
    %v312 = vrot.slane %v311, 2
    %vm313 = vcmask 1045508
    %v314 = vsel %vm313, %v207, %v306
    %v315 = vrot.slane %v314, 4
    %vm316 = vcmask 1045504
    %v317 = vsel %vm316, %v306, %v207
    %v318 = vrot.slane %v317, 6
    %v319 = vsel %vm308, %v210, %v307
    %v320 = vsel %vm310, %v210, %v307
    %v321 = vrot.slane %v320, 2
    %v322 = vsel %vm313, %v210, %v307
    %v323 = vrot.slane %v322, 4
    %v324 = vsel %vm316, %v307, %v210
    %v325 = vrot.slane %v324, 6
    %v338 = vrot.slane %v297, 6
    %v339 = vrot.slane %v300, 6
    %v340 = vsel %vm308, %v274, %v338
    %v341 = vsel %vm310, %v274, %v338
    %v342 = vrot.slane %v341, 2
    %v343 = vsel %vm313, %v274, %v338
    %v344 = vrot.slane %v343, 4
    %v345 = vsel %vm316, %v338, %v274
    %v346 = vrot.slane %v345, 6
    %v347 = vsel %vm308, %v277, %v339
    %v348 = vsel %vm310, %v277, %v339
    %v349 = vrot.slane %v348, 2
    %v350 = vsel %vm313, %v277, %v339
    %v351 = vrot.slane %v350, 4
    %v352 = vsel %vm316, %v339, %v277
    %v353 = vrot.slane %v352, 6
    %v362 = vld [vmem:[%s5] sm:$0xff]
    %v363 = vld [vmem:[%s5 + $0x8] sm:$0xff]
    %v364 = vld [vmem:[%s5 + $0x10] sm:$0xff]
    %v365 = vld [vmem:[%s5 + $0x18] sm:$0xff]
    %v366 = vld [vmem:[%s5 + $0x20] sm:$0xff]
    %v367 = vld [vmem:[%s5 + $0x28] sm:$0xff]
    %v368 = vld [vmem:[%s5 + $0x30] sm:$0xff]
    %v369 = vld [vmem:[%s5 + $0x38] sm:$0xff]
    %v370 = vld [vmem:[%s5 + $0x40] sm:$0xff]
    %v371 = vld [vmem:[%s5 + $0x48] sm:$0xff]
    %v372 = vld [vmem:[%s5 + $0x50] sm:$0xff]
    %v373 = vld [vmem:[%s5 + $0x58] sm:$0xff]
    %v374 = vld [vmem:[%s5 + $0x60] sm:$0xff]
    %v375 = vld [vmem:[%s5 + $0x68] sm:$0xff]
    %v376 = vld [vmem:[%s5 + $0x70] sm:$0xff]
    %v377 = vld [vmem:[%s5 + $0x78] sm:$0xff]
    %v378 = vld [vmem:[%s1] sm:$0x3]
    %v379 = vadd.f32 %v309, %v353
    %vm380 = vcmask 523264
    %v382 = vsel %vm380, %v378, 0
    %384 = vmatpush.msra.mxu0 0.0
    %385 = vmatpush.msra.mxu0 0.0
    %386 = vmatpush.msra.mxu0 0.0
    %387 = vmatpush.msra.mxu0 0.0
    %388 = vmatpush.msra.mxu0 0.0
    %389 = vmatpush.msra.mxu0 0.0
    %390 = vmatpush.msra.mxu0 0.0
    %391 = vmatpush.msra.mxu0 0.0
    %392 = vmatpush.msra.mxu0 %v376
    %393 = vmatpush.msra.mxu0 %v374
    %394 = vmatpush.msra.mxu0 %v372
    %395 = vmatpush.msra.mxu0 %v370
    %396 = vmatpush.msra.mxu0 %v368
    %397 = vmatpush.msra.mxu0 %v366
    %398 = vmatpush.msra.mxu0 %v364
    %399 = vmatpush.msra.mxu0 %v362
    %400 = vmatmul.f32.gmra.mxu0 %v382
    %v401 = vpop.f32.mrf.mxu0
    %v402 = vadd.f32 0.0, %v401
    %403 = vdwg.mxu0
    %404 = vmatpush.msra.mxu0 0.0
    %405 = vmatpush.msra.mxu0 0.0
    %406 = vmatpush.msra.mxu0 0.0
    %407 = vmatpush.msra.mxu0 0.0
    %408 = vmatpush.msra.mxu0 0.0
    %409 = vmatpush.msra.mxu0 0.0
    %410 = vmatpush.msra.mxu0 0.0
    %411 = vmatpush.msra.mxu0 0.0
    %412 = vmatpush.msra.mxu0 %v377
    %413 = vmatpush.msra.mxu0 %v375
    %414 = vmatpush.msra.mxu0 %v373
    %415 = vmatpush.msra.mxu0 %v371
    %416 = vmatpush.msra.mxu0 %v369
    %417 = vmatpush.msra.mxu0 %v367
    %418 = vmatpush.msra.mxu0 %v365
    %419 = vmatpush.msra.mxu0 %v363
    %420 = vmatmul.f32.gmra.mxu0 %v382
    %v421 = vpop.f32.mrf.mxu0
    %v422 = vadd.f32 0.0, %v421
    %423 = vdwg.mxu0
    %v426 = vrot.slane %v422, 6
    %v427 = vsel %vm308, %v402, %v426
    %v429 = vadd.f32 %v379, %v427
    %v430 = vmul.f32 %v429, 0.5
    %432 = vst [vmem:[#allocation1] ss:$4 sm:$0xff] %v429
    %v433 = vld.sshfl [vmem:[#allocation1] sm:$0xff pattern:$0x73625140]
    %v434 = vld.sshfl [vmem:[#allocation1 + $0x8] sm:$0xff pattern:$0x73625140]
    %438 = vst [vmem:[#allocation1] ss:$4 sm:$0xff] %v430
    %v439 = vld.sshfl [vmem:[#allocation1] sm:$0xff pattern:$0x73625140]
    %v440 = vld.sshfl [vmem:[#allocation1 + $0x8] sm:$0xff pattern:$0x73625140]
    %v443 = vsel %vm127, %v433, %v439
    %v444 = vsel %vm128, %v434, %v440
    %v445 = vtanh.pop %v443
    %v446 = vtanh.pop %v444
    %v447 = vadd.f32 %v445, 1.0
    %v448 = vadd.f32 %v446, 1.0
    %v449 = vmul.f32 %v447, 0.5
    %v450 = vmul.f32 %v448, 0.5
    %v451 = vsel %vm127, %v445, %v449
    %v452 = vsel %vm128, %v446, %v450
    %453 = vrot.lane.b32.xlu0 %v378, 64
    %v454 = vpop.permute.xlu0 %453
    %v456 = vmul.f32 %v451, %v454
    %v457 = vmul.f32 %v451, %v452
    %459 = vrot.lane.b32.xlu0 %v457, 64
    %v460 = vpop.permute.xlu0 %459
    %v462 = vadd.f32 %v456, %v460
    %v463 = vtanh.pop %v462
    %v464 = vmul.f32 %v452, %v463
    %466 = vrot.lane.b32.xlu0 %v464, 64
    %v467 = vpop.permute.xlu0 %466
    %vm469 = vcmask 254976
    %470 = vst.msk [vmem:[#allocation2] sm:$0x3] %vm469, %v467
    %471 = vrot.lane.b32.xlu0 %v464, 32
    %v472 = vpop.permute.xlu0 %471
    %s474 = scalar_lea.vmem [#allocation3], 14
    %475 = vst.msk [vmem:[%s474] sm:$0x3] %vm469, %v472
    %v476 = vadd.f32 %v312, %v351
    %v477 = vsel %vm380, %v467, 0
    %479 = vmatpush.msra.mxu0 0.0
    %480 = vmatpush.msra.mxu0 0.0
    %481 = vmatpush.msra.mxu0 0.0
    %482 = vmatpush.msra.mxu0 0.0
    %483 = vmatpush.msra.mxu0 0.0
    %484 = vmatpush.msra.mxu0 0.0
    %485 = vmatpush.msra.mxu0 0.0
    %486 = vmatpush.msra.mxu0 0.0
    %487 = vmatpush.msra.mxu0 %v376
    %488 = vmatpush.msra.mxu0 %v374
    %489 = vmatpush.msra.mxu0 %v372
    %490 = vmatpush.msra.mxu0 %v370
    %491 = vmatpush.msra.mxu0 %v368
    %492 = vmatpush.msra.mxu0 %v366
    %493 = vmatpush.msra.mxu0 %v364
    %494 = vmatpush.msra.mxu0 %v362
    %495 = vmatmul.f32.gmra.mxu0 %v477
    %v496 = vpop.f32.mrf.mxu0
    %v497 = vadd.f32 0.0, %v496
    %498 = vdwg.mxu0
    %499 = vmatpush.msra.mxu0 0.0
    %500 = vmatpush.msra.mxu0 0.0
    %501 = vmatpush.msra.mxu0 0.0
    %502 = vmatpush.msra.mxu0 0.0
    %503 = vmatpush.msra.mxu0 0.0
    %504 = vmatpush.msra.mxu0 0.0
    %505 = vmatpush.msra.mxu0 0.0
    %506 = vmatpush.msra.mxu0 0.0
    %507 = vmatpush.msra.mxu0 %v377
    %508 = vmatpush.msra.mxu0 %v375
    %509 = vmatpush.msra.mxu0 %v373
    %510 = vmatpush.msra.mxu0 %v371
    %511 = vmatpush.msra.mxu0 %v369
    %512 = vmatpush.msra.mxu0 %v367
    %513 = vmatpush.msra.mxu0 %v365
    %514 = vmatpush.msra.mxu0 %v363
    %515 = vmatmul.f32.gmra.mxu0 %v477
    %v516 = vpop.f32.mrf.mxu0
    %v517 = vadd.f32 0.0, %v516
    %518 = vdwg.mxu0
    %v521 = vrot.slane %v517, 6
    %v522 = vsel %vm308, %v497, %v521
    %v524 = vadd.f32 %v476, %v522
    %v525 = vmul.f32 %v524, 0.5
    %527 = vst [vmem:[#allocation1] ss:$4 sm:$0xff] %v524
    %v528 = vld.sshfl [vmem:[#allocation1] sm:$0xff pattern:$0x73625140]
    %v529 = vld.sshfl [vmem:[#allocation1 + $0x8] sm:$0xff pattern:$0x73625140]
    %533 = vst [vmem:[#allocation1] ss:$4 sm:$0xff] %v525
    %v534 = vld.sshfl [vmem:[#allocation1] sm:$0xff pattern:$0x73625140]
    %v535 = vld.sshfl [vmem:[#allocation1 + $0x8] sm:$0xff pattern:$0x73625140]
    %v538 = vsel %vm127, %v528, %v534
    %v539 = vsel %vm128, %v529, %v535
    %v540 = vtanh.pop %v538
    %v541 = vtanh.pop %v539
    %v542 = vadd.f32 %v540, 1.0
    %v543 = vadd.f32 %v541, 1.0
    %v544 = vmul.f32 %v542, 0.5
    %v545 = vmul.f32 %v543, 0.5
    %v546 = vsel %vm127, %v540, %v544
    %v547 = vsel %vm128, %v541, %v545
    %v548 = vmul.f32 %v546, %v462
    %v549 = vmul.f32 %v546, %v547
    %551 = vrot.lane.b32.xlu0 %v549, 64
    %v552 = vpop.permute.xlu0 %551
    %v554 = vadd.f32 %v548, %v552
    %v555 = vtanh.pop %v554
    %v556 = vmul.f32 %v547, %v555
    %558 = vrot.lane.b32.xlu0 %v556, 64
    %v559 = vpop.permute.xlu0 %558
    %s561 = scalar_lea.vmem [#allocation2], 2
    %562 = vst.msk [vmem:[%s561] sm:$0x3] %vm469, %v559
    %563 = vrot.lane.b32.xlu0 %v556, 32
    %v564 = vpop.permute.xlu0 %563
    %s566 = scalar_lea.vmem [#allocation3], 12
    %567 = vst.msk [vmem:[%s566] sm:$0x3] %vm469, %v564
    %v568 = vadd.f32 %v315, %v349
    %v569 = vsel %vm380, %v559, 0
    %571 = vmatpush.msra.mxu0 0.0
    %572 = vmatpush.msra.mxu0 0.0
    %573 = vmatpush.msra.mxu0 0.0
    %574 = vmatpush.msra.mxu0 0.0
    %575 = vmatpush.msra.mxu0 0.0
    %576 = vmatpush.msra.mxu0 0.0
    %577 = vmatpush.msra.mxu0 0.0
    %578 = vmatpush.msra.mxu0 0.0
    %579 = vmatpush.msra.mxu0 %v376
    %580 = vmatpush.msra.mxu0 %v374
    %581 = vmatpush.msra.mxu0 %v372
    %582 = vmatpush.msra.mxu0 %v370
    %583 = vmatpush.msra.mxu0 %v368
    %584 = vmatpush.msra.mxu0 %v366
    %585 = vmatpush.msra.mxu0 %v364
    %586 = vmatpush.msra.mxu0 %v362
    %587 = vmatmul.f32.gmra.mxu0 %v569
    %v588 = vpop.f32.mrf.mxu0
    %v589 = vadd.f32 0.0, %v588
    %590 = vdwg.mxu0
    %591 = vmatpush.msra.mxu0 0.0
    %592 = vmatpush.msra.mxu0 0.0
    %593 = vmatpush.msra.mxu0 0.0
    %594 = vmatpush.msra.mxu0 0.0
    %595 = vmatpush.msra.mxu0 0.0
    %596 = vmatpush.msra.mxu0 0.0
    %597 = vmatpush.msra.mxu0 0.0
    %598 = vmatpush.msra.mxu0 0.0
    %599 = vmatpush.msra.mxu0 %v377
    %600 = vmatpush.msra.mxu0 %v375
    %601 = vmatpush.msra.mxu0 %v373
    %602 = vmatpush.msra.mxu0 %v371
    %603 = vmatpush.msra.mxu0 %v369
    %604 = vmatpush.msra.mxu0 %v367
    %605 = vmatpush.msra.mxu0 %v365
    %606 = vmatpush.msra.mxu0 %v363
    %607 = vmatmul.f32.gmra.mxu0 %v569
    %v608 = vpop.f32.mrf.mxu0
    %v609 = vadd.f32 0.0, %v608
    %610 = vdwg.mxu0
    %v613 = vrot.slane %v609, 6
    %v614 = vsel %vm308, %v589, %v613
    %v616 = vadd.f32 %v568, %v614
    %v617 = vmul.f32 %v616, 0.5
    %619 = vst [vmem:[#allocation1] ss:$4 sm:$0xff] %v616
    %v620 = vld.sshfl [vmem:[#allocation1] sm:$0xff pattern:$0x73625140]
    %v621 = vld.sshfl [vmem:[#allocation1 + $0x8] sm:$0xff pattern:$0x73625140]
    %625 = vst [vmem:[#allocation1] ss:$4 sm:$0xff] %v617
    %v626 = vld.sshfl [vmem:[#allocation1] sm:$0xff pattern:$0x73625140]
    %v627 = vld.sshfl [vmem:[#allocation1 + $0x8] sm:$0xff pattern:$0x73625140]
    %v630 = vsel %vm127, %v620, %v626
    %v631 = vsel %vm128, %v621, %v627
    %v632 = vtanh.pop %v630
    %v633 = vtanh.pop %v631
    %v634 = vadd.f32 %v632, 1.0
    %v635 = vadd.f32 %v633, 1.0
    %v636 = vmul.f32 %v634, 0.5
    %v637 = vmul.f32 %v635, 0.5
    %v638 = vsel %vm127, %v632, %v636
    %v639 = vsel %vm128, %v633, %v637
    %v640 = vmul.f32 %v638, %v554
    %v641 = vmul.f32 %v638, %v639
    %643 = vrot.lane.b32.xlu0 %v641, 64
    %v644 = vpop.permute.xlu0 %643
    %v646 = vadd.f32 %v640, %v644
    %v647 = vtanh.pop %v646
    %v648 = vmul.f32 %v639, %v647
    %650 = vrot.lane.b32.xlu0 %v648, 64
    %v651 = vpop.permute.xlu0 %650
    %s653 = scalar_lea.vmem [#allocation2], 4
    %654 = vst.msk [vmem:[%s653] sm:$0x3] %vm469, %v651
    %655 = vrot.lane.b32.xlu0 %v648, 32
    %v656 = vpop.permute.xlu0 %655
    %s658 = scalar_lea.vmem [#allocation3], 10
    %659 = vst.msk [vmem:[%s658] sm:$0x3] %vm469, %v656
    %v660 = vadd.f32 %v318, %v347
    %v661 = vsel %vm380, %v651, 0
    %663 = vmatpush.msra.mxu0 0.0
    %664 = vmatpush.msra.mxu0 0.0
    %665 = vmatpush.msra.mxu0 0.0
    %666 = vmatpush.msra.mxu0 0.0
    %667 = vmatpush.msra.mxu0 0.0
    %668 = vmatpush.msra.mxu0 0.0
    %669 = vmatpush.msra.mxu0 0.0
    %670 = vmatpush.msra.mxu0 0.0
    %671 = vmatpush.msra.mxu0 %v376
    %672 = vmatpush.msra.mxu0 %v374
    %673 = vmatpush.msra.mxu0 %v372
    %674 = vmatpush.msra.mxu0 %v370
    %675 = vmatpush.msra.mxu0 %v368
    %676 = vmatpush.msra.mxu0 %v366
    %677 = vmatpush.msra.mxu0 %v364
    %678 = vmatpush.msra.mxu0 %v362
    %679 = vmatmul.f32.gmra.mxu0 %v661
    %v680 = vpop.f32.mrf.mxu0
    %v681 = vadd.f32 0.0, %v680
    %682 = vdwg.mxu0
    %683 = vmatpush.msra.mxu0 0.0
    %684 = vmatpush.msra.mxu0 0.0
    %685 = vmatpush.msra.mxu0 0.0
    %686 = vmatpush.msra.mxu0 0.0
    %687 = vmatpush.msra.mxu0 0.0
    %688 = vmatpush.msra.mxu0 0.0
    %689 = vmatpush.msra.mxu0 0.0
    %690 = vmatpush.msra.mxu0 0.0
    %691 = vmatpush.msra.mxu0 %v377
    %692 = vmatpush.msra.mxu0 %v375
    %693 = vmatpush.msra.mxu0 %v373
    %694 = vmatpush.msra.mxu0 %v371
    %695 = vmatpush.msra.mxu0 %v369
    %696 = vmatpush.msra.mxu0 %v367
    %697 = vmatpush.msra.mxu0 %v365
    %698 = vmatpush.msra.mxu0 %v363
    %699 = vmatmul.f32.gmra.mxu0 %v661
    %v700 = vpop.f32.mrf.mxu0
    %v701 = vadd.f32 0.0, %v700
    %702 = vdwg.mxu0
    %v705 = vrot.slane %v701, 6
    %v706 = vsel %vm308, %v681, %v705
    %v708 = vadd.f32 %v660, %v706
    %v709 = vmul.f32 %v708, 0.5
    %711 = vst [vmem:[#allocation1] ss:$4 sm:$0xff] %v708
    %v712 = vld.sshfl [vmem:[#allocation1] sm:$0xff pattern:$0x73625140]
    %v713 = vld.sshfl [vmem:[#allocation1 + $0x8] sm:$0xff pattern:$0x73625140]
    %717 = vst [vmem:[#allocation1] ss:$4 sm:$0xff] %v709
    %v718 = vld.sshfl [vmem:[#allocation1] sm:$0xff pattern:$0x73625140]
    %v719 = vld.sshfl [vmem:[#allocation1 + $0x8] sm:$0xff pattern:$0x73625140]
    %v722 = vsel %vm127, %v712, %v718
    %v723 = vsel %vm128, %v713, %v719
    %v724 = vtanh.pop %v722
    %v725 = vtanh.pop %v723
    %v726 = vadd.f32 %v724, 1.0
    %v727 = vadd.f32 %v725, 1.0
    %v728 = vmul.f32 %v726, 0.5
    %v729 = vmul.f32 %v727, 0.5
    %v730 = vsel %vm127, %v724, %v728
    %v731 = vsel %vm128, %v725, %v729
    %v732 = vmul.f32 %v730, %v646
    %v733 = vmul.f32 %v730, %v731
    %735 = vrot.lane.b32.xlu0 %v733, 64
    %v736 = vpop.permute.xlu0 %735
    %v738 = vadd.f32 %v732, %v736
    %v739 = vtanh.pop %v738
    %v740 = vmul.f32 %v731, %v739
    %742 = vrot.lane.b32.xlu0 %v740, 64
    %v743 = vpop.permute.xlu0 %742
    %s745 = scalar_lea.vmem [#allocation2], 6
    %746 = vst.msk [vmem:[%s745] sm:$0x3] %vm469, %v743
    %747 = vrot.lane.b32.xlu0 %v740, 32
    %v748 = vpop.permute.xlu0 %747
    %s750 = scalar_lea.vmem [#allocation3], 8
    %751 = vst.msk [vmem:[%s750] sm:$0x3] %vm469, %v748
    %v752 = vadd.f32 %v319, %v346
    %v753 = vsel %vm380, %v743, 0
    %755 = vmatpush.msra.mxu0 0.0
    %756 = vmatpush.msra.mxu0 0.0
    %757 = vmatpush.msra.mxu0 0.0
    %758 = vmatpush.msra.mxu0 0.0
    %759 = vmatpush.msra.mxu0 0.0
    %760 = vmatpush.msra.mxu0 0.0
    %761 = vmatpush.msra.mxu0 0.0
    %762 = vmatpush.msra.mxu0 0.0
    %763 = vmatpush.msra.mxu0 %v376
    %764 = vmatpush.msra.mxu0 %v374
    %765 = vmatpush.msra.mxu0 %v372
    %766 = vmatpush.msra.mxu0 %v370
    %767 = vmatpush.msra.mxu0 %v368
    %768 = vmatpush.msra.mxu0 %v366
    %769 = vmatpush.msra.mxu0 %v364
    %770 = vmatpush.msra.mxu0 %v362
    %771 = vmatmul.f32.gmra.mxu0 %v753
    %v772 = vpop.f32.mrf.mxu0
    %v773 = vadd.f32 0.0, %v772
    %774 = vdwg.mxu0
    %775 = vmatpush.msra.mxu0 0.0
    %776 = vmatpush.msra.mxu0 0.0
    %777 = vmatpush.msra.mxu0 0.0
    %778 = vmatpush.msra.mxu0 0.0
    %779 = vmatpush.msra.mxu0 0.0
    %780 = vmatpush.msra.mxu0 0.0
    %781 = vmatpush.msra.mxu0 0.0
    %782 = vmatpush.msra.mxu0 0.0
    %783 = vmatpush.msra.mxu0 %v377
    %784 = vmatpush.msra.mxu0 %v375
    %785 = vmatpush.msra.mxu0 %v373
    %786 = vmatpush.msra.mxu0 %v371
    %787 = vmatpush.msra.mxu0 %v369
    %788 = vmatpush.msra.mxu0 %v367
    %789 = vmatpush.msra.mxu0 %v365
    %790 = vmatpush.msra.mxu0 %v363
    %791 = vmatmul.f32.gmra.mxu0 %v753
    %v792 = vpop.f32.mrf.mxu0
    %v793 = vadd.f32 0.0, %v792
    %794 = vdwg.mxu0
    %v797 = vrot.slane %v793, 6
    %v798 = vsel %vm308, %v773, %v797
    %v800 = vadd.f32 %v752, %v798
    %v801 = vmul.f32 %v800, 0.5
    %803 = vst [vmem:[#allocation1] ss:$4 sm:$0xff] %v800
    %v804 = vld.sshfl [vmem:[#allocation1] sm:$0xff pattern:$0x73625140]
    %v805 = vld.sshfl [vmem:[#allocation1 + $0x8] sm:$0xff pattern:$0x73625140]
    %809 = vst [vmem:[#allocation1] ss:$4 sm:$0xff] %v801
    %v810 = vld.sshfl [vmem:[#allocation1] sm:$0xff pattern:$0x73625140]
    %v811 = vld.sshfl [vmem:[#allocation1 + $0x8] sm:$0xff pattern:$0x73625140]
    %v814 = vsel %vm127, %v804, %v810
    %v815 = vsel %vm128, %v805, %v811
    %v816 = vtanh.pop %v814
    %v817 = vtanh.pop %v815
    %v818 = vadd.f32 %v816, 1.0
    %v819 = vadd.f32 %v817, 1.0
    %v820 = vmul.f32 %v818, 0.5
    %v821 = vmul.f32 %v819, 0.5
    %v822 = vsel %vm127, %v816, %v820
    %v823 = vsel %vm128, %v817, %v821
    %v824 = vmul.f32 %v822, %v738
    %v825 = vmul.f32 %v822, %v823
    %827 = vrot.lane.b32.xlu0 %v825, 64
    %v828 = vpop.permute.xlu0 %827
    %v830 = vadd.f32 %v824, %v828
    %v831 = vtanh.pop %v830
    %v832 = vmul.f32 %v823, %v831
    %834 = vrot.lane.b32.xlu0 %v832, 64
    %v835 = vpop.permute.xlu0 %834
    %s837 = scalar_lea.vmem [#allocation2], 8
    %838 = vst.msk [vmem:[%s837] sm:$0x3] %vm469, %v835
    %839 = vrot.lane.b32.xlu0 %v832, 32
    %v840 = vpop.permute.xlu0 %839
    %s842 = scalar_lea.vmem [#allocation3], 6
    %843 = vst.msk [vmem:[%s842] sm:$0x3] %vm469, %v840
    %v844 = vadd.f32 %v321, %v344
    %v845 = vsel %vm380, %v835, 0
    %847 = vmatpush.msra.mxu0 0.0
    %848 = vmatpush.msra.mxu0 0.0
    %849 = vmatpush.msra.mxu0 0.0
    %850 = vmatpush.msra.mxu0 0.0
    %851 = vmatpush.msra.mxu0 0.0
    %852 = vmatpush.msra.mxu0 0.0
    %853 = vmatpush.msra.mxu0 0.0
    %854 = vmatpush.msra.mxu0 0.0
    %855 = vmatpush.msra.mxu0 %v376
    %856 = vmatpush.msra.mxu0 %v374
    %857 = vmatpush.msra.mxu0 %v372
    %858 = vmatpush.msra.mxu0 %v370
    %859 = vmatpush.msra.mxu0 %v368
    %860 = vmatpush.msra.mxu0 %v366
    %861 = vmatpush.msra.mxu0 %v364
    %862 = vmatpush.msra.mxu0 %v362
    %863 = vmatmul.f32.gmra.mxu0 %v845
    %v864 = vpop.f32.mrf.mxu0
    %v865 = vadd.f32 0.0, %v864
    %866 = vdwg.mxu0
    %867 = vmatpush.msra.mxu0 0.0
    %868 = vmatpush.msra.mxu0 0.0
    %869 = vmatpush.msra.mxu0 0.0
    %870 = vmatpush.msra.mxu0 0.0
    %871 = vmatpush.msra.mxu0 0.0
    %872 = vmatpush.msra.mxu0 0.0
    %873 = vmatpush.msra.mxu0 0.0
    %874 = vmatpush.msra.mxu0 0.0
    %875 = vmatpush.msra.mxu0 %v377
    %876 = vmatpush.msra.mxu0 %v375
    %877 = vmatpush.msra.mxu0 %v373
    %878 = vmatpush.msra.mxu0 %v371
    %879 = vmatpush.msra.mxu0 %v369
    %880 = vmatpush.msra.mxu0 %v367
    %881 = vmatpush.msra.mxu0 %v365
    %882 = vmatpush.msra.mxu0 %v363
    %883 = vmatmul.f32.gmra.mxu0 %v845
    %v884 = vpop.f32.mrf.mxu0
    %v885 = vadd.f32 0.0, %v884
    %886 = vdwg.mxu0
    %v889 = vrot.slane %v885, 6
    %v890 = vsel %vm308, %v865, %v889
    %v892 = vadd.f32 %v844, %v890
    %v893 = vmul.f32 %v892, 0.5
    %895 = vst [vmem:[#allocation1] ss:$4 sm:$0xff] %v892
    %v896 = vld.sshfl [vmem:[#allocation1] sm:$0xff pattern:$0x73625140]
    %v897 = vld.sshfl [vmem:[#allocation1 + $0x8] sm:$0xff pattern:$0x73625140]
    %901 = vst [vmem:[#allocation1] ss:$4 sm:$0xff] %v893
    %v902 = vld.sshfl [vmem:[#allocation1] sm:$0xff pattern:$0x73625140]
    %v903 = vld.sshfl [vmem:[#allocation1 + $0x8] sm:$0xff pattern:$0x73625140]
    %v906 = vsel %vm127, %v896, %v902
    %v907 = vsel %vm128, %v897, %v903
    %v908 = vtanh.pop %v906
    %v909 = vtanh.pop %v907
    %v910 = vadd.f32 %v908, 1.0
    %v911 = vadd.f32 %v909, 1.0
    %v912 = vmul.f32 %v910, 0.5
    %v913 = vmul.f32 %v911, 0.5
    %v914 = vsel %vm127, %v908, %v912
    %v915 = vsel %vm128, %v909, %v913
    %v916 = vmul.f32 %v914, %v830
    %v917 = vmul.f32 %v914, %v915
    %919 = vrot.lane.b32.xlu0 %v917, 64
    %v920 = vpop.permute.xlu0 %919
    %v922 = vadd.f32 %v916, %v920
    %v923 = vtanh.pop %v922
    %v924 = vmul.f32 %v915, %v923
    %926 = vrot.lane.b32.xlu0 %v924, 64
    %v927 = vpop.permute.xlu0 %926
    %s929 = scalar_lea.vmem [#allocation2], 10
    %930 = vst.msk [vmem:[%s929] sm:$0x3] %vm469, %v927
    %931 = vrot.lane.b32.xlu0 %v924, 32
    %v932 = vpop.permute.xlu0 %931
    %s934 = scalar_lea.vmem [#allocation3], 4
    %935 = vst.msk [vmem:[%s934] sm:$0x3] %vm469, %v932
    %v936 = vadd.f32 %v323, %v342
    %v937 = vsel %vm380, %v927, 0
    %939 = vmatpush.msra.mxu0 0.0
    %940 = vmatpush.msra.mxu0 0.0
    %941 = vmatpush.msra.mxu0 0.0
    %942 = vmatpush.msra.mxu0 0.0
    %943 = vmatpush.msra.mxu0 0.0
    %944 = vmatpush.msra.mxu0 0.0
    %945 = vmatpush.msra.mxu0 0.0
    %946 = vmatpush.msra.mxu0 0.0
    %947 = vmatpush.msra.mxu0 %v376
    %948 = vmatpush.msra.mxu0 %v374
    %949 = vmatpush.msra.mxu0 %v372
    %950 = vmatpush.msra.mxu0 %v370
    %951 = vmatpush.msra.mxu0 %v368
    %952 = vmatpush.msra.mxu0 %v366
    %953 = vmatpush.msra.mxu0 %v364
    %954 = vmatpush.msra.mxu0 %v362
    %955 = vmatmul.f32.gmra.mxu0 %v937
    %v956 = vpop.f32.mrf.mxu0
    %v957 = vadd.f32 0.0, %v956
    %958 = vdwg.mxu0
    %959 = vmatpush.msra.mxu0 0.0
    %960 = vmatpush.msra.mxu0 0.0
    %961 = vmatpush.msra.mxu0 0.0
    %962 = vmatpush.msra.mxu0 0.0
    %963 = vmatpush.msra.mxu0 0.0
    %964 = vmatpush.msra.mxu0 0.0
    %965 = vmatpush.msra.mxu0 0.0
    %966 = vmatpush.msra.mxu0 0.0
    %967 = vmatpush.msra.mxu0 %v377
    %968 = vmatpush.msra.mxu0 %v375
    %969 = vmatpush.msra.mxu0 %v373
    %970 = vmatpush.msra.mxu0 %v371
    %971 = vmatpush.msra.mxu0 %v369
    %972 = vmatpush.msra.mxu0 %v367
    %973 = vmatpush.msra.mxu0 %v365
    %974 = vmatpush.msra.mxu0 %v363
    %975 = vmatmul.f32.gmra.mxu0 %v937
    %v976 = vpop.f32.mrf.mxu0
    %v977 = vadd.f32 0.0, %v976
    %978 = vdwg.mxu0
    %v981 = vrot.slane %v977, 6
    %v982 = vsel %vm308, %v957, %v981
    %v984 = vadd.f32 %v936, %v982
    %v985 = vmul.f32 %v984, 0.5
    %987 = vst [vmem:[#allocation1] ss:$4 sm:$0xff] %v984
    %v988 = vld.sshfl [vmem:[#allocation1] sm:$0xff pattern:$0x73625140]
    %v989 = vld.sshfl [vmem:[#allocation1 + $0x8] sm:$0xff pattern:$0x73625140]
    %993 = vst [vmem:[#allocation1] ss:$4 sm:$0xff] %v985
    %v994 = vld.sshfl [vmem:[#allocation1] sm:$0xff pattern:$0x73625140]
    %v995 = vld.sshfl [vmem:[#allocation1 + $0x8] sm:$0xff pattern:$0x73625140]
    %v998 = vsel %vm127, %v988, %v994
    %v999 = vsel %vm128, %v989, %v995
    %v1000 = vtanh.pop %v998
    %v1001 = vtanh.pop %v999
    %v1002 = vadd.f32 %v1000, 1.0
    %v1003 = vadd.f32 %v1001, 1.0
    %v1004 = vmul.f32 %v1002, 0.5
    %v1005 = vmul.f32 %v1003, 0.5
    %v1006 = vsel %vm127, %v1000, %v1004
    %v1007 = vsel %vm128, %v1001, %v1005
    %v1008 = vmul.f32 %v1006, %v922
    %v1009 = vmul.f32 %v1006, %v1007
    %1011 = vrot.lane.b32.xlu0 %v1009, 64
    %v1012 = vpop.permute.xlu0 %1011
    %v1014 = vadd.f32 %v1008, %v1012
    %v1015 = vtanh.pop %v1014
    %v1016 = vmul.f32 %v1007, %v1015
    %1018 = vrot.lane.b32.xlu0 %v1016, 64
    %v1019 = vpop.permute.xlu0 %1018
    %s1021 = scalar_lea.vmem [#allocation2], 12
    %1022 = vst.msk [vmem:[%s1021] sm:$0x3] %vm469, %v1019
    %1023 = vrot.lane.b32.xlu0 %v1016, 32
    %v1024 = vpop.permute.xlu0 %1023
    %s1026 = scalar_lea.vmem [#allocation3], 2
    %1027 = vst.msk [vmem:[%s1026] sm:$0x3] %vm469, %v1024
    %v1028 = vadd.f32 %v325, %v340
    %v1029 = vsel %vm380, %v1019, 0
    %1031 = vmatpush.msra.mxu0 0.0
    %1032 = vmatpush.msra.mxu0 0.0
    %1033 = vmatpush.msra.mxu0 0.0
    %1034 = vmatpush.msra.mxu0 0.0
    %1035 = vmatpush.msra.mxu0 0.0
    %1036 = vmatpush.msra.mxu0 0.0
    %1037 = vmatpush.msra.mxu0 0.0
    %1038 = vmatpush.msra.mxu0 0.0
    %1039 = vmatpush.msra.mxu0 %v376
    %1040 = vmatpush.msra.mxu0 %v374
    %1041 = vmatpush.msra.mxu0 %v372
    %1042 = vmatpush.msra.mxu0 %v370
    %1043 = vmatpush.msra.mxu0 %v368
    %1044 = vmatpush.msra.mxu0 %v366
    %1045 = vmatpush.msra.mxu0 %v364
    %1046 = vmatpush.msra.mxu0 %v362
    %1047 = vmatmul.f32.gmra.mxu0 %v1029
    %v1048 = vpop.f32.mrf.mxu0
    %v1049 = vadd.f32 0.0, %v1048
    %1050 = vdwg.mxu0
    %1051 = vmatpush.msra.mxu0 0.0
    %1052 = vmatpush.msra.mxu0 0.0
    %1053 = vmatpush.msra.mxu0 0.0
    %1054 = vmatpush.msra.mxu0 0.0
    %1055 = vmatpush.msra.mxu0 0.0
    %1056 = vmatpush.msra.mxu0 0.0
    %1057 = vmatpush.msra.mxu0 0.0
    %1058 = vmatpush.msra.mxu0 0.0
    %1059 = vmatpush.msra.mxu0 %v377
    %1060 = vmatpush.msra.mxu0 %v375
    %1061 = vmatpush.msra.mxu0 %v373
    %1062 = vmatpush.msra.mxu0 %v371
    %1063 = vmatpush.msra.mxu0 %v369
    %1064 = vmatpush.msra.mxu0 %v367
    %1065 = vmatpush.msra.mxu0 %v365
    %1066 = vmatpush.msra.mxu0 %v363
    %1067 = vmatmul.f32.gmra.mxu0 %v1029
    %v1068 = vpop.f32.mrf.mxu0
    %v1069 = vadd.f32 0.0, %v1068
    %1070 = vdwg.mxu0
    %v1073 = vrot.slane %v1069, 6
    %v1074 = vsel %vm308, %v1049, %v1073
    %v1076 = vadd.f32 %v1028, %v1074
    %v1077 = vmul.f32 %v1076, 0.5
    %1079 = vst [vmem:[#allocation1] ss:$4 sm:$0xff] %v1076
    %v1080 = vld.sshfl [vmem:[#allocation1] sm:$0xff pattern:$0x73625140]
    %v1081 = vld.sshfl [vmem:[#allocation1 + $0x8] sm:$0xff pattern:$0x73625140]
    %1085 = vst [vmem:[#allocation1] ss:$4 sm:$0xff] %v1077
    %v1086 = vld.sshfl [vmem:[#allocation1] sm:$0xff pattern:$0x73625140]
    %v1087 = vld.sshfl [vmem:[#allocation1 + $0x8] sm:$0xff pattern:$0x73625140]
    %v1090 = vsel %vm127, %v1080, %v1086
    %v1091 = vsel %vm128, %v1081, %v1087
    %v1092 = vtanh.pop %v1090
    %v1093 = vtanh.pop %v1091
    %v1094 = vadd.f32 %v1092, 1.0
    %v1095 = vadd.f32 %v1093, 1.0
    %v1096 = vmul.f32 %v1094, 0.5
    %v1097 = vmul.f32 %v1095, 0.5
    %v1098 = vsel %vm127, %v1092, %v1096
    %v1099 = vsel %vm128, %v1093, %v1097
    %v1100 = vmul.f32 %v1098, %v1014
    %v1101 = vmul.f32 %v1098, %v1099
    %1103 = vrot.lane.b32.xlu0 %v1101, 64
    %v1104 = vpop.permute.xlu0 %1103
    %v1106 = vadd.f32 %v1100, %v1104
    %v1107 = vtanh.pop %v1106
    %v1108 = vmul.f32 %v1099, %v1107
    %1110 = vrot.lane.b32.xlu0 %v1108, 64
    %v1111 = vpop.permute.xlu0 %1110
    %s1113 = scalar_lea.vmem [#allocation2], 14
    %1114 = vst.msk [vmem:[%s1113] sm:$0x3] %vm469, %v1111
    %1115 = vrot.lane.b32.xlu0 %v1108, 32
    %v1116 = vpop.permute.xlu0 %1115
    %1118 = vst.msk [vmem:[#allocation3] sm:$0x3] %vm469, %v1116
    %v1119 = vld [vmem:[%s6] sm:$0xff]
    %v1120 = vld [vmem:[%s6 + $0x8] sm:$0xff]
    %v1121 = vld [vmem:[%s6 + $0x10] sm:$0xff]
    %v1122 = vld [vmem:[%s6 + $0x18] sm:$0xff]
    %v1123 = vld [vmem:[%s6 + $0x20] sm:$0xff]
    %v1124 = vld [vmem:[%s6 + $0x28] sm:$0xff]
    %v1125 = vld [vmem:[%s6 + $0x30] sm:$0xff]
    %v1126 = vld [vmem:[%s6 + $0x38] sm:$0xff]
    %v1127 = vld [vmem:[%s6 + $0x40] sm:$0xff]
    %v1128 = vld [vmem:[%s6 + $0x48] sm:$0xff]
    %v1129 = vld [vmem:[%s6 + $0x50] sm:$0xff]
    %v1130 = vld [vmem:[%s6 + $0x58] sm:$0xff]
    %v1131 = vld [vmem:[%s6 + $0x60] sm:$0xff]
    %v1132 = vld [vmem:[%s6 + $0x68] sm:$0xff]
    %v1133 = vld [vmem:[%s6 + $0x70] sm:$0xff]
    %v1134 = vld [vmem:[%s6 + $0x78] sm:$0xff]
    %v1135 = vld [vmem:[#allocation9] sm:$0xff]
    %v1136 = vld [vmem:[#allocation9 + $0x8] sm:$0xff]
    %v1137 = vld [vmem:[#allocation9 + $0x10] sm:$0xff]
    %v1138 = vld [vmem:[#allocation9 + $0x18] sm:$0xff]
    %v1139 = vld [vmem:[#allocation9 + $0x20] sm:$0xff]
    %v1140 = vld [vmem:[#allocation9 + $0x28] sm:$0xff]
    %v1141 = vld [vmem:[#allocation9 + $0x30] sm:$0xff]
    %v1142 = vld [vmem:[#allocation9 + $0x38] sm:$0xff]
    %v1143 = vld [vmem:[#allocation9 + $0x40] sm:$0xff]
    %v1144 = vld [vmem:[#allocation9 + $0x48] sm:$0xff]
    %v1145 = vld [vmem:[#allocation9 + $0x50] sm:$0xff]
    %v1146 = vld [vmem:[#allocation9 + $0x58] sm:$0xff]
    %v1147 = vld [vmem:[#allocation9 + $0x60] sm:$0xff]
    %v1148 = vld [vmem:[#allocation9 + $0x68] sm:$0xff]
    %v1149 = vld [vmem:[#allocation9 + $0x70] sm:$0xff]
    %v1150 = vld [vmem:[#allocation9 + $0x78] sm:$0xff]
    %v1151 = vld [vmem:[%s8] sm:$0x3]
    %v1152 = vld [vmem:[#allocation2] sm:$0x3]
    %v1153 = vld [vmem:[#allocation2 + $0x2] sm:$0x3]
    %v1154 = vld [vmem:[#allocation2 + $0x4] sm:$0x3]
    %v1155 = vld [vmem:[#allocation2 + $0x6] sm:$0x3]
    %v1156 = vld [vmem:[#allocation2 + $0x8] sm:$0x3]
    %v1157 = vld [vmem:[#allocation2 + $0xa] sm:$0x3]
    %v1158 = vld [vmem:[#allocation2 + $0xc] sm:$0x3]
    %v1159 = vld [vmem:[#allocation2 + $0xe] sm:$0x3]
    %v1160 = vld [vmem:[#allocation3] sm:$0x3]
    %v1161 = vld [vmem:[#allocation3 + $0x2] sm:$0x3]
    %v1162 = vld [vmem:[#allocation3 + $0x4] sm:$0x3]
    %v1163 = vld [vmem:[#allocation3 + $0x6] sm:$0x3]
    %v1164 = vld [vmem:[#allocation3 + $0x8] sm:$0x3]
    %v1165 = vld [vmem:[#allocation3 + $0xa] sm:$0x3]
    %v1166 = vld [vmem:[#allocation3 + $0xc] sm:$0x3]
    %v1167 = vld [vmem:[#allocation3 + $0xe] sm:$0x3]
    %1176 = vst [vmem:[#allocation1] ss:$4 sm:$0xff] %v1160
    %s1177 = scalar_lea.vmem [#allocation1], 1
    %1178 = vst [vmem:[%s1177] ss:$4 sm:$0xff] %v1161
    %s1179 = scalar_lea.vmem [#allocation1], 2
    %1180 = vst [vmem:[%s1179] ss:$4 sm:$0xff] %v1162
    %s1181 = scalar_lea.vmem [#allocation1], 3
    %1182 = vst [vmem:[%s1181] ss:$4 sm:$0xff] %v1163
    %s1183 = scalar_lea.vmem [#allocation1], 32
    %1184 = vst [vmem:[%s1183] ss:$4 sm:$0xff] %v1164
    %s1185 = scalar_lea.vmem [#allocation1], 33
    %1186 = vst [vmem:[%s1185] ss:$4 sm:$0xff] %v1165
    %s1187 = scalar_lea.vmem [#allocation1], 34
    %1188 = vst [vmem:[%s1187] ss:$4 sm:$0xff] %v1166
    %s1189 = scalar_lea.vmem [#allocation1], 35
    %1190 = vst [vmem:[%s1189] ss:$4 sm:$0xff] %v1167
    %v1191 = vld.sshfl [vmem:[#allocation1] sm:$0xff pattern:$0x73625140]
    %v1192 = vld.sshfl [vmem:[#allocation1 + $0x20] sm:$0xff pattern:$0x73625140]
    %v1193 = vsel %vm184, %v1191, 0
    %v1195 = vsel %vm184, %v1192, 0
    %1197 = vmatpush.msra.mxu0 0.0
    %1198 = vmatpush.msra.mxu0 0.0
    %1199 = vmatpush.msra.mxu0 0.0
    %1200 = vmatpush.msra.mxu0 0.0
    %1201 = vmatpush.msra.mxu0 0.0
    %1202 = vmatpush.msra.mxu0 0.0
    %1203 = vmatpush.msra.mxu0 0.0
    %1204 = vmatpush.msra.mxu0 0.0
    %1205 = vmatpush.msra.mxu0 0.0
    %1206 = vmatpush.msra.mxu0 0.0
    %1207 = vmatpush.msra.mxu0 0.0
    %1208 = vmatpush.msra.mxu0 0.0
    %1209 = vmatpush.msra.mxu0 %v1133
    %1210 = vmatpush.msra.mxu0 %v1131
    %1211 = vmatpush.msra.mxu0 %v1129
    %1212 = vmatpush.msra.mxu0 %v1127
    %1213 = vmatmul.f32.gmra.mxu0 %v1193
    %v1214 = vpop.f32.mrf.mxu0
    %v1215 = vadd.f32 0.0, %v1214
    %1216 = vmatmul.f32.gmra.mxu0 %v1195
    %v1217 = vpop.f32.mrf.mxu0
    %v1218 = vadd.f32 0.0, %v1217
    %1219 = vdwg.mxu0
    %1220 = vmatpush.msra.mxu0 0.0
    %1221 = vmatpush.msra.mxu0 0.0
    %1222 = vmatpush.msra.mxu0 0.0
    %1223 = vmatpush.msra.mxu0 0.0
    %1224 = vmatpush.msra.mxu0 0.0
    %1225 = vmatpush.msra.mxu0 0.0
    %1226 = vmatpush.msra.mxu0 0.0
    %1227 = vmatpush.msra.mxu0 0.0
    %1228 = vmatpush.msra.mxu0 0.0
    %1229 = vmatpush.msra.mxu0 0.0
    %1230 = vmatpush.msra.mxu0 0.0
    %1231 = vmatpush.msra.mxu0 0.0
    %1232 = vmatpush.msra.mxu0 %v1134
    %1233 = vmatpush.msra.mxu0 %v1132
    %1234 = vmatpush.msra.mxu0 %v1130
    %1235 = vmatpush.msra.mxu0 %v1128
    %1236 = vmatmul.f32.gmra.mxu0 %v1193
    %v1237 = vpop.f32.mrf.mxu0
    %v1238 = vadd.f32 0.0, %v1237
    %1239 = vmatmul.f32.gmra.mxu0 %v1195
    %v1240 = vpop.f32.mrf.mxu0
    %v1241 = vadd.f32 0.0, %v1240
    %1242 = vdwg.mxu0
    %1251 = vst [vmem:[#allocation1] ss:$4 sm:$0xff] %v1152
    %s1252 = scalar_lea.vmem [#allocation1], 1
    %1253 = vst [vmem:[%s1252] ss:$4 sm:$0xff] %v1153
    %s1254 = scalar_lea.vmem [#allocation1], 2
    %1255 = vst [vmem:[%s1254] ss:$4 sm:$0xff] %v1154
    %s1256 = scalar_lea.vmem [#allocation1], 3
    %1257 = vst [vmem:[%s1256] ss:$4 sm:$0xff] %v1155
    %s1258 = scalar_lea.vmem [#allocation1], 32
    %1259 = vst [vmem:[%s1258] ss:$4 sm:$0xff] %v1156
    %s1260 = scalar_lea.vmem [#allocation1], 33
    %1261 = vst [vmem:[%s1260] ss:$4 sm:$0xff] %v1157
    %s1262 = scalar_lea.vmem [#allocation1], 34
    %1263 = vst [vmem:[%s1262] ss:$4 sm:$0xff] %v1158
    %s1264 = scalar_lea.vmem [#allocation1], 35
    %1265 = vst [vmem:[%s1264] ss:$4 sm:$0xff] %v1159
    %v1266 = vld.sshfl [vmem:[#allocation1] sm:$0xff pattern:$0x73625140]
    %v1267 = vld.sshfl [vmem:[#allocation1 + $0x20] sm:$0xff pattern:$0x73625140]
    %v1268 = vsel %vm184, %v1266, 0
    %v1270 = vsel %vm184, %v1267, 0
    %1272 = vmatpush.msra.mxu0 0.0
    %1273 = vmatpush.msra.mxu0 0.0
    %1274 = vmatpush.msra.mxu0 0.0
    %1275 = vmatpush.msra.mxu0 0.0
    %1276 = vmatpush.msra.mxu0 0.0
    %1277 = vmatpush.msra.mxu0 0.0
    %1278 = vmatpush.msra.mxu0 0.0
    %1279 = vmatpush.msra.mxu0 0.0
    %1280 = vmatpush.msra.mxu0 0.0
    %1281 = vmatpush.msra.mxu0 0.0
    %1282 = vmatpush.msra.mxu0 0.0
    %1283 = vmatpush.msra.mxu0 0.0
    %1284 = vmatpush.msra.mxu0 %v1125
    %1285 = vmatpush.msra.mxu0 %v1123
    %1286 = vmatpush.msra.mxu0 %v1121
    %1287 = vmatpush.msra.mxu0 %v1119
    %1288 = vmatmul.f32.gmra.mxu0 %v1268
    %v1289 = vpop.f32.mrf.mxu0
    %v1290 = vadd.f32 %v1215, %v1289
    %1291 = vmatmul.f32.gmra.mxu0 %v1270
    %v1292 = vpop.f32.mrf.mxu0
    %v1293 = vadd.f32 %v1218, %v1292
    %1294 = vdwg.mxu0
    %1295 = vmatpush.msra.mxu0 0.0
    %1296 = vmatpush.msra.mxu0 0.0
    %1297 = vmatpush.msra.mxu0 0.0
    %1298 = vmatpush.msra.mxu0 0.0
    %1299 = vmatpush.msra.mxu0 0.0
    %1300 = vmatpush.msra.mxu0 0.0
    %1301 = vmatpush.msra.mxu0 0.0
    %1302 = vmatpush.msra.mxu0 0.0
    %1303 = vmatpush.msra.mxu0 0.0
    %1304 = vmatpush.msra.mxu0 0.0
    %1305 = vmatpush.msra.mxu0 0.0
    %1306 = vmatpush.msra.mxu0 0.0
    %1307 = vmatpush.msra.mxu0 %v1126
    %1308 = vmatpush.msra.mxu0 %v1124
    %1309 = vmatpush.msra.mxu0 %v1122
    %1310 = vmatpush.msra.mxu0 %v1120
    %1311 = vmatmul.f32.gmra.mxu0 %v1268
    %v1312 = vpop.f32.mrf.mxu0
    %v1313 = vadd.f32 %v1238, %v1312
    %1314 = vmatmul.f32.gmra.mxu0 %v1270
    %v1315 = vpop.f32.mrf.mxu0
    %v1316 = vadd.f32 %v1241, %v1315
    %1317 = vdwg.mxu0
    %v1319 = vperm.slane %v1151, 0
    %v1320 = vperm.slane %v1151, 1
    %v1323 = vadd.f32 %v1290, %v1319
    %v1324 = vadd.f32 %v1313, %v1320
    %v1325 = vadd.f32 %v1293, %v1319
    %v1326 = vadd.f32 %v1316, %v1320
    %1327 = vst [vmem:[#allocation1] ss:$4 sm:$0xff] %v1160
    %s1328 = scalar_lea.vmem [#allocation1], 1
    %1329 = vst [vmem:[%s1328] ss:$4 sm:$0xff] %v1161
    %s1330 = scalar_lea.vmem [#allocation1], 2
    %1331 = vst [vmem:[%s1330] ss:$4 sm:$0xff] %v1162
    %s1332 = scalar_lea.vmem [#allocation1], 3
    %1333 = vst [vmem:[%s1332] ss:$4 sm:$0xff] %v1163
    %s1334 = scalar_lea.vmem [#allocation1], 32
    %1335 = vst [vmem:[%s1334] ss:$4 sm:$0xff] %v1164
    %s1336 = scalar_lea.vmem [#allocation1], 33
    %1337 = vst [vmem:[%s1336] ss:$4 sm:$0xff] %v1165
    %s1338 = scalar_lea.vmem [#allocation1], 34
    %1339 = vst [vmem:[%s1338] ss:$4 sm:$0xff] %v1166
    %s1340 = scalar_lea.vmem [#allocation1], 35
    %1341 = vst [vmem:[%s1340] ss:$4 sm:$0xff] %v1167
    %v1342 = vld.sshfl [vmem:[#allocation1] sm:$0xff pattern:$0x73625140]
    %v1343 = vld.sshfl [vmem:[#allocation1 + $0x20] sm:$0xff pattern:$0x73625140]
    %v1344 = vsel %vm184, %v1342, 0
    %v1346 = vsel %vm184, %v1343, 0
    %1348 = vmatpush.msra.mxu0 0.0
    %1349 = vmatpush.msra.mxu0 0.0
    %1350 = vmatpush.msra.mxu0 0.0
    %1351 = vmatpush.msra.mxu0 0.0
    %1352 = vmatpush.msra.mxu0 0.0
    %1353 = vmatpush.msra.mxu0 0.0
    %1354 = vmatpush.msra.mxu0 0.0
    %1355 = vmatpush.msra.mxu0 0.0
    %1356 = vmatpush.msra.mxu0 0.0
    %1357 = vmatpush.msra.mxu0 0.0
    %1358 = vmatpush.msra.mxu0 0.0
    %1359 = vmatpush.msra.mxu0 0.0
    %1360 = vmatpush.msra.mxu0 %v1149
    %1361 = vmatpush.msra.mxu0 %v1147
    %1362 = vmatpush.msra.mxu0 %v1145
    %1363 = vmatpush.msra.mxu0 %v1143
    %1364 = vmatmul.f32.gmra.mxu0 %v1344
    %v1365 = vpop.f32.mrf.mxu0
    %v1366 = vadd.f32 0.0, %v1365
    %1367 = vmatmul.f32.gmra.mxu0 %v1346
    %v1368 = vpop.f32.mrf.mxu0
    %v1369 = vadd.f32 0.0, %v1368
    %1370 = vdwg.mxu0
    %1371 = vmatpush.msra.mxu0 0.0
    %1372 = vmatpush.msra.mxu0 0.0
    %1373 = vmatpush.msra.mxu0 0.0
    %1374 = vmatpush.msra.mxu0 0.0
    %1375 = vmatpush.msra.mxu0 0.0
    %1376 = vmatpush.msra.mxu0 0.0
    %1377 = vmatpush.msra.mxu0 0.0
    %1378 = vmatpush.msra.mxu0 0.0
    %1379 = vmatpush.msra.mxu0 0.0
    %1380 = vmatpush.msra.mxu0 0.0
    %1381 = vmatpush.msra.mxu0 0.0
    %1382 = vmatpush.msra.mxu0 0.0
    %1383 = vmatpush.msra.mxu0 %v1150
    %1384 = vmatpush.msra.mxu0 %v1148
    %1385 = vmatpush.msra.mxu0 %v1146
    %1386 = vmatpush.msra.mxu0 %v1144
    %1387 = vmatmul.f32.gmra.mxu0 %v1344
    %v1388 = vpop.f32.mrf.mxu0
    %v1389 = vadd.f32 0.0, %v1388
    %1390 = vmatmul.f32.gmra.mxu0 %v1346
    %v1391 = vpop.f32.mrf.mxu0
    %v1392 = vadd.f32 0.0, %v1391
    %1393 = vdwg.mxu0
    %1394 = vst [vmem:[#allocation1] ss:$4 sm:$0xff] %v1152
    %s1395 = scalar_lea.vmem [#allocation1], 1
    %1396 = vst [vmem:[%s1395] ss:$4 sm:$0xff] %v1153
    %s1397 = scalar_lea.vmem [#allocation1], 2
    %1398 = vst [vmem:[%s1397] ss:$4 sm:$0xff] %v1154
    %s1399 = scalar_lea.vmem [#allocation1], 3
    %1400 = vst [vmem:[%s1399] ss:$4 sm:$0xff] %v1155
    %s1401 = scalar_lea.vmem [#allocation1], 32
    %1402 = vst [vmem:[%s1401] ss:$4 sm:$0xff] %v1156
    %s1403 = scalar_lea.vmem [#allocation1], 33
    %1404 = vst [vmem:[%s1403] ss:$4 sm:$0xff] %v1157
    %s1405 = scalar_lea.vmem [#allocation1], 34
    %1406 = vst [vmem:[%s1405] ss:$4 sm:$0xff] %v1158
    %s1407 = scalar_lea.vmem [#allocation1], 35
    %1408 = vst [vmem:[%s1407] ss:$4 sm:$0xff] %v1159
    %v1409 = vld.sshfl [vmem:[#allocation1] sm:$0xff pattern:$0x73625140]
    %v1410 = vld.sshfl [vmem:[#allocation1 + $0x20] sm:$0xff pattern:$0x73625140]
    %v1411 = vsel %vm184, %v1409, 0
    %v1413 = vsel %vm184, %v1410, 0
    %1415 = vmatpush.msra.mxu0 0.0
    %1416 = vmatpush.msra.mxu0 0.0
    %1417 = vmatpush.msra.mxu0 0.0
    %1418 = vmatpush.msra.mxu0 0.0
    %1419 = vmatpush.msra.mxu0 0.0
    %1420 = vmatpush.msra.mxu0 0.0
    %1421 = vmatpush.msra.mxu0 0.0
    %1422 = vmatpush.msra.mxu0 0.0
    %1423 = vmatpush.msra.mxu0 0.0
    %1424 = vmatpush.msra.mxu0 0.0
    %1425 = vmatpush.msra.mxu0 0.0
    %1426 = vmatpush.msra.mxu0 0.0
    %1427 = vmatpush.msra.mxu0 %v1141
    %1428 = vmatpush.msra.mxu0 %v1139
    %1429 = vmatpush.msra.mxu0 %v1137
    %1430 = vmatpush.msra.mxu0 %v1135
    %1431 = vmatmul.f32.gmra.mxu0 %v1411
    %v1432 = vpop.f32.mrf.mxu0
    %v1433 = vadd.f32 %v1366, %v1432
    %1434 = vmatmul.f32.gmra.mxu0 %v1413
    %v1435 = vpop.f32.mrf.mxu0
    %v1436 = vadd.f32 %v1369, %v1435
    %1437 = vdwg.mxu0
    %1438 = vmatpush.msra.mxu0 0.0
    %1439 = vmatpush.msra.mxu0 0.0
    %1440 = vmatpush.msra.mxu0 0.0
    %1441 = vmatpush.msra.mxu0 0.0
    %1442 = vmatpush.msra.mxu0 0.0
    %1443 = vmatpush.msra.mxu0 0.0
    %1444 = vmatpush.msra.mxu0 0.0
    %1445 = vmatpush.msra.mxu0 0.0
    %1446 = vmatpush.msra.mxu0 0.0
    %1447 = vmatpush.msra.mxu0 0.0
    %1448 = vmatpush.msra.mxu0 0.0
    %1449 = vmatpush.msra.mxu0 0.0
    %1450 = vmatpush.msra.mxu0 %v1142
    %1451 = vmatpush.msra.mxu0 %v1140
    %1452 = vmatpush.msra.mxu0 %v1138
    %1453 = vmatpush.msra.mxu0 %v1136
    %1454 = vmatmul.f32.gmra.mxu0 %v1411
    %v1455 = vpop.f32.mrf.mxu0
    %v1456 = vadd.f32 %v1389, %v1455
    %1457 = vmatmul.f32.gmra.mxu0 %v1413
    %v1458 = vpop.f32.mrf.mxu0
    %v1459 = vadd.f32 %v1392, %v1458
    %1460 = vdwg.mxu0
    %v1465 = vrot.slane %v1324, 6
    %v1466 = vrot.slane %v1326, 6
    %v1467 = vsel %vm308, %v1323, %v1465
    %v1468 = vsel %vm310, %v1323, %v1465
    %v1469 = vrot.slane %v1468, 2
    %v1470 = vsel %vm313, %v1323, %v1465
    %v1471 = vrot.slane %v1470, 4
    %v1472 = vsel %vm316, %v1465, %v1323
    %v1473 = vrot.slane %v1472, 6
    %v1474 = vsel %vm308, %v1325, %v1466
    %v1475 = vsel %vm310, %v1325, %v1466
    %v1476 = vrot.slane %v1475, 2
    %v1477 = vsel %vm313, %v1325, %v1466
    %v1478 = vrot.slane %v1477, 4
    %v1479 = vsel %vm316, %v1466, %v1325
    %v1480 = vrot.slane %v1479, 6
    %v1493 = vrot.slane %v1456, 6
    %v1494 = vrot.slane %v1459, 6
    %v1495 = vsel %vm308, %v1433, %v1493
    %v1496 = vsel %vm310, %v1433, %v1493
    %v1497 = vrot.slane %v1496, 2
    %v1498 = vsel %vm313, %v1433, %v1493
    %v1499 = vrot.slane %v1498, 4
    %v1500 = vsel %vm316, %v1493, %v1433
    %v1501 = vrot.slane %v1500, 6
    %v1502 = vsel %vm308, %v1436, %v1494
    %v1503 = vsel %vm310, %v1436, %v1494
    %v1504 = vrot.slane %v1503, 2
    %v1505 = vsel %vm313, %v1436, %v1494
    %v1506 = vrot.slane %v1505, 4
    %v1507 = vsel %vm316, %v1494, %v1436
    %v1508 = vrot.slane %v1507, 6
    %v1517 = vld [vmem:[#allocation10] sm:$0xff]
    %v1518 = vld [vmem:[#allocation10 + $0x8] sm:$0xff]
    %v1519 = vld [vmem:[#allocation10 + $0x10] sm:$0xff]
    %v1520 = vld [vmem:[#allocation10 + $0x18] sm:$0xff]
    %v1521 = vld [vmem:[#allocation10 + $0x20] sm:$0xff]
    %v1522 = vld [vmem:[#allocation10 + $0x28] sm:$0xff]
    %v1523 = vld [vmem:[#allocation10 + $0x30] sm:$0xff]
    %v1524 = vld [vmem:[#allocation10 + $0x38] sm:$0xff]
    %v1525 = vld [vmem:[#allocation10 + $0x40] sm:$0xff]
    %v1526 = vld [vmem:[#allocation10 + $0x48] sm:$0xff]
    %v1527 = vld [vmem:[#allocation10 + $0x50] sm:$0xff]
    %v1528 = vld [vmem:[#allocation10 + $0x58] sm:$0xff]
    %v1529 = vld [vmem:[#allocation10 + $0x60] sm:$0xff]
    %v1530 = vld [vmem:[#allocation10 + $0x68] sm:$0xff]
    %v1531 = vld [vmem:[#allocation10 + $0x70] sm:$0xff]
    %v1532 = vld [vmem:[#allocation10 + $0x78] sm:$0xff]
    %s1533 = scalar_lea.vmem %s1, 2
    %v1534 = vld [vmem:[%s1533] sm:$0x3]
    %v1535 = vadd.f32 %v1467, %v1508
    %v1537 = vsel %vm380, %v1534, 0
    %1539 = vmatpush.msra.mxu0 0.0
    %1540 = vmatpush.msra.mxu0 0.0
    %1541 = vmatpush.msra.mxu0 0.0
    %1542 = vmatpush.msra.mxu0 0.0
    %1543 = vmatpush.msra.mxu0 0.0
    %1544 = vmatpush.msra.mxu0 0.0
    %1545 = vmatpush.msra.mxu0 0.0
    %1546 = vmatpush.msra.mxu0 0.0
    %1547 = vmatpush.msra.mxu0 %v1531
    %1548 = vmatpush.msra.mxu0 %v1529
    %1549 = vmatpush.msra.mxu0 %v1527
    %1550 = vmatpush.msra.mxu0 %v1525
    %1551 = vmatpush.msra.mxu0 %v1523
    %1552 = vmatpush.msra.mxu0 %v1521
    %1553 = vmatpush.msra.mxu0 %v1519
    %1554 = vmatpush.msra.mxu0 %v1517
    %1555 = vmatmul.f32.gmra.mxu0 %v1537
    %v1556 = vpop.f32.mrf.mxu0
    %v1557 = vadd.f32 0.0, %v1556
    %1558 = vdwg.mxu0
    %1559 = vmatpush.msra.mxu0 0.0
    %1560 = vmatpush.msra.mxu0 0.0
    %1561 = vmatpush.msra.mxu0 0.0
    %1562 = vmatpush.msra.mxu0 0.0
    %1563 = vmatpush.msra.mxu0 0.0
    %1564 = vmatpush.msra.mxu0 0.0
    %1565 = vmatpush.msra.mxu0 0.0
    %1566 = vmatpush.msra.mxu0 0.0
    %1567 = vmatpush.msra.mxu0 %v1532
    %1568 = vmatpush.msra.mxu0 %v1530
    %1569 = vmatpush.msra.mxu0 %v1528
    %1570 = vmatpush.msra.mxu0 %v1526
    %1571 = vmatpush.msra.mxu0 %v1524
    %1572 = vmatpush.msra.mxu0 %v1522
    %1573 = vmatpush.msra.mxu0 %v1520
    %1574 = vmatpush.msra.mxu0 %v1518
    %1575 = vmatmul.f32.gmra.mxu0 %v1537
    %v1576 = vpop.f32.mrf.mxu0
    %v1577 = vadd.f32 0.0, %v1576
    %1578 = vdwg.mxu0
    %v1581 = vrot.slane %v1577, 6
    %v1582 = vsel %vm308, %v1557, %v1581
    %v1584 = vadd.f32 %v1535, %v1582
    %v1585 = vmul.f32 %v1584, 0.5
    %1587 = vst [vmem:[#allocation1] ss:$4 sm:$0xff] %v1584
    %v1588 = vld.sshfl [vmem:[#allocation1] sm:$0xff pattern:$0x73625140]
    %v1589 = vld.sshfl [vmem:[#allocation1 + $0x8] sm:$0xff pattern:$0x73625140]
    %1593 = vst [vmem:[#allocation1] ss:$4 sm:$0xff] %v1585
    %v1594 = vld.sshfl [vmem:[#allocation1] sm:$0xff pattern:$0x73625140]
    %v1595 = vld.sshfl [vmem:[#allocation1 + $0x8] sm:$0xff pattern:$0x73625140]
    %v1598 = vsel %vm127, %v1588, %v1594
    %v1599 = vsel %vm128, %v1589, %v1595
    %v1600 = vtanh.pop %v1598
    %v1601 = vtanh.pop %v1599
    %v1602 = vadd.f32 %v1600, 1.0
    %v1603 = vadd.f32 %v1601, 1.0
    %v1604 = vmul.f32 %v1602, 0.5
    %v1605 = vmul.f32 %v1603, 0.5
    %v1606 = vsel %vm127, %v1600, %v1604
    %v1607 = vsel %vm128, %v1601, %v1605
    %1608 = vrot.lane.b32.xlu0 %v1534, 64
    %v1609 = vpop.permute.xlu0 %1608
    %v1611 = vmul.f32 %v1606, %v1609
    %v1612 = vmul.f32 %v1606, %v1607
    %1614 = vrot.lane.b32.xlu0 %v1612, 64
    %v1615 = vpop.permute.xlu0 %1614
    %v1617 = vadd.f32 %v1611, %v1615
    %v1618 = vtanh.pop %v1617
    %v1619 = vmul.f32 %v1607, %v1618
    %v1620 = vmax.f32 %v1619, 0.0
    %v1621 = vmax.f32 %v1620, 0.0
    %v1622 = vadd.f32 %v1469, %v1506
    %1624 = vrot.lane.b32.xlu0 %v1619, 64
    %v1625 = vpop.permute.xlu0 %1624
    %v1626 = vsel %vm380, %v1625, 0
    %1628 = vmatpush.msra.mxu0 0.0
    %1629 = vmatpush.msra.mxu0 0.0
    %1630 = vmatpush.msra.mxu0 0.0
    %1631 = vmatpush.msra.mxu0 0.0
    %1632 = vmatpush.msra.mxu0 0.0
    %1633 = vmatpush.msra.mxu0 0.0
    %1634 = vmatpush.msra.mxu0 0.0
    %1635 = vmatpush.msra.mxu0 0.0
    %1636 = vmatpush.msra.mxu0 %v1531
    %1637 = vmatpush.msra.mxu0 %v1529
    %1638 = vmatpush.msra.mxu0 %v1527
    %1639 = vmatpush.msra.mxu0 %v1525
    %1640 = vmatpush.msra.mxu0 %v1523
    %1641 = vmatpush.msra.mxu0 %v1521
    %1642 = vmatpush.msra.mxu0 %v1519
    %1643 = vmatpush.msra.mxu0 %v1517
    %1644 = vmatmul.f32.gmra.mxu0 %v1626
    %v1645 = vpop.f32.mrf.mxu0
    %v1646 = vadd.f32 0.0, %v1645
    %1647 = vdwg.mxu0
    %1648 = vmatpush.msra.mxu0 0.0
    %1649 = vmatpush.msra.mxu0 0.0
    %1650 = vmatpush.msra.mxu0 0.0
    %1651 = vmatpush.msra.mxu0 0.0
    %1652 = vmatpush.msra.mxu0 0.0
    %1653 = vmatpush.msra.mxu0 0.0
    %1654 = vmatpush.msra.mxu0 0.0
    %1655 = vmatpush.msra.mxu0 0.0
    %1656 = vmatpush.msra.mxu0 %v1532
    %1657 = vmatpush.msra.mxu0 %v1530
    %1658 = vmatpush.msra.mxu0 %v1528
    %1659 = vmatpush.msra.mxu0 %v1526
    %1660 = vmatpush.msra.mxu0 %v1524
    %1661 = vmatpush.msra.mxu0 %v1522
    %1662 = vmatpush.msra.mxu0 %v1520
    %1663 = vmatpush.msra.mxu0 %v1518
    %1664 = vmatmul.f32.gmra.mxu0 %v1626
    %v1665 = vpop.f32.mrf.mxu0
    %v1666 = vadd.f32 0.0, %v1665
    %1667 = vdwg.mxu0
    %v1670 = vrot.slane %v1666, 6
    %v1671 = vsel %vm308, %v1646, %v1670
    %v1673 = vadd.f32 %v1622, %v1671
    %v1674 = vmul.f32 %v1673, 0.5
    %1676 = vst [vmem:[#allocation1] ss:$4 sm:$0xff] %v1673
    %v1677 = vld.sshfl [vmem:[#allocation1] sm:$0xff pattern:$0x73625140]
    %v1678 = vld.sshfl [vmem:[#allocation1 + $0x8] sm:$0xff pattern:$0x73625140]
    %1682 = vst [vmem:[#allocation1] ss:$4 sm:$0xff] %v1674
    %v1683 = vld.sshfl [vmem:[#allocation1] sm:$0xff pattern:$0x73625140]
    %v1684 = vld.sshfl [vmem:[#allocation1 + $0x8] sm:$0xff pattern:$0x73625140]
    %v1687 = vsel %vm127, %v1677, %v1683
    %v1688 = vsel %vm128, %v1678, %v1684
    %v1689 = vtanh.pop %v1687
    %v1690 = vtanh.pop %v1688
    %v1691 = vadd.f32 %v1689, 1.0
    %v1692 = vadd.f32 %v1690, 1.0
    %v1693 = vmul.f32 %v1691, 0.5
    %v1694 = vmul.f32 %v1692, 0.5
    %v1695 = vsel %vm127, %v1689, %v1693
    %v1696 = vsel %vm128, %v1690, %v1694
    %v1697 = vmul.f32 %v1695, %v1617
    %v1698 = vmul.f32 %v1695, %v1696
    %1700 = vrot.lane.b32.xlu0 %v1698, 64
    %v1701 = vpop.permute.xlu0 %1700
    %v1703 = vadd.f32 %v1697, %v1701
    %v1704 = vtanh.pop %v1703
    %v1705 = vmul.f32 %v1696, %v1704
    %v1706 = vmax.f32 %v1705, 0.0
    %v1707 = vmax.f32 %v1621, %v1706
    %v1708 = vadd.f32 %v1471, %v1504
    %1710 = vrot.lane.b32.xlu0 %v1705, 64
    %v1711 = vpop.permute.xlu0 %1710
    %v1712 = vsel %vm380, %v1711, 0
    %1714 = vmatpush.msra.mxu0 0.0
    %1715 = vmatpush.msra.mxu0 0.0
    %1716 = vmatpush.msra.mxu0 0.0
    %1717 = vmatpush.msra.mxu0 0.0
    %1718 = vmatpush.msra.mxu0 0.0
    %1719 = vmatpush.msra.mxu0 0.0
    %1720 = vmatpush.msra.mxu0 0.0
    %1721 = vmatpush.msra.mxu0 0.0
    %1722 = vmatpush.msra.mxu0 %v1531
    %1723 = vmatpush.msra.mxu0 %v1529
    %1724 = vmatpush.msra.mxu0 %v1527
    %1725 = vmatpush.msra.mxu0 %v1525
    %1726 = vmatpush.msra.mxu0 %v1523
    %1727 = vmatpush.msra.mxu0 %v1521
    %1728 = vmatpush.msra.mxu0 %v1519
    %1729 = vmatpush.msra.mxu0 %v1517
    %1730 = vmatmul.f32.gmra.mxu0 %v1712
    %v1731 = vpop.f32.mrf.mxu0
    %v1732 = vadd.f32 0.0, %v1731
    %1733 = vdwg.mxu0
    %1734 = vmatpush.msra.mxu0 0.0
    %1735 = vmatpush.msra.mxu0 0.0
    %1736 = vmatpush.msra.mxu0 0.0
    %1737 = vmatpush.msra.mxu0 0.0
    %1738 = vmatpush.msra.mxu0 0.0
    %1739 = vmatpush.msra.mxu0 0.0
    %1740 = vmatpush.msra.mxu0 0.0
    %1741 = vmatpush.msra.mxu0 0.0
    %1742 = vmatpush.msra.mxu0 %v1532
    %1743 = vmatpush.msra.mxu0 %v1530
    %1744 = vmatpush.msra.mxu0 %v1528
    %1745 = vmatpush.msra.mxu0 %v1526
    %1746 = vmatpush.msra.mxu0 %v1524
    %1747 = vmatpush.msra.mxu0 %v1522
    %1748 = vmatpush.msra.mxu0 %v1520
    %1749 = vmatpush.msra.mxu0 %v1518
    %1750 = vmatmul.f32.gmra.mxu0 %v1712
    %v1751 = vpop.f32.mrf.mxu0
    %v1752 = vadd.f32 0.0, %v1751
    %1753 = vdwg.mxu0
    %v1756 = vrot.slane %v1752, 6
    %v1757 = vsel %vm308, %v1732, %v1756
    %v1759 = vadd.f32 %v1708, %v1757
    %v1760 = vmul.f32 %v1759, 0.5
    %1762 = vst [vmem:[#allocation1] ss:$4 sm:$0xff] %v1759
    %v1763 = vld.sshfl [vmem:[#allocation1] sm:$0xff pattern:$0x73625140]
    %v1764 = vld.sshfl [vmem:[#allocation1 + $0x8] sm:$0xff pattern:$0x73625140]
    %1768 = vst [vmem:[#allocation1] ss:$4 sm:$0xff] %v1760
    %v1769 = vld.sshfl [vmem:[#allocation1] sm:$0xff pattern:$0x73625140]
    %v1770 = vld.sshfl [vmem:[#allocation1 + $0x8] sm:$0xff pattern:$0x73625140]
    %v1773 = vsel %vm127, %v1763, %v1769
    %v1774 = vsel %vm128, %v1764, %v1770
    %v1775 = vtanh.pop %v1773
    %v1776 = vtanh.pop %v1774
    %v1777 = vadd.f32 %v1775, 1.0
    %v1778 = vadd.f32 %v1776, 1.0
    %v1779 = vmul.f32 %v1777, 0.5
    %v1780 = vmul.f32 %v1778, 0.5
    %v1781 = vsel %vm127, %v1775, %v1779
    %v1782 = vsel %vm128, %v1776, %v1780
    %v1783 = vmul.f32 %v1781, %v1703
    %v1784 = vmul.f32 %v1781, %v1782
    %1786 = vrot.lane.b32.xlu0 %v1784, 64
    %v1787 = vpop.permute.xlu0 %1786
    %v1789 = vadd.f32 %v1783, %v1787
    %v1790 = vtanh.pop %v1789
    %v1791 = vmul.f32 %v1782, %v1790
    %v1792 = vmax.f32 %v1791, 0.0
    %v1793 = vmax.f32 %v1707, %v1792
    %v1794 = vadd.f32 %v1473, %v1502
    %1796 = vrot.lane.b32.xlu0 %v1791, 64
    %v1797 = vpop.permute.xlu0 %1796
    %v1798 = vsel %vm380, %v1797, 0
    %1800 = vmatpush.msra.mxu0 0.0
    %1801 = vmatpush.msra.mxu0 0.0
    %1802 = vmatpush.msra.mxu0 0.0
    %1803 = vmatpush.msra.mxu0 0.0
    %1804 = vmatpush.msra.mxu0 0.0
    %1805 = vmatpush.msra.mxu0 0.0
    %1806 = vmatpush.msra.mxu0 0.0
    %1807 = vmatpush.msra.mxu0 0.0
    %1808 = vmatpush.msra.mxu0 %v1531
    %1809 = vmatpush.msra.mxu0 %v1529
    %1810 = vmatpush.msra.mxu0 %v1527
    %1811 = vmatpush.msra.mxu0 %v1525
    %1812 = vmatpush.msra.mxu0 %v1523
    %1813 = vmatpush.msra.mxu0 %v1521
    %1814 = vmatpush.msra.mxu0 %v1519
    %1815 = vmatpush.msra.mxu0 %v1517
    %1816 = vmatmul.f32.gmra.mxu0 %v1798
    %v1817 = vpop.f32.mrf.mxu0
    %v1818 = vadd.f32 0.0, %v1817
    %1819 = vdwg.mxu0
    %1820 = vmatpush.msra.mxu0 0.0
    %1821 = vmatpush.msra.mxu0 0.0
    %1822 = vmatpush.msra.mxu0 0.0
    %1823 = vmatpush.msra.mxu0 0.0
    %1824 = vmatpush.msra.mxu0 0.0
    %1825 = vmatpush.msra.mxu0 0.0
    %1826 = vmatpush.msra.mxu0 0.0
    %1827 = vmatpush.msra.mxu0 0.0
    %1828 = vmatpush.msra.mxu0 %v1532
    %1829 = vmatpush.msra.mxu0 %v1530
    %1830 = vmatpush.msra.mxu0 %v1528
    %1831 = vmatpush.msra.mxu0 %v1526
    %1832 = vmatpush.msra.mxu0 %v1524
    %1833 = vmatpush.msra.mxu0 %v1522
    %1834 = vmatpush.msra.mxu0 %v1520
    %1835 = vmatpush.msra.mxu0 %v1518
    %1836 = vmatmul.f32.gmra.mxu0 %v1798
    %v1837 = vpop.f32.mrf.mxu0
    %v1838 = vadd.f32 0.0, %v1837
    %1839 = vdwg.mxu0
    %v1842 = vrot.slane %v1838, 6
    %v1843 = vsel %vm308, %v1818, %v1842
    %v1845 = vadd.f32 %v1794, %v1843
    %v1846 = vmul.f32 %v1845, 0.5
    %1848 = vst [vmem:[#allocation1] ss:$4 sm:$0xff] %v1845
    %v1849 = vld.sshfl [vmem:[#allocation1] sm:$0xff pattern:$0x73625140]
    %v1850 = vld.sshfl [vmem:[#allocation1 + $0x8] sm:$0xff pattern:$0x73625140]
    %1854 = vst [vmem:[#allocation1] ss:$4 sm:$0xff] %v1846
    %v1855 = vld.sshfl [vmem:[#allocation1] sm:$0xff pattern:$0x73625140]
    %v1856 = vld.sshfl [vmem:[#allocation1 + $0x8] sm:$0xff pattern:$0x73625140]
    %v1859 = vsel %vm127, %v1849, %v1855
    %v1860 = vsel %vm128, %v1850, %v1856
    %v1861 = vtanh.pop %v1859
    %v1862 = vtanh.pop %v1860
    %v1863 = vadd.f32 %v1861, 1.0
    %v1864 = vadd.f32 %v1862, 1.0
    %v1865 = vmul.f32 %v1863, 0.5
    %v1866 = vmul.f32 %v1864, 0.5
    %v1867 = vsel %vm127, %v1861, %v1865
    %v1868 = vsel %vm128, %v1862, %v1866
    %v1869 = vmul.f32 %v1867, %v1789
    %v1870 = vmul.f32 %v1867, %v1868
    %1872 = vrot.lane.b32.xlu0 %v1870, 64
    %v1873 = vpop.permute.xlu0 %1872
    %v1875 = vadd.f32 %v1869, %v1873
    %v1876 = vtanh.pop %v1875
    %v1877 = vmul.f32 %v1868, %v1876
    %v1878 = vmax.f32 %v1877, 0.0
    %v1879 = vmax.f32 %v1793, %v1878
    %v1880 = vadd.f32 %v1474, %v1501
    %1882 = vrot.lane.b32.xlu0 %v1877, 64
    %v1883 = vpop.permute.xlu0 %1882
    %v1884 = vsel %vm380, %v1883, 0
    %1886 = vmatpush.msra.mxu0 0.0
    %1887 = vmatpush.msra.mxu0 0.0
    %1888 = vmatpush.msra.mxu0 0.0
    %1889 = vmatpush.msra.mxu0 0.0
    %1890 = vmatpush.msra.mxu0 0.0
    %1891 = vmatpush.msra.mxu0 0.0
    %1892 = vmatpush.msra.mxu0 0.0
    %1893 = vmatpush.msra.mxu0 0.0
    %1894 = vmatpush.msra.mxu0 %v1531
    %1895 = vmatpush.msra.mxu0 %v1529
    %1896 = vmatpush.msra.mxu0 %v1527
    %1897 = vmatpush.msra.mxu0 %v1525
    %1898 = vmatpush.msra.mxu0 %v1523
    %1899 = vmatpush.msra.mxu0 %v1521
    %1900 = vmatpush.msra.mxu0 %v1519
    %1901 = vmatpush.msra.mxu0 %v1517
    %1902 = vmatmul.f32.gmra.mxu0 %v1884
    %v1903 = vpop.f32.mrf.mxu0
    %v1904 = vadd.f32 0.0, %v1903
    %1905 = vdwg.mxu0
    %1906 = vmatpush.msra.mxu0 0.0
    %1907 = vmatpush.msra.mxu0 0.0
    %1908 = vmatpush.msra.mxu0 0.0
    %1909 = vmatpush.msra.mxu0 0.0
    %1910 = vmatpush.msra.mxu0 0.0
    %1911 = vmatpush.msra.mxu0 0.0
    %1912 = vmatpush.msra.mxu0 0.0
    %1913 = vmatpush.msra.mxu0 0.0
    %1914 = vmatpush.msra.mxu0 %v1532
    %1915 = vmatpush.msra.mxu0 %v1530
    %1916 = vmatpush.msra.mxu0 %v1528
    %1917 = vmatpush.msra.mxu0 %v1526
    %1918 = vmatpush.msra.mxu0 %v1524
    %1919 = vmatpush.msra.mxu0 %v1522
    %1920 = vmatpush.msra.mxu0 %v1520
    %1921 = vmatpush.msra.mxu0 %v1518
    %1922 = vmatmul.f32.gmra.mxu0 %v1884
    %v1923 = vpop.f32.mrf.mxu0
    %v1924 = vadd.f32 0.0, %v1923
    %1925 = vdwg.mxu0
    %v1928 = vrot.slane %v1924, 6
    %v1929 = vsel %vm308, %v1904, %v1928
    %v1931 = vadd.f32 %v1880, %v1929
    %v1932 = vmul.f32 %v1931, 0.5
    %1934 = vst [vmem:[#allocation1] ss:$4 sm:$0xff] %v1931
    %v1935 = vld.sshfl [vmem:[#allocation1] sm:$0xff pattern:$0x73625140]
    %v1936 = vld.sshfl [vmem:[#allocation1 + $0x8] sm:$0xff pattern:$0x73625140]
    %1940 = vst [vmem:[#allocation1] ss:$4 sm:$0xff] %v1932
    %v1941 = vld.sshfl [vmem:[#allocation1] sm:$0xff pattern:$0x73625140]
    %v1942 = vld.sshfl [vmem:[#allocation1 + $0x8] sm:$0xff pattern:$0x73625140]
    %v1945 = vsel %vm127, %v1935, %v1941
    %v1946 = vsel %vm128, %v1936, %v1942
    %v1947 = vtanh.pop %v1945
    %v1948 = vtanh.pop %v1946
    %v1949 = vadd.f32 %v1947, 1.0
    %v1950 = vadd.f32 %v1948, 1.0
    %v1951 = vmul.f32 %v1949, 0.5
    %v1952 = vmul.f32 %v1950, 0.5
    %v1953 = vsel %vm127, %v1947, %v1951
    %v1954 = vsel %vm128, %v1948, %v1952
    %v1955 = vmul.f32 %v1953, %v1875
    %v1956 = vmul.f32 %v1953, %v1954
    %1958 = vrot.lane.b32.xlu0 %v1956, 64
    %v1959 = vpop.permute.xlu0 %1958
    %v1961 = vadd.f32 %v1955, %v1959
    %v1962 = vtanh.pop %v1961
    %v1963 = vmul.f32 %v1954, %v1962
    %v1964 = vmax.f32 %v1963, 0.0
    %v1965 = vmax.f32 %v1879, %v1964
    %v1966 = vadd.f32 %v1476, %v1499
    %1968 = vrot.lane.b32.xlu0 %v1963, 64
    %v1969 = vpop.permute.xlu0 %1968
    %v1970 = vsel %vm380, %v1969, 0
    %1972 = vmatpush.msra.mxu0 0.0
    %1973 = vmatpush.msra.mxu0 0.0
    %1974 = vmatpush.msra.mxu0 0.0
    %1975 = vmatpush.msra.mxu0 0.0
    %1976 = vmatpush.msra.mxu0 0.0
    %1977 = vmatpush.msra.mxu0 0.0
    %1978 = vmatpush.msra.mxu0 0.0
    %1979 = vmatpush.msra.mxu0 0.0
    %1980 = vmatpush.msra.mxu0 %v1531
    %1981 = vmatpush.msra.mxu0 %v1529
    %1982 = vmatpush.msra.mxu0 %v1527
    %1983 = vmatpush.msra.mxu0 %v1525
    %1984 = vmatpush.msra.mxu0 %v1523
    %1985 = vmatpush.msra.mxu0 %v1521
    %1986 = vmatpush.msra.mxu0 %v1519
    %1987 = vmatpush.msra.mxu0 %v1517
    %1988 = vmatmul.f32.gmra.mxu0 %v1970
    %v1989 = vpop.f32.mrf.mxu0
    %v1990 = vadd.f32 0.0, %v1989
    %1991 = vdwg.mxu0
    %1992 = vmatpush.msra.mxu0 0.0
    %1993 = vmatpush.msra.mxu0 0.0
    %1994 = vmatpush.msra.mxu0 0.0
    %1995 = vmatpush.msra.mxu0 0.0
    %1996 = vmatpush.msra.mxu0 0.0
    %1997 = vmatpush.msra.mxu0 0.0
    %1998 = vmatpush.msra.mxu0 0.0
    %1999 = vmatpush.msra.mxu0 0.0
    %2000 = vmatpush.msra.mxu0 %v1532
    %2001 = vmatpush.msra.mxu0 %v1530
    %2002 = vmatpush.msra.mxu0 %v1528
    %2003 = vmatpush.msra.mxu0 %v1526
    %2004 = vmatpush.msra.mxu0 %v1524
    %2005 = vmatpush.msra.mxu0 %v1522
    %2006 = vmatpush.msra.mxu0 %v1520
    %2007 = vmatpush.msra.mxu0 %v1518
    %2008 = vmatmul.f32.gmra.mxu0 %v1970
    %v2009 = vpop.f32.mrf.mxu0
    %v2010 = vadd.f32 0.0, %v2009
    %2011 = vdwg.mxu0
    %v2014 = vrot.slane %v2010, 6
    %v2015 = vsel %vm308, %v1990, %v2014
    %v2017 = vadd.f32 %v1966, %v2015
    %v2018 = vmul.f32 %v2017, 0.5
    %2020 = vst [vmem:[#allocation1] ss:$4 sm:$0xff] %v2017
    %v2021 = vld.sshfl [vmem:[#allocation1] sm:$0xff pattern:$0x73625140]
    %v2022 = vld.sshfl [vmem:[#allocation1 + $0x8] sm:$0xff pattern:$0x73625140]
    %2026 = vst [vmem:[#allocation1] ss:$4 sm:$0xff] %v2018
    %v2027 = vld.sshfl [vmem:[#allocation1] sm:$0xff pattern:$0x73625140]
    %v2028 = vld.sshfl [vmem:[#allocation1 + $0x8] sm:$0xff pattern:$0x73625140]
    %v2031 = vsel %vm127, %v2021, %v2027
    %v2032 = vsel %vm128, %v2022, %v2028
    %v2033 = vtanh.pop %v2031
    %v2034 = vtanh.pop %v2032
    %v2035 = vadd.f32 %v2033, 1.0
    %v2036 = vadd.f32 %v2034, 1.0
    %v2037 = vmul.f32 %v2035, 0.5
    %v2038 = vmul.f32 %v2036, 0.5
    %v2039 = vsel %vm127, %v2033, %v2037
    %v2040 = vsel %vm128, %v2034, %v2038
    %v2041 = vmul.f32 %v2039, %v1961
    %v2042 = vmul.f32 %v2039, %v2040
    %2044 = vrot.lane.b32.xlu0 %v2042, 64
    %v2045 = vpop.permute.xlu0 %2044
    %v2047 = vadd.f32 %v2041, %v2045
    %v2048 = vtanh.pop %v2047
    %v2049 = vmul.f32 %v2040, %v2048
    %v2050 = vmax.f32 %v2049, 0.0
    %v2051 = vmax.f32 %v1965, %v2050
    %v2052 = vadd.f32 %v1478, %v1497
    %2054 = vrot.lane.b32.xlu0 %v2049, 64
    %v2055 = vpop.permute.xlu0 %2054
    %v2056 = vsel %vm380, %v2055, 0
    %2058 = vmatpush.msra.mxu0 0.0
    %2059 = vmatpush.msra.mxu0 0.0
    %2060 = vmatpush.msra.mxu0 0.0
    %2061 = vmatpush.msra.mxu0 0.0
    %2062 = vmatpush.msra.mxu0 0.0
    %2063 = vmatpush.msra.mxu0 0.0
    %2064 = vmatpush.msra.mxu0 0.0
    %2065 = vmatpush.msra.mxu0 0.0
    %2066 = vmatpush.msra.mxu0 %v1531
    %2067 = vmatpush.msra.mxu0 %v1529
    %2068 = vmatpush.msra.mxu0 %v1527
    %2069 = vmatpush.msra.mxu0 %v1525
    %2070 = vmatpush.msra.mxu0 %v1523
    %2071 = vmatpush.msra.mxu0 %v1521
    %2072 = vmatpush.msra.mxu0 %v1519
    %2073 = vmatpush.msra.mxu0 %v1517
    %2074 = vmatmul.f32.gmra.mxu0 %v2056
    %v2075 = vpop.f32.mrf.mxu0
    %v2076 = vadd.f32 0.0, %v2075
    %2077 = vdwg.mxu0
    %2078 = vmatpush.msra.mxu0 0.0
    %2079 = vmatpush.msra.mxu0 0.0
    %2080 = vmatpush.msra.mxu0 0.0
    %2081 = vmatpush.msra.mxu0 0.0
    %2082 = vmatpush.msra.mxu0 0.0
    %2083 = vmatpush.msra.mxu0 0.0
    %2084 = vmatpush.msra.mxu0 0.0
    %2085 = vmatpush.msra.mxu0 0.0
    %2086 = vmatpush.msra.mxu0 %v1532
    %2087 = vmatpush.msra.mxu0 %v1530
    %2088 = vmatpush.msra.mxu0 %v1528
    %2089 = vmatpush.msra.mxu0 %v1526
    %2090 = vmatpush.msra.mxu0 %v1524
    %2091 = vmatpush.msra.mxu0 %v1522
    %2092 = vmatpush.msra.mxu0 %v1520
    %2093 = vmatpush.msra.mxu0 %v1518
    %2094 = vmatmul.f32.gmra.mxu0 %v2056
    %v2095 = vpop.f32.mrf.mxu0
    %v2096 = vadd.f32 0.0, %v2095
    %2097 = vdwg.mxu0
    %v2100 = vrot.slane %v2096, 6
    %v2101 = vsel %vm308, %v2076, %v2100
    %v2103 = vadd.f32 %v2052, %v2101
    %v2104 = vmul.f32 %v2103, 0.5
    %2106 = vst [vmem:[#allocation1] ss:$4 sm:$0xff] %v2103
    %v2107 = vld.sshfl [vmem:[#allocation1] sm:$0xff pattern:$0x73625140]
    %v2108 = vld.sshfl [vmem:[#allocation1 + $0x8] sm:$0xff pattern:$0x73625140]
    %2112 = vst [vmem:[#allocation1] ss:$4 sm:$0xff] %v2104
    %v2113 = vld.sshfl [vmem:[#allocation1] sm:$0xff pattern:$0x73625140]
    %v2114 = vld.sshfl [vmem:[#allocation1 + $0x8] sm:$0xff pattern:$0x73625140]
    %v2117 = vsel %vm127, %v2107, %v2113
    %v2118 = vsel %vm128, %v2108, %v2114
    %v2119 = vtanh.pop %v2117
    %v2120 = vtanh.pop %v2118
    %v2121 = vadd.f32 %v2119, 1.0
    %v2122 = vadd.f32 %v2120, 1.0
    %v2123 = vmul.f32 %v2121, 0.5
    %v2124 = vmul.f32 %v2122, 0.5
    %v2125 = vsel %vm127, %v2119, %v2123
    %v2126 = vsel %vm128, %v2120, %v2124
    %v2127 = vmul.f32 %v2125, %v2047
    %v2128 = vmul.f32 %v2125, %v2126
    %2130 = vrot.lane.b32.xlu0 %v2128, 64
    %v2131 = vpop.permute.xlu0 %2130
    %v2133 = vadd.f32 %v2127, %v2131
    %v2134 = vtanh.pop %v2133
    %v2135 = vmul.f32 %v2126, %v2134
    %v2136 = vmax.f32 %v2135, 0.0
    %v2137 = vmax.f32 %v2051, %v2136
    %v2138 = vadd.f32 %v1480, %v1495
    %2140 = vrot.lane.b32.xlu0 %v2135, 64
    %v2141 = vpop.permute.xlu0 %2140
    %v2142 = vsel %vm380, %v2141, 0
    %2144 = vmatpush.msra.mxu0 0.0
    %2145 = vmatpush.msra.mxu0 0.0
    %2146 = vmatpush.msra.mxu0 0.0
    %2147 = vmatpush.msra.mxu0 0.0
    %2148 = vmatpush.msra.mxu0 0.0
    %2149 = vmatpush.msra.mxu0 0.0
    %2150 = vmatpush.msra.mxu0 0.0
    %2151 = vmatpush.msra.mxu0 0.0
    %2152 = vmatpush.msra.mxu0 %v1531
    %2153 = vmatpush.msra.mxu0 %v1529
    %2154 = vmatpush.msra.mxu0 %v1527
    %2155 = vmatpush.msra.mxu0 %v1525
    %2156 = vmatpush.msra.mxu0 %v1523
    %2157 = vmatpush.msra.mxu0 %v1521
    %2158 = vmatpush.msra.mxu0 %v1519
    %2159 = vmatpush.msra.mxu0 %v1517
    %2160 = vmatmul.f32.gmra.mxu0 %v2142
    %v2161 = vpop.f32.mrf.mxu0
    %v2162 = vadd.f32 0.0, %v2161
    %2163 = vdwg.mxu0
    %2164 = vmatpush.msra.mxu0 0.0
    %2165 = vmatpush.msra.mxu0 0.0
    %2166 = vmatpush.msra.mxu0 0.0
    %2167 = vmatpush.msra.mxu0 0.0
    %2168 = vmatpush.msra.mxu0 0.0
    %2169 = vmatpush.msra.mxu0 0.0
    %2170 = vmatpush.msra.mxu0 0.0
    %2171 = vmatpush.msra.mxu0 0.0
    %2172 = vmatpush.msra.mxu0 %v1532
    %2173 = vmatpush.msra.mxu0 %v1530
    %2174 = vmatpush.msra.mxu0 %v1528
    %2175 = vmatpush.msra.mxu0 %v1526
    %2176 = vmatpush.msra.mxu0 %v1524
    %2177 = vmatpush.msra.mxu0 %v1522
    %2178 = vmatpush.msra.mxu0 %v1520
    %2179 = vmatpush.msra.mxu0 %v1518
    %2180 = vmatmul.f32.gmra.mxu0 %v2142
    %v2181 = vpop.f32.mrf.mxu0
    %v2182 = vadd.f32 0.0, %v2181
    %2183 = vdwg.mxu0
    %v2186 = vrot.slane %v2182, 6
    %v2187 = vsel %vm308, %v2162, %v2186
    %v2189 = vadd.f32 %v2138, %v2187
    %v2190 = vmul.f32 %v2189, 0.5
    %2192 = vst [vmem:[#allocation1] ss:$4 sm:$0xff] %v2189
    %v2193 = vld.sshfl [vmem:[#allocation1] sm:$0xff pattern:$0x73625140]
    %v2194 = vld.sshfl [vmem:[#allocation1 + $0x8] sm:$0xff pattern:$0x73625140]
    %2198 = vst [vmem:[#allocation1] ss:$4 sm:$0xff] %v2190
    %v2199 = vld.sshfl [vmem:[#allocation1] sm:$0xff pattern:$0x73625140]
    %v2200 = vld.sshfl [vmem:[#allocation1 + $0x8] sm:$0xff pattern:$0x73625140]
    %v2203 = vsel %vm127, %v2193, %v2199
    %v2204 = vsel %vm128, %v2194, %v2200
    %v2205 = vtanh.pop %v2203
    %v2206 = vtanh.pop %v2204
    %v2207 = vadd.f32 %v2205, 1.0
    %v2208 = vadd.f32 %v2206, 1.0
    %v2209 = vmul.f32 %v2207, 0.5
    %v2210 = vmul.f32 %v2208, 0.5
    %v2211 = vsel %vm127, %v2205, %v2209
    %v2212 = vsel %vm128, %v2206, %v2210
    %v2213 = vmul.f32 %v2211, %v2133
    %v2214 = vmul.f32 %v2211, %v2212
    %2216 = vrot.lane.b32.xlu0 %v2214, 64
    %v2217 = vpop.permute.xlu0 %2216
    %v2219 = vadd.f32 %v2213, %v2217
    %v2220 = vtanh.pop %v2219
    %v2221 = vmul.f32 %v2212, %v2220
    %v2222 = vmax.f32 %v2221, 0.0
    %v2223 = vmax.f32 %v2137, %v2222
    %v2224 = vld [vmem:[#allocation12] sm:$0xff]
    %v2225 = vld [vmem:[#allocation12 + $0x8] sm:$0xff]
    %v2226 = vld [vmem:[#allocation12 + $0x10] sm:$0xff]
    %v2227 = vld [vmem:[#allocation12 + $0x18] sm:$0xff]
    %v2228 = vld [vmem:[#allocation12 + $0x20] sm:$0xff]
    %v2229 = vld [vmem:[#allocation12 + $0x28] sm:$0xff]
    %v2230 = vld [vmem:[#allocation12 + $0x30] sm:$0xff]
    %v2231 = vld [vmem:[#allocation12 + $0x38] sm:$0xff]
    %v2232 = vld [vmem:[%s11] sm:$0x1]
    %v2234 = vperm.slane %v2232, 0
    %2237 = vrot.lane.b32.xlu0 %v2223, 64
    %v2238 = vpop.permute.xlu0 %2237
    %v2239 = vsel %vm380, %v2238, 0
    %2241 = vmatpush.msra.mxu0 0.0
    %2242 = vmatpush.msra.mxu0 0.0
    %2243 = vmatpush.msra.mxu0 0.0
    %2244 = vmatpush.msra.mxu0 0.0
    %2245 = vmatpush.msra.mxu0 0.0
    %2246 = vmatpush.msra.mxu0 0.0
    %2247 = vmatpush.msra.mxu0 0.0
    %2248 = vmatpush.msra.mxu0 0.0
    %2249 = vmatpush.msra.mxu0 %v2231
    %2250 = vmatpush.msra.mxu0 %v2230
    %2251 = vmatpush.msra.mxu0 %v2229
    %2252 = vmatpush.msra.mxu0 %v2228
    %2253 = vmatpush.msra.mxu0 %v2227
    %2254 = vmatpush.msra.mxu0 %v2226
    %2255 = vmatpush.msra.mxu0 %v2225
    %2256 = vmatpush.msra.mxu0 %v2224
    %2257 = vmatmul.f32.gmra.mxu0 %v2239
    %v2258 = vpop.f32.mrf.mxu0
    %v2259 = vadd.f32 %v2234, %v2258
    %2260 = vdwg.mxu0
    %2261 = vst [vmem:[#allocation13] sm:$0x3] %v2259
    // Predicated region
    $region70: #{lstm_model_forward.1} parent=1 // pred_check
      _
    $region71: #{lstm_model_forward.1} parent=1 // pred_check_branch
      %2263 = sbr.rel (0) target = $region73
    $region72: #{lstm_model_forward.1} parent=1 // pred_region
      %2265 = vsyncadd [#allocation6], 0
      %s2267 = sshll.u32 [#allocation13], 4
      %s2268 = int_to_ptr.vmem [resolvable:$true] %s2267
      %s2269 = sshll.u32 %s12, 4
      %s2270 = int_to_ptr.hbm [resolvable:$true] %s2269
      %2272 = dma.vmem_to_hbm [thread:$0]  %s2268, 32, %s2270, [#allocation6]
    $region73: #{lstm_model_forward.1} parent=1 // pred_fallthru
      _
    // Predicated region
    $region74: #{lstm_model_forward.1} parent=1 // pred_check
      _
    $region75: #{lstm_model_forward.1} parent=1 // pred_check_branch
      %2274 = sbr.rel (0) target = $region77
    $region76: #{lstm_model_forward.1} parent=1 // pred_region
      %2276 = dma.done [#allocation6], 32
    $region77: #{lstm_model_forward.1} parent=1 // pred_fallthru
      _
    %2277 = vsyncpa [#allocation5], 1
    %2278 = vsyncpa [#allocation8], 1
    %2279 = vsyncpa [#allocation11], 1
    %2280 = vsyncpa [#allocation6], 1

</llo_original>
